<compile_context>
chip_gen: v7x
topology: tpu7x:2x2x1
jax: 0.10.0
libtpu: 0.0.40
codegen_flags: <defaults>
</compile_context>

<pallas_src>
import math
import functools

import jax
import jax.numpy as jnp
from jax import lax
from jax.experimental import pallas as pl
from jax.experimental.pallas import tpu as pltpu


# ------------------------- fused decoder-layer kernel -------------------------

def _decoder_layer_kernel(*refs, num_heads, use_tgt_mask, use_mem_mask, eps):
    it = iter(refs)
    tgt_ref = next(it)                                  # (1, S, D) f32
    enc_ref = next(it)                                  # (1, Ssrc, D) f32
    tbias_ref = next(it) if use_tgt_mask else None      # (1, S, S) f32 additive
    mbias_ref = next(it) if use_mem_mask else None      # (1, S, Ssrc) f32 additive
    sa_wqkv = next(it); sa_bqkv = next(it); sa_wo = next(it); sa_bo = next(it)
    ca_wq = next(it); ca_bq = next(it)
    ca_wkv = next(it); ca_bkv = next(it)
    ca_wo = next(it); ca_bo = next(it)
    ffn_w1 = next(it); ffn_b1 = next(it); ffn_w2 = next(it); ffn_b2 = next(it)
    g1 = next(it); b1 = next(it)
    g2 = next(it); b2 = next(it)
    g3 = next(it); b3 = next(it)
    out_ref = next(it)                                  # (1, S, D) f32
    sa_attn_ref = next(it)                              # (1, H, S, S) bf16
    ca_attn_ref = next(it)                              # (1, H, S, Ssrc) bf16

    x = tgt_ref[0]                                      # (S, D) f32
    enc = enc_ref[0]                                    # (Ssrc, D) f32
    S, D = x.shape
    H = num_heads
    Dh = D // H
    scale = 1.0 / math.sqrt(Dh)

    def matmul(a_f32, w_ref, bias_ref, relu=False):
        # bf16 MXU matmul, f32 accumulation, f32 bias/activation math.
        y = jnp.dot(a_f32.astype(jnp.bfloat16), w_ref[...],
                    preferred_element_type=jnp.float32) + bias_ref[...]
        if relu:
            y = jnp.maximum(y, 0.0)
        return y

    def layernorm(v, g_ref, beta_ref):
        mu = jnp.mean(v, axis=-1, keepdims=True)
        var = jnp.mean((v - mu) ** 2, axis=-1, keepdims=True)
        return (v - mu) * lax.rsqrt(var + eps) * g_ref[...] + beta_ref[...]

    def mha(q2d, k2d, v2d, bias, wo_ref, attn_ref):
        # Head loop is statically unrolled but all O(H)-redundant work (mask
        # bias, scale, bf16 casts) is hoisted; no lane-axis concatenate — the
        # output projection is accumulated per head with a sublane-sliced W_o.
        Sq = q2d.shape[0]
        q_bf = (q2d * scale).astype(jnp.bfloat16)        # (Sq, D)
        k_bf = k2d.astype(jnp.bfloat16)                  # (Sk, D)
        v_bf = v2d.astype(jnp.bfloat16)                  # (Sk, D)
        wo = wo_ref[...]                                 # (D, D) bf16, loaded once
        out = jnp.zeros((Sq, D), jnp.float32)
        for h in range(H):
            sl = slice(h * Dh, (h + 1) * Dh)
            # contract on last dims directly — no explicit K transpose
            s = lax.dot_general(q_bf[:, sl], k_bf[:, sl],
                                (((1,), (1,)), ((), ())),
                                preferred_element_type=jnp.float32)   # (Sq, Sk)
            if bias is not None:
                s = s + bias
            s = s - jnp.max(s, axis=-1, keepdims=True)
            e = jnp.exp(s)
            p = e / jnp.sum(e, axis=-1, keepdims=True)   # exact normalization
            attn_ref[0, h] = p.astype(attn_ref.dtype)
            ctx = jnp.dot(p.astype(jnp.bfloat16), v_bf[:, sl],
                          preferred_element_type=jnp.float32)         # (Sq, Dh)
            out = out + jnp.dot(ctx.astype(jnp.bfloat16), wo[sl, :],
                                preferred_element_type=jnp.float32)   # (Sq, D)
        return out

    tb = None if tbias_ref is None else tbias_ref[0]
    mb = None if mbias_ref is None else mbias_ref[0]

    # ---- masked self-attention (fused QKV projection) ----
    qkv = matmul(x, sa_wqkv, sa_bqkv)                              # (S, 3D)
    sa_out = mha(qkv[:, :D], qkv[:, D:2 * D], qkv[:, 2 * D:], tb,
                 sa_wo, sa_attn_ref)
    x = layernorm(x + sa_out + sa_bo[...], g1, b1)

    # ---- encoder-decoder attention (fused KV projection) ----
    q = matmul(x, ca_wq, ca_bq)                                    # (S, D)
    kv = matmul(enc, ca_wkv, ca_bkv)                               # (Ssrc, 2D)
    ca_out = mha(q, kv[:, :D], kv[:, D:], mb, ca_wo, ca_attn_ref)
    x = layernorm(x + ca_out + ca_bo[...], g2, b2)

    # ---- feed-forward ----
    hdn = matmul(x, ffn_w1, ffn_b1, relu=True)                     # (S, F)
    x = layernorm(x + matmul(hdn, ffn_w2, ffn_b2), g3, b3)

    out_ref[0] = x


def decoder_layer(tgt, enc_output, lp, tgt_bias, mem_bias, num_heads,
                  attn_dtype=jnp.bfloat16):
    """One fused pallas_call per decoder layer; grid over batch (parallel)."""
    B, S, D = tgt.shape
    Ssrc = enc_output.shape[1]
    H = num_heads

    use_tbias = tgt_bias is not None
    use_mbias = mem_bias is not None

    args = [tgt, enc_output]
    in_specs = [
        pl.BlockSpec((1, S, D), lambda b: (b, 0, 0)),
        pl.BlockSpec((1, Ssrc, D), lambda b: (b, 0, 0)),
    ]
    if use_tbias:
        args.append(tgt_bias)
        in_specs.append(pl.BlockSpec((1, S, S), lambda b: (b, 0, 0)))
    if use_mbias:
        args.append(mem_bias)
        in_specs.append(pl.BlockSpec((1, S, Ssrc), lambda b: (b, 0, 0)))

    def const_spec(a):
        nd = a.ndim
        # Constant block index → weight stays resident in VMEM across the grid.
        return pl.BlockSpec(a.shape, lambda b, _n=nd: (0,) * _n)

    weight_names = ["sa_wqkv", "sa_bqkv", "sa_wo", "sa_bo",
                    "ca_wq", "ca_bq", "ca_wkv", "ca_bkv", "ca_wo", "ca_bo",
                    "ffn_w1", "ffn_b1", "ffn_w2", "ffn_b2",
                    "norm1_g", "norm1_b", "norm2_g", "norm2_b",
                    "norm3_g", "norm3_b"]
    for name in weight_names:
        a = lp[name]
        args.append(a)
        in_specs.append(const_spec(a))

    kern = functools.partial(_decoder_layer_kernel, num_heads=H,
                             use_tgt_mask=use_tbias, use_mem_mask=use_mbias,
                             eps=1e-5)

    out, sa, eda = pl.pallas_call(
        kern,
        out_shape=(jax.ShapeDtypeStruct((B, S, D), jnp.float32),
                   jax.ShapeDtypeStruct((B, H, S, S), attn_dtype),
                   jax.ShapeDtypeStruct((B, H, S, Ssrc), attn_dtype)),
        grid=(B,),
        in_specs=in_specs,
        out_specs=(pl.BlockSpec((1, S, D), lambda b: (b, 0, 0)),
                   pl.BlockSpec((1, H, S, S), lambda b: (b, 0, 0, 0)),
                   pl.BlockSpec((1, H, S, Ssrc), lambda b: (b, 0, 0, 0))),
        compiler_params=pltpu.CompilerParams(
            dimension_semantics=("parallel",),
            # headroom below v7x's 64 MiB physical VMEM; above the 16/32 MiB
            # default scoped limits of v5e/v6e
            vmem_limit_bytes=48 * 1024 * 1024),
    )(*args)
    return out, sa, eda


# ------------------------ final vocab projection kernel ------------------------

def _fc_kernel(x_ref, w_ref, b_ref, o_ref):
    # x already bf16 (pre-cast once in the wrapper, not per vocab tile)
    o_ref[...] = jnp.dot(x_ref[...], w_ref[...],
                         preferred_element_type=jnp.float32) + b_ref[...]


def fc_projection(x2d_bf16, w_bf16, b_f32):
    """y = x @ w + b with the (128-padded) vocab axis tiled lane-densely."""
    M, K = x2d_bf16.shape
    Npad = w_bf16.shape[1]                      # already a multiple of 128
    # Largest 128-multiple divisor of Npad, capped at 1024 (fits v7x VMEM with
    # double-buffered weight tiles; v5e/v6e have ample headroom).
    tn = 128
    for cand in range(min(1024, Npad), 127, -128):
        if Npad % cand == 0:
            tn = cand
            break
    return pl.pallas_call(
        _fc_kernel,
        out_shape=jax.ShapeDtypeStruct((M, Npad), jnp.float32),
        grid=(Npad // tn,),
        in_specs=[
            pl.BlockSpec((M, K), lambda j: (0, 0)),     # resident activations
            pl.BlockSpec((K, tn), lambda j: (0, j)),    # streamed weight tiles
            pl.BlockSpec((1, tn), lambda j: (0, j)),
        ],
        out_specs=pl.BlockSpec((M, tn), lambda j: (0, j)),
        compiler_params=pltpu.CompilerParams(
            dimension_semantics=("parallel",),
            vmem_limit_bytes=48 * 1024 * 1024),
    )(x2d_bf16, w_bf16, b_f32)


# --------------------------------- model glue ---------------------------------

def positional_encoding(max_len, d_model):
    pos = jnp.arange(max_len, dtype=jnp.float32)[:, None]
    i = jnp.arange(0, d_model, 2, dtype=jnp.float32)[None, :]
    angle = pos / jnp.power(10000.0, i / float(d_model))
    pe = jnp.zeros((max_len, d_model), jnp.float32)
    pe = pe.at[:, 0::2].set(jnp.sin(angle))
    pe = pe.at[:, 1::2].set(jnp.cos(angle))
    return pe


def full_decoder(params, tgt_tokens, enc_output, tgt_mask=None, memory_mask=None,
                 *, num_heads, vocab_size, attn_dtype=jnp.bfloat16):
    B, S = tgt_tokens.shape
    D = params["emb"].shape[1]
    Ssrc = enc_output.shape[1]

    # Token embedding (padding_idx=0 row is zero) scaled by sqrt(d_model),
    # then sinusoidal positional encoding.  (Glue: gather + add.)
    x = jnp.take(params["emb"], tgt_tokens, axis=0) * math.sqrt(D)
    x = x + params["pe"][:S][None, :, :]

    # Convert masks (0/1 or bool, [B,1,Sq,Sk]) to an additive bias once —
    # computed a single time for all layers, robust and cheaper in-kernel.
    def to_bias(mask, sk):
        if mask is None:
            return None
        m = mask.reshape(B, S, sk)
        return jnp.where(m == 0, -1e9, 0.0).astype(jnp.float32)

    tgt_bias = to_bias(tgt_mask, S)
    mem_bias = to_bias(memory_mask, Ssrc)

    self_attns, enc_dec_attns = [], []
    for lp in params["layers"]:
        x, sa, eda = decoder_layer(x, enc_output, lp, tgt_bias, mem_bias,
                                   num_heads, attn_dtype)
        self_attns.append(sa)
        enc_dec_attns.append(eda)

    logits = fc_projection(x.reshape(B * S, D).astype(jnp.bfloat16),
                           params["fc_w"], params["fc_b"])
    logits = logits[:, :vocab_size].reshape(B, S, vocab_size)
    return logits, self_attns, enc_dec_attns


# ------------------------------- parameter init --------------------------------

def init_params(key, vocab_size, d_model, num_heads, d_ff, num_layers):
    keys = iter(jax.random.split(key, 2 + 7 * num_layers))

    def w(shape, dtype=jnp.bfloat16, scale=0.02):
        return (scale * jax.random.normal(next(keys), shape)).astype(dtype)

    emb = (0.02 * jax.random.normal(next(keys), (vocab_size, d_model))
           ).astype(jnp.float32)
    emb = emb.at[0].set(0.0)                    # padding_idx = 0

    layers = []
    for _ in range(num_layers):
        layers.append({
            # self-attention: fused QKV weight (D, 3D) = [wq | wk | wv]
            "sa_wqkv": w((d_model, 3 * d_model)),
            "sa_bqkv": jnp.zeros((1, 3 * d_model), jnp.float32),
            "sa_wo": w((d_model, d_model)),
            "sa_bo": jnp.zeros((1, d_model), jnp.float32),
            # cross-attention: Q from tgt, fused KV (D, 2D) from encoder output
            "ca_wq": w((d_model, d_model)),
            "ca_bq": jnp.zeros((1, d_model), jnp.float32),
            "ca_wkv": w((d_model, 2 * d_model)),
            "ca_bkv": jnp.zeros((1, 2 * d_model), jnp.float32),
            "ca_wo": w((d_model, d_model)),
            "ca_bo": jnp.zeros((1, d_model), jnp.float32),
            # feed-forward
            "ffn_w1": w((d_model, d_ff)),
            "ffn_b1": jnp.zeros((1, d_ff), jnp.float32),
            "ffn_w2": w((d_ff, d_model)),
            "ffn_b2": jnp.zeros((1, d_model), jnp.float32),
            # layer norms
            "norm1_g": jnp.ones((1, d_model), jnp.float32),
            "norm1_b": jnp.zeros((1, d_model), jnp.float32),
            "norm2_g": jnp.ones((1, d_model), jnp.float32),
            "norm2_b": jnp.zeros((1, d_model), jnp.float32),
            "norm3_g": jnp.ones((1, d_model), jnp.float32),
            "norm3_b": jnp.zeros((1, d_model), jnp.float32),
        })

    # Final projection: pad vocab up to a multiple of 128 for lane-dense stores.
    npad = ((vocab_size + 127) // 128) * 128
    fc_w = w((d_model, vocab_size), dtype=jnp.float32)
    fc_w = jnp.pad(fc_w, ((0, 0), (0, npad - vocab_size))).astype(jnp.bfloat16)
    fc_b = jnp.zeros((1, npad), jnp.float32)

    return {
        "emb": emb,
        "pe": positional_encoding(5000, d_model),
        "layers": layers,
        "fc_w": fc_w,
        "fc_b": fc_b,
    }


# ------------------------------------ main --------------------------------------

if __name__ == "__main__":
    B, S_TGT, S_SRC = 2, 8, 8
    VOCAB, D_MODEL, HEADS, D_FF, LAYERS = 50, 32, 4, 64, 2

    root = jax.random.PRNGKey(0)
    k_par, k_tok, k_enc = jax.random.split(root, 3)

    params = init_params(k_par, VOCAB, D_MODEL, HEADS, D_FF, LAYERS)

    tgt_tokens = jax.random.randint(k_tok, (B, S_TGT), 0, VOCAB, dtype=jnp.int32)
    enc_output = jax.random.normal(k_enc, (B, S_SRC, D_MODEL), dtype=jnp.float32)

    # Causal mask for the target (1 = attend, 0 = masked), shape [B, 1, S, S].
    causal = jnp.tril(jnp.ones((S_TGT, S_TGT), jnp.float32))
    tgt_mask = jnp.broadcast_to(causal, (B, 1, S_TGT, S_TGT))
    memory_mask = None   # attend to all encoder positions (bias DMA skipped)

    fwd = jax.jit(functools.partial(full_decoder, num_heads=HEADS,
                                    vocab_size=VOCAB))
    logits, self_attns, enc_dec_attns = fwd(params, tgt_tokens, enc_output,
                                            tgt_mask, memory_mask)

    jax.block_until_ready(logits)
    jax.block_until_ready(self_attns)
    jax.block_until_ready(enc_dec_attns)

    assert logits.shape == (B, S_TGT, VOCAB)
    assert len(self_attns) == LAYERS and self_attns[0].shape == (B, HEADS, S_TGT, S_TGT)
    assert len(enc_dec_attns) == LAYERS and enc_dec_attns[0].shape == (B, HEADS, S_TGT, S_SRC)
    # Softmax is normalized exactly in-kernel; stored weights are bf16, so rows
    # sum to 1 within bf16 rounding.
    sa_rows = self_attns[0].astype(jnp.float32).sum(-1)
    ca_rows = enc_dec_attns[0].astype(jnp.float32).sum(-1)
    assert bool(jnp.allclose(sa_rows, 1.0, atol=1e-2))
    assert bool(jnp.allclose(ca_rows, 1.0, atol=1e-2))
    # Causal masking: upper-triangular self-attention weights must be ~0.
    upper = jnp.triu(jnp.ones((S_TGT, S_TGT), jnp.float32), k=1)
    assert float(jnp.max(self_attns[0].astype(jnp.float32) * upper)) < 1e-3

    print("KERNEL_OK")
</pallas_src>

<mosaic_0001>
module attributes {stable_mosaic.version = 11 : i64} {
  func.func @_fc_kernel(%arg0: i32, %arg1: memref<16x32xbf16, #tpu.memory_space<vmem>>, %arg2: memref<32x128xbf16, #tpu.memory_space<vmem>>, %arg3: memref<1x128xf32, #tpu.memory_space<vmem>>, %arg4: memref<16x128xf32, #tpu.memory_space<vmem>>) attributes {dimension_semantics = [#tpu.dimension_semantics<parallel>], iteration_bounds = array<i64: 1>, scalar_prefetch = 0 : i64, scratch_operands = 0 : i64, tpu.core_type = #tpu.core_type<tc>, window_params = [{pipeline_mode = #tpu.pipeline_mode<synchronous>, transform_indices = @transform_0, window_bounds = array<i64: 16, 32>}, {transform_indices = @transform_1, window_bounds = array<i64: 32, 128>}, {transform_indices = @transform_2, window_bounds = array<i64: 1, 128>}, {transform_indices = @transform_3, window_bounds = array<i64: 16, 128>}]} {
    %c0 = arith.constant 0 : index
    %c0_0 = arith.constant 0 : index
    %0 = vector.load %arg1[%c0, %c0_0] : memref<16x32xbf16, #tpu.memory_space<vmem>>, vector<16x32xbf16>
    %c0_1 = arith.constant 0 : index
    %c0_2 = arith.constant 0 : index
    %1 = vector.load %arg2[%c0_1, %c0_2] : memref<32x128xbf16, #tpu.memory_space<vmem>>, vector<32x128xbf16>
    %cst = arith.constant dense<0.000000e+00> : vector<16x128xf32>
    %2 = tpu.matmul %0, %1, %cst {dimension_numbers = #tpu.dot_dimension_numbers<[1], [0], [0], [1], [0, 0, 1, 1], [], []>} : vector<16x32xbf16>, vector<32x128xbf16>, vector<16x128xf32> -> vector<16x128xf32>
    %c0_3 = arith.constant 0 : index
    %c0_4 = arith.constant 0 : index
    %3 = vector.load %arg3[%c0_3, %c0_4] : memref<1x128xf32, #tpu.memory_space<vmem>>, vector<1x128xf32>
    %4 = vector.broadcast %3 : vector<1x128xf32> to vector<16x128xf32>
    %5 = arith.addf %2, %4 : vector<16x128xf32>
    %c0_5 = arith.constant 0 : index
    %c0_6 = arith.constant 0 : index
    %6 = vector.load %arg4[%c0_5, %c0_6] : memref<16x128xf32, #tpu.memory_space<vmem>>, vector<16x128xf32>
    tpu.vector_store %arg4[%c0_5, %c0_6], %5 {strides = array<i32>} : memref<16x128xf32, #tpu.memory_space<vmem>>, vector<16x128xf32>,
    return
  }
  func.func @transform_0(%arg0: i32) -> (i32, i32) {
    %c0_i32 = arith.constant 0 : i32
    %c0_i32_0 = arith.constant 0 : i32
    %c0_i32_1 = arith.constant 0 : i32
    return %c0_i32, %c0_i32_0 : i32, i32
  }
  func.func @transform_1(%arg0: i32) -> (i32, i32) {
    %c0_i32 = arith.constant 0 : i32
    %c0_i32_0 = arith.constant 0 : i32
    return %c0_i32, %arg0 : i32, i32
  }
  func.func @transform_2(%arg0: i32) -> (i32, i32) {
    %c0_i32 = arith.constant 0 : i32
    %c0_i32_0 = arith.constant 0 : i32
    return %c0_i32, %arg0 : i32, i32
  }
  func.func @transform_3(%arg0: i32) -> (i32, i32) {
    %c0_i32 = arith.constant 0 : i32
    %c0_i32_0 = arith.constant 0 : i32
    return %c0_i32, %arg0 : i32, i32
  }
}

module attributes {stable_mosaic.version = 11 : i64} {
  func.func @_decoder_layer_kernel(%arg0: i32, %arg1: memref<1x8x32xf32, #tpu.memory_space<vmem>>, %arg2: memref<1x8x32xf32, #tpu.memory_space<vmem>>, %arg3: memref<1x8x8xf32, #tpu.memory_space<vmem>>, %arg4: memref<32x96xbf16, #tpu.memory_space<vmem>>, %arg5: memref<1x96xf32, #tpu.memory_space<vmem>>, %arg6: memref<32x32xbf16, #tpu.memory_space<vmem>>, %arg7: memref<1x32xf32, #tpu.memory_space<vmem>>, %arg8: memref<32x32xbf16, #tpu.memory_space<vmem>>, %arg9: memref<1x32xf32, #tpu.memory_space<vmem>>, %arg10: memref<32x64xbf16, #tpu.memory_space<vmem>>, %arg11: memref<1x64xf32, #tpu.memory_space<vmem>>, %arg12: memref<32x32xbf16, #tpu.memory_space<vmem>>, %arg13: memref<1x32xf32, #tpu.memory_space<vmem>>, %arg14: memref<32x64xbf16, #tpu.memory_space<vmem>>, %arg15: memref<1x64xf32, #tpu.memory_space<vmem>>, %arg16: memref<64x32xbf16, #tpu.memory_space<vmem>>, %arg17: memref<1x32xf32, #tpu.memory_space<vmem>>, %arg18: memref<1x32xf32, #tpu.memory_space<vmem>>, %arg19: memref<1x32xf32, #tpu.memory_space<vmem>>, %arg20: memref<1x32xf32, #tpu.memory_space<vmem>>, %arg21: memref<1x32xf32, #tpu.memory_space<vmem>>, %arg22: memref<1x32xf32, #tpu.memory_space<vmem>>, %arg23: memref<1x32xf32, #tpu.memory_space<vmem>>, %arg24: memref<1x8x32xf32, #tpu.memory_space<vmem>>, %arg25: memref<1x4x8x8xbf16, #tpu.memory_space<vmem>>, %arg26: memref<1x4x8x8xbf16, #tpu.memory_space<vmem>>) attributes {dimension_semantics = [#tpu.dimension_semantics<parallel>], iteration_bounds = array<i64: 2>, scalar_prefetch = 0 : i64, scratch_operands = 0 : i64, tpu.core_type = #tpu.core_type<tc>, window_params = [{transform_indices = @transform_0, window_bounds = array<i64: 1, 8, 32>}, {transform_indices = @transform_1, window_bounds = array<i64: 1, 8, 32>}, {transform_indices = @transform_2, window_bounds = array<i64: 1, 8, 8>}, {pipeline_mode = #tpu.pipeline_mode<synchronous>, transform_indices = @transform_3, window_bounds = array<i64: 32, 96>}, {pipeline_mode = #tpu.pipeline_mode<synchronous>, transform_indices = @transform_4, window_bounds = array<i64: 1, 96>}, {pipeline_mode = #tpu.pipeline_mode<synchronous>, transform_indices = @transform_5, window_bounds = array<i64: 32, 32>}, {pipeline_mode = #tpu.pipeline_mode<synchronous>, transform_indices = @transform_6, window_bounds = array<i64: 1, 32>}, {pipeline_mode = #tpu.pipeline_mode<synchronous>, transform_indices = @transform_7, window_bounds = array<i64: 32, 32>}, {pipeline_mode = #tpu.pipeline_mode<synchronous>, transform_indices = @transform_8, window_bounds = array<i64: 1, 32>}, {pipeline_mode = #tpu.pipeline_mode<synchronous>, transform_indices = @transform_9, window_bounds = array<i64: 32, 64>}, {pipeline_mode = #tpu.pipeline_mode<synchronous>, transform_indices = @transform_10, window_bounds = array<i64: 1, 64>}, {pipeline_mode = #tpu.pipeline_mode<synchronous>, transform_indices = @transform_11, window_bounds = array<i64: 32, 32>}, {pipeline_mode = #tpu.pipeline_mode<synchronous>, transform_indices = @transform_12, window_bounds = array<i64: 1, 32>}, {pipeline_mode = #tpu.pipeline_mode<synchronous>, transform_indices = @transform_13, window_bounds = array<i64: 32, 64>}, {pipeline_mode = #tpu.pipeline_mode<synchronous>, transform_indices = @transform_14, window_bounds = array<i64: 1, 64>}, {pipeline_mode = #tpu.pipeline_mode<synchronous>, transform_indices = @transform_15, window_bounds = array<i64: 64, 32>}, {pipeline_mode = #tpu.pipeline_mode<synchronous>, transform_indices = @transform_16, window_bounds = array<i64: 1, 32>}, {pipeline_mode = #tpu.pipeline_mode<synchronous>, transform_indices = @transform_17, window_bounds = array<i64: 1, 32>}, {pipeline_mode = #tpu.pipeline_mode<synchronous>, transform_indices = @transform_18, window_bounds = array<i64: 1, 32>}, {pipeline_mode = #tpu.pipeline_mode<synchronous>, transform_indices = @transform_19, window_bounds = array<i64: 1, 32>}, {pipeline_mode = #tpu.pipeline_mode<synchronous>, transform_indices = @transform_20, window_bounds = array<i64: 1, 32>}, {pipeline_mode = #tpu.pipeline_mode<synchronous>, transform_indices = @transform_21, window_bounds = array<i64: 1, 32>}, {pipeline_mode = #tpu.pipeline_mode<synchronous>, transform_indices = @transform_22, window_bounds = array<i64: 1, 32>}, {transform_indices = @transform_23, window_bounds = array<i64: 1, 8, 32>}, {transform_indices = @transform_24, window_bounds = array<i64: 1, 4, 8, 8>}, {transform_indices = @transform_25, window_bounds = array<i64: 1, 4, 8, 8>}]} {
    %c0 = arith.constant 0 : index
    %c0_0 = arith.constant 0 : index
    %c0_1 = arith.constant 0 : index
    %0 = vector.load %arg1[%c0, %c0_0, %c0_1] : memref<1x8x32xf32, #tpu.memory_space<vmem>>, vector<1x8x32xf32>
    %1 = vector.shape_cast %0 : vector<1x8x32xf32> to vector<8x32xf32>
    %c0_2 = arith.constant 0 : index
    %c0_3 = arith.constant 0 : index
    %c0_4 = arith.constant 0 : index
    %2 = vector.load %arg2[%c0_2, %c0_3, %c0_4] : memref<1x8x32xf32, #tpu.memory_space<vmem>>, vector<1x8x32xf32>
    %3 = vector.shape_cast %2 : vector<1x8x32xf32> to vector<8x32xf32>
    %c0_5 = arith.constant 0 : index
    %c0_6 = arith.constant 0 : index
    %c0_7 = arith.constant 0 : index
    %4 = vector.load %arg3[%c0_5, %c0_6, %c0_7] : memref<1x8x8xf32, #tpu.memory_space<vmem>>, vector<1x8x8xf32>
    %5 = vector.shape_cast %4 : vector<1x8x8xf32> to vector<8x8xf32>
    %6 = arith.truncf %1 : vector<8x32xf32> to vector<8x32xbf16>
    %c0_8 = arith.constant 0 : index
    %c0_9 = arith.constant 0 : index
    %7 = vector.load %arg4[%c0_8, %c0_9] : memref<32x96xbf16, #tpu.memory_space<vmem>>, vector<32x96xbf16>
    %cst = arith.constant dense<0.000000e+00> : vector<8x96xf32>
    %8 = tpu.matmul %6, %7, %cst {dimension_numbers = #tpu.dot_dimension_numbers<[1], [0], [0], [1], [0, 0, 1, 1], [], []>} : vector<8x32xbf16>, vector<32x96xbf16>, vector<8x96xf32> -> vector<8x96xf32>
    %c0_10 = arith.constant 0 : index
    %c0_11 = arith.constant 0 : index
    %9 = vector.load %arg5[%c0_10, %c0_11] : memref<1x96xf32, #tpu.memory_space<vmem>>, vector<1x96xf32>
    %10 = vector.broadcast %9 : vector<1x96xf32> to vector<8x96xf32>
    %11 = arith.addf %8, %10 : vector<8x96xf32>
    %12 = vector.extract_strided_slice %11 {offsets = [0, 0], sizes = [8, 32], strides = [1, 1]} : vector<8x96xf32> to vector<8x32xf32>
    %13 = vector.extract_strided_slice %11 {offsets = [0, 32], sizes = [8, 32], strides = [1, 1]} : vector<8x96xf32> to vector<8x32xf32>
    %14 = vector.extract_strided_slice %11 {offsets = [0, 64], sizes = [8, 32], strides = [1, 1]} : vector<8x96xf32> to vector<8x32xf32>
    %cst_12 = arith.constant 0.353553385 : f32
    %15 = vector.broadcast %cst_12 : f32 to vector<8x32xf32>
    %16 = arith.mulf %12, %15 : vector<8x32xf32>
    %17 = arith.truncf %16 : vector<8x32xf32> to vector<8x32xbf16>
    %18 = arith.truncf %13 : vector<8x32xf32> to vector<8x32xbf16>
    %19 = arith.truncf %14 : vector<8x32xf32> to vector<8x32xbf16>
    %c0_13 = arith.constant 0 : index
    %c0_14 = arith.constant 0 : index
    %20 = vector.load %arg6[%c0_13, %c0_14] : memref<32x32xbf16, #tpu.memory_space<vmem>>, vector<32x32xbf16>
    %cst_15 = arith.constant 0.000000e+00 : f32
    %21 = vector.broadcast %cst_15 : f32 to vector<8x32xf32>
    %22 = vector.extract_strided_slice %17 {offsets = [0, 0], sizes = [8, 8], strides = [1, 1]} : vector<8x32xbf16> to vector<8x8xbf16>
    %23 = vector.extract_strided_slice %18 {offsets = [0, 0], sizes = [8, 8], strides = [1, 1]} : vector<8x32xbf16> to vector<8x8xbf16>
    %cst_16 = arith.constant dense<0.000000e+00> : vector<8x8xf32>
    %24 = tpu.matmul %22, %23, %cst_16 {dimension_numbers = #tpu.dot_dimension_numbers<[1], [1], [0], [0], [0, 0, 1, 0], [], []>} : vector<8x8xbf16>, vector<8x8xbf16>, vector<8x8xf32> -> vector<8x8xf32>
    %25 = arith.addf %24, %5 : vector<8x8xf32>
    %cst_17 = arith.constant dense<0xFF800000> : vector<8xf32>
    %26 = vector.multi_reduction <maximumf>, %25, %cst_17 [1] : vector<8x8xf32> to vector<8xf32>
    %27 = vector.shape_cast %26 : vector<8xf32> to vector<8x1xf32>
    %28 = vector.broadcast %27 : vector<8x1xf32> to vector<8x8xf32>
    %29 = arith.subf %25, %28 : vector<8x8xf32>
    %30 = math.exp %29 : vector<8x8xf32>
    %cst_18 = arith.constant dense<0.000000e+00> : vector<8xf32>
    %31 = vector.multi_reduction <add>, %30, %cst_18 [1] : vector<8x8xf32> to vector<8xf32>
    %32 = vector.shape_cast %31 : vector<8xf32> to vector<8x1xf32>
    %33 = vector.broadcast %32 : vector<8x1xf32> to vector<8x8xf32>
    %34 = arith.divf %30, %33 : vector<8x8xf32>
    %35 = arith.truncf %34 : vector<8x8xf32> to vector<8x8xbf16>
    %c0_19 = arith.constant 0 : index
    %c0_20 = arith.constant 0 : index
    %c0_21 = arith.constant 0 : index
    %c0_22 = arith.constant 0 : index
    %36 = vector.load %arg25[%c0_19, %c0_20, %c0_21, %c0_22] : memref<1x4x8x8xbf16, #tpu.memory_space<vmem>>, vector<1x1x8x8xbf16>
    %37 = vector.shape_cast %36 : vector<1x1x8x8xbf16> to vector<8x8xbf16>
    %38 = vector.shape_cast %35 : vector<8x8xbf16> to vector<1x1x8x8xbf16>
    tpu.vector_store %arg25[%c0_19, %c0_20, %c0_21, %c0_22], %38 {strides = array<i32>} : memref<1x4x8x8xbf16, #tpu.memory_space<vmem>>, vector<1x1x8x8xbf16>,
    %39 = arith.truncf %34 : vector<8x8xf32> to vector<8x8xbf16>
    %40 = vector.extract_strided_slice %19 {offsets = [0, 0], sizes = [8, 8], strides = [1, 1]} : vector<8x32xbf16> to vector<8x8xbf16>
    %cst_23 = arith.constant dense<0.000000e+00> : vector<8x8xf32>
    %41 = tpu.matmul %39, %40, %cst_23 {dimension_numbers = #tpu.dot_dimension_numbers<[1], [0], [0], [1], [0, 0, 1, 1], [], []>} : vector<8x8xbf16>, vector<8x8xbf16>, vector<8x8xf32> -> vector<8x8xf32>
    %42 = arith.truncf %41 : vector<8x8xf32> to vector<8x8xbf16>
    %43 = vector.extract_strided_slice %20 {offsets = [0, 0], sizes = [8, 32], strides = [1, 1]} : vector<32x32xbf16> to vector<8x32xbf16>
    %cst_24 = arith.constant dense<0.000000e+00> : vector<8x32xf32>
    %44 = tpu.matmul %42, %43, %cst_24 {dimension_numbers = #tpu.dot_dimension_numbers<[1], [0], [0], [1], [0, 0, 1, 1], [], []>} : vector<8x8xbf16>, vector<8x32xbf16>, vector<8x32xf32> -> vector<8x32xf32>
    %45 = arith.addf %21, %44 : vector<8x32xf32>
    %46 = vector.extract_strided_slice %17 {offsets = [0, 8], sizes = [8, 8], strides = [1, 1]} : vector<8x32xbf16> to vector<8x8xbf16>
    %47 = vector.extract_strided_slice %18 {offsets = [0, 8], sizes = [8, 8], strides = [1, 1]} : vector<8x32xbf16> to vector<8x8xbf16>
    %cst_25 = arith.constant dense<0.000000e+00> : vector<8x8xf32>
    %48 = tpu.matmul %46, %47, %cst_25 {dimension_numbers = #tpu.dot_dimension_numbers<[1], [1], [0], [0], [0, 0, 1, 0], [], []>} : vector<8x8xbf16>, vector<8x8xbf16>, vector<8x8xf32> -> vector<8x8xf32>
    %49 = arith.addf %48, %5 : vector<8x8xf32>
    %cst_26 = arith.constant dense<0xFF800000> : vector<8xf32>
    %50 = vector.multi_reduction <maximumf>, %49, %cst_26 [1] : vector<8x8xf32> to vector<8xf32>
    %51 = vector.shape_cast %50 : vector<8xf32> to vector<8x1xf32>
    %52 = vector.broadcast %51 : vector<8x1xf32> to vector<8x8xf32>
    %53 = arith.subf %49, %52 : vector<8x8xf32>
    %54 = math.exp %53 : vector<8x8xf32>
    %cst_27 = arith.constant dense<0.000000e+00> : vector<8xf32>
    %55 = vector.multi_reduction <add>, %54, %cst_27 [1] : vector<8x8xf32> to vector<8xf32>
    %56 = vector.shape_cast %55 : vector<8xf32> to vector<8x1xf32>
    %57 = vector.broadcast %56 : vector<8x1xf32> to vector<8x8xf32>
    %58 = arith.divf %54, %57 : vector<8x8xf32>
    %59 = arith.truncf %58 : vector<8x8xf32> to vector<8x8xbf16>
    %c0_28 = arith.constant 0 : index
    %c1 = arith.constant 1 : index
    %c0_29 = arith.constant 0 : index
    %c0_30 = arith.constant 0 : index
    %60 = vector.load %arg25[%c0_28, %c1, %c0_29, %c0_30] : memref<1x4x8x8xbf16, #tpu.memory_space<vmem>>, vector<1x1x8x8xbf16>
    %61 = vector.shape_cast %60 : vector<1x1x8x8xbf16> to vector<8x8xbf16>
    %62 = vector.shape_cast %59 : vector<8x8xbf16> to vector<1x1x8x8xbf16>
    tpu.vector_store %arg25[%c0_28, %c1, %c0_29, %c0_30], %62 {strides = array<i32>} : memref<1x4x8x8xbf16, #tpu.memory_space<vmem>>, vector<1x1x8x8xbf16>,
    %63 = arith.truncf %58 : vector<8x8xf32> to vector<8x8xbf16>
    %64 = vector.extract_strided_slice %19 {offsets = [0, 8], sizes = [8, 8], strides = [1, 1]} : vector<8x32xbf16> to vector<8x8xbf16>
    %cst_31 = arith.constant dense<0.000000e+00> : vector<8x8xf32>
    %65 = tpu.matmul %63, %64, %cst_31 {dimension_numbers = #tpu.dot_dimension_numbers<[1], [0], [0], [1], [0, 0, 1, 1], [], []>} : vector<8x8xbf16>, vector<8x8xbf16>, vector<8x8xf32> -> vector<8x8xf32>
    %66 = arith.truncf %65 : vector<8x8xf32> to vector<8x8xbf16>
    %67 = vector.extract_strided_slice %20 {offsets = [8, 0], sizes = [8, 32], strides = [1, 1]} : vector<32x32xbf16> to vector<8x32xbf16>
    %cst_32 = arith.constant dense<0.000000e+00> : vector<8x32xf32>
    %68 = tpu.matmul %66, %67, %cst_32 {dimension_numbers = #tpu.dot_dimension_numbers<[1], [0], [0], [1], [0, 0, 1, 1], [], []>} : vector<8x8xbf16>, vector<8x32xbf16>, vector<8x32xf32> -> vector<8x32xf32>
    %69 = arith.addf %45, %68 : vector<8x32xf32>
    %70 = vector.extract_strided_slice %17 {offsets = [0, 16], sizes = [8, 8], strides = [1, 1]} : vector<8x32xbf16> to vector<8x8xbf16>
    %71 = vector.extract_strided_slice %18 {offsets = [0, 16], sizes = [8, 8], strides = [1, 1]} : vector<8x32xbf16> to vector<8x8xbf16>
    %cst_33 = arith.constant dense<0.000000e+00> : vector<8x8xf32>
    %72 = tpu.matmul %70, %71, %cst_33 {dimension_numbers = #tpu.dot_dimension_numbers<[1], [1], [0], [0], [0, 0, 1, 0], [], []>} : vector<8x8xbf16>, vector<8x8xbf16>, vector<8x8xf32> -> vector<8x8xf32>
    %73 = arith.addf %72, %5 : vector<8x8xf32>
    %cst_34 = arith.constant dense<0xFF800000> : vector<8xf32>
    %74 = vector.multi_reduction <maximumf>, %73, %cst_34 [1] : vector<8x8xf32> to vector<8xf32>
    %75 = vector.shape_cast %74 : vector<8xf32> to vector<8x1xf32>
    %76 = vector.broadcast %75 : vector<8x1xf32> to vector<8x8xf32>
    %77 = arith.subf %73, %76 : vector<8x8xf32>
    %78 = math.exp %77 : vector<8x8xf32>
    %cst_35 = arith.constant dense<0.000000e+00> : vector<8xf32>
    %79 = vector.multi_reduction <add>, %78, %cst_35 [1] : vector<8x8xf32> to vector<8xf32>
    %80 = vector.shape_cast %79 : vector<8xf32> to vector<8x1xf32>
    %81 = vector.broadcast %80 : vector<8x1xf32> to vector<8x8xf32>
    %82 = arith.divf %78, %81 : vector<8x8xf32>
    %83 = arith.truncf %82 : vector<8x8xf32> to vector<8x8xbf16>
    %c0_36 = arith.constant 0 : index
    %c2 = arith.constant 2 : index
    %c0_37 = arith.constant 0 : index
    %c0_38 = arith.constant 0 : index
    %84 = vector.load %arg25[%c0_36, %c2, %c0_37, %c0_38] : memref<1x4x8x8xbf16, #tpu.memory_space<vmem>>, vector<1x1x8x8xbf16>
    %85 = vector.shape_cast %84 : vector<1x1x8x8xbf16> to vector<8x8xbf16>
    %86 = vector.shape_cast %83 : vector<8x8xbf16> to vector<1x1x8x8xbf16>
    tpu.vector_store %arg25[%c0_36, %c2, %c0_37, %c0_38], %86 {strides = array<i32>} : memref<1x4x8x8xbf16, #tpu.memory_space<vmem>>, vector<1x1x8x8xbf16>,
    %87 = arith.truncf %82 : vector<8x8xf32> to vector<8x8xbf16>
    %88 = vector.extract_strided_slice %19 {offsets = [0, 16], sizes = [8, 8], strides = [1, 1]} : vector<8x32xbf16> to vector<8x8xbf16>
    %cst_39 = arith.constant dense<0.000000e+00> : vector<8x8xf32>
    %89 = tpu.matmul %87, %88, %cst_39 {dimension_numbers = #tpu.dot_dimension_numbers<[1], [0], [0], [1], [0, 0, 1, 1], [], []>} : vector<8x8xbf16>, vector<8x8xbf16>, vector<8x8xf32> -> vector<8x8xf32>
    %90 = arith.truncf %89 : vector<8x8xf32> to vector<8x8xbf16>
    %91 = vector.extract_strided_slice %20 {offsets = [16, 0], sizes = [8, 32], strides = [1, 1]} : vector<32x32xbf16> to vector<8x32xbf16>
    %cst_40 = arith.constant dense<0.000000e+00> : vector<8x32xf32>
    %92 = tpu.matmul %90, %91, %cst_40 {dimension_numbers = #tpu.dot_dimension_numbers<[1], [0], [0], [1], [0, 0, 1, 1], [], []>} : vector<8x8xbf16>, vector<8x32xbf16>, vector<8x32xf32> -> vector<8x32xf32>
    %93 = arith.addf %69, %92 : vector<8x32xf32>
    %94 = vector.extract_strided_slice %17 {offsets = [0, 24], sizes = [8, 8], strides = [1, 1]} : vector<8x32xbf16> to vector<8x8xbf16>
    %95 = vector.extract_strided_slice %18 {offsets = [0, 24], sizes = [8, 8], strides = [1, 1]} : vector<8x32xbf16> to vector<8x8xbf16>
    %cst_41 = arith.constant dense<0.000000e+00> : vector<8x8xf32>
    %96 = tpu.matmul %94, %95, %cst_41 {dimension_numbers = #tpu.dot_dimension_numbers<[1], [1], [0], [0], [0, 0, 1, 0], [], []>} : vector<8x8xbf16>, vector<8x8xbf16>, vector<8x8xf32> -> vector<8x8xf32>
    %97 = arith.addf %96, %5 : vector<8x8xf32>
    %cst_42 = arith.constant dense<0xFF800000> : vector<8xf32>
    %98 = vector.multi_reduction <maximumf>, %97, %cst_42 [1] : vector<8x8xf32> to vector<8xf32>
    %99 = vector.shape_cast %98 : vector<8xf32> to vector<8x1xf32>
    %100 = vector.broadcast %99 : vector<8x1xf32> to vector<8x8xf32>
    %101 = arith.subf %97, %100 : vector<8x8xf32>
    %102 = math.exp %101 : vector<8x8xf32>
    %cst_43 = arith.constant dense<0.000000e+00> : vector<8xf32>
    %103 = vector.multi_reduction <add>, %102, %cst_43 [1] : vector<8x8xf32> to vector<8xf32>
    %104 = vector.shape_cast %103 : vector<8xf32> to vector<8x1xf32>
    %105 = vector.broadcast %104 : vector<8x1xf32> to vector<8x8xf32>
    %106 = arith.divf %102, %105 : vector<8x8xf32>
    %107 = arith.truncf %106 : vector<8x8xf32> to vector<8x8xbf16>
    %c0_44 = arith.constant 0 : index
    %c3 = arith.constant 3 : index
    %c0_45 = arith.constant 0 : index
    %c0_46 = arith.constant 0 : index
    %108 = vector.load %arg25[%c0_44, %c3, %c0_45, %c0_46] : memref<1x4x8x8xbf16, #tpu.memory_space<vmem>>, vector<1x1x8x8xbf16>
    %109 = vector.shape_cast %108 : vector<1x1x8x8xbf16> to vector<8x8xbf16>
    %110 = vector.shape_cast %107 : vector<8x8xbf16> to vector<1x1x8x8xbf16>
    tpu.vector_store %arg25[%c0_44, %c3, %c0_45, %c0_46], %110 {strides = array<i32>} : memref<1x4x8x8xbf16, #tpu.memory_space<vmem>>, vector<1x1x8x8xbf16>,
    %111 = arith.truncf %106 : vector<8x8xf32> to vector<8x8xbf16>
    %112 = vector.extract_strided_slice %19 {offsets = [0, 24], sizes = [8, 8], strides = [1, 1]} : vector<8x32xbf16> to vector<8x8xbf16>
    %cst_47 = arith.constant dense<0.000000e+00> : vector<8x8xf32>
    %113 = tpu.matmul %111, %112, %cst_47 {dimension_numbers = #tpu.dot_dimension_numbers<[1], [0], [0], [1], [0, 0, 1, 1], [], []>} : vector<8x8xbf16>, vector<8x8xbf16>, vector<8x8xf32> -> vector<8x8xf32>
    %114 = arith.truncf %113 : vector<8x8xf32> to vector<8x8xbf16>
    %115 = vector.extract_strided_slice %20 {offsets = [24, 0], sizes = [8, 32], strides = [1, 1]} : vector<32x32xbf16> to vector<8x32xbf16>
    %cst_48 = arith.constant dense<0.000000e+00> : vector<8x32xf32>
    %116 = tpu.matmul %114, %115, %cst_48 {dimension_numbers = #tpu.dot_dimension_numbers<[1], [0], [0], [1], [0, 0, 1, 1], [], []>} : vector<8x8xbf16>, vector<8x32xbf16>, vector<8x32xf32> -> vector<8x32xf32>
    %117 = arith.addf %93, %116 : vector<8x32xf32>
    %118 = arith.addf %1, %117 : vector<8x32xf32>
    %c0_49 = arith.constant 0 : index
    %c0_50 = arith.constant 0 : index
    %119 = vector.load %arg7[%c0_49, %c0_50] : memref<1x32xf32, #tpu.memory_space<vmem>>, vector<1x32xf32>
    %120 = vector.broadcast %119 : vector<1x32xf32> to vector<8x32xf32>
    %121 = arith.addf %118, %120 : vector<8x32xf32>
    %cst_51 = arith.constant dense<0.000000e+00> : vector<8xf32>
    %122 = vector.multi_reduction <add>, %121, %cst_51 [1] : vector<8x32xf32> to vector<8xf32>
    %123 = vector.shape_cast %122 : vector<8xf32> to vector<8x1xf32>
    %cst_52 = arith.constant 3.200000e+01 : f32
    %124 = vector.broadcast %cst_52 : f32 to vector<8x1xf32>
    %125 = arith.divf %123, %124 : vector<8x1xf32>
    %126 = vector.broadcast %125 : vector<8x1xf32> to vector<8x32xf32>
    %127 = arith.subf %121, %126 : vector<8x32xf32>
    %128 = arith.mulf %127, %127 : vector<8x32xf32>
    %cst_53 = arith.constant dense<0.000000e+00> : vector<8xf32>
    %129 = vector.multi_reduction <add>, %128, %cst_53 [1] : vector<8x32xf32> to vector<8xf32>
    %130 = vector.shape_cast %129 : vector<8xf32> to vector<8x1xf32>
    %cst_54 = arith.constant 3.200000e+01 : f32
    %131 = vector.broadcast %cst_54 : f32 to vector<8x1xf32>
    %132 = arith.divf %130, %131 : vector<8x1xf32>
    %133 = vector.broadcast %125 : vector<8x1xf32> to vector<8x32xf32>
    %134 = arith.subf %121, %133 : vector<8x32xf32>
    %cst_55 = arith.constant 9.99999974E-6 : f32
    %135 = vector.broadcast %cst_55 : f32 to vector<8x1xf32>
    %136 = arith.addf %132, %135 : vector<8x1xf32>
    %137 = math.rsqrt %136 : vector<8x1xf32>
    %138 = vector.broadcast %137 : vector<8x1xf32> to vector<8x32xf32>
    %139 = arith.mulf %134, %138 : vector<8x32xf32>
    %c0_56 = arith.constant 0 : index
    %c0_57 = arith.constant 0 : index
    %140 = vector.load %arg18[%c0_56, %c0_57] : memref<1x32xf32, #tpu.memory_space<vmem>>, vector<1x32xf32>
    %141 = vector.broadcast %140 : vector<1x32xf32> to vector<8x32xf32>
    %142 = arith.mulf %139, %141 : vector<8x32xf32>
    %c0_58 = arith.constant 0 : index
    %c0_59 = arith.constant 0 : index
    %143 = vector.load %arg19[%c0_58, %c0_59] : memref<1x32xf32, #tpu.memory_space<vmem>>, vector<1x32xf32>
    %144 = vector.broadcast %143 : vector<1x32xf32> to vector<8x32xf32>
    %145 = arith.addf %142, %144 : vector<8x32xf32>
    %146 = arith.truncf %145 : vector<8x32xf32> to vector<8x32xbf16>
    %c0_60 = arith.constant 0 : index
    %c0_61 = arith.constant 0 : index
    %147 = vector.load %arg8[%c0_60, %c0_61] : memref<32x32xbf16, #tpu.memory_space<vmem>>, vector<32x32xbf16>
    %cst_62 = arith.constant dense<0.000000e+00> : vector<8x32xf32>
    %148 = tpu.matmul %146, %147, %cst_62 {dimension_numbers = #tpu.dot_dimension_numbers<[1], [0], [0], [1], [0, 0, 1, 1], [], []>} : vector<8x32xbf16>, vector<32x32xbf16>, vector<8x32xf32> -> vector<8x32xf32>
    %c0_63 = arith.constant 0 : index
    %c0_64 = arith.constant 0 : index
    %149 = vector.load %arg9[%c0_63, %c0_64] : memref<1x32xf32, #tpu.memory_space<vmem>>, vector<1x32xf32>
    %150 = vector.broadcast %149 : vector<1x32xf32> to vector<8x32xf32>
    %151 = arith.addf %148, %150 : vector<8x32xf32>
    %152 = arith.truncf %3 : vector<8x32xf32> to vector<8x32xbf16>
    %c0_65 = arith.constant 0 : index
    %c0_66 = arith.constant 0 : index
    %153 = vector.load %arg10[%c0_65, %c0_66] : memref<32x64xbf16, #tpu.memory_space<vmem>>, vector<32x64xbf16>
    %cst_67 = arith.constant dense<0.000000e+00> : vector<8x64xf32>
    %154 = tpu.matmul %152, %153, %cst_67 {dimension_numbers = #tpu.dot_dimension_numbers<[1], [0], [0], [1], [0, 0, 1, 1], [], []>} : vector<8x32xbf16>, vector<32x64xbf16>, vector<8x64xf32> -> vector<8x64xf32>
    %c0_68 = arith.constant 0 : index
    %c0_69 = arith.constant 0 : index
    %155 = vector.load %arg11[%c0_68, %c0_69] : memref<1x64xf32, #tpu.memory_space<vmem>>, vector<1x64xf32>
    %156 = vector.broadcast %155 : vector<1x64xf32> to vector<8x64xf32>
    %157 = arith.addf %154, %156 : vector<8x64xf32>
    %158 = vector.extract_strided_slice %157 {offsets = [0, 0], sizes = [8, 32], strides = [1, 1]} : vector<8x64xf32> to vector<8x32xf32>
    %159 = vector.extract_strided_slice %157 {offsets = [0, 32], sizes = [8, 32], strides = [1, 1]} : vector<8x64xf32> to vector<8x32xf32>
    %cst_70 = arith.constant 0.353553385 : f32
    %160 = vector.broadcast %cst_70 : f32 to vector<8x32xf32>
    %161 = arith.mulf %151, %160 : vector<8x32xf32>
    %162 = arith.truncf %161 : vector<8x32xf32> to vector<8x32xbf16>
    %163 = arith.truncf %158 : vector<8x32xf32> to vector<8x32xbf16>
    %164 = arith.truncf %159 : vector<8x32xf32> to vector<8x32xbf16>
    %c0_71 = arith.constant 0 : index
    %c0_72 = arith.constant 0 : index
    %165 = vector.load %arg12[%c0_71, %c0_72] : memref<32x32xbf16, #tpu.memory_space<vmem>>, vector<32x32xbf16>
    %cst_73 = arith.constant 0.000000e+00 : f32
    %166 = vector.broadcast %cst_73 : f32 to vector<8x32xf32>
    %167 = vector.extract_strided_slice %162 {offsets = [0, 0], sizes = [8, 8], strides = [1, 1]} : vector<8x32xbf16> to vector<8x8xbf16>
    %168 = vector.extract_strided_slice %163 {offsets = [0, 0], sizes = [8, 8], strides = [1, 1]} : vector<8x32xbf16> to vector<8x8xbf16>
    %cst_74 = arith.constant dense<0.000000e+00> : vector<8x8xf32>
    %169 = tpu.matmul %167, %168, %cst_74 {dimension_numbers = #tpu.dot_dimension_numbers<[1], [1], [0], [0], [0, 0, 1, 0], [], []>} : vector<8x8xbf16>, vector<8x8xbf16>, vector<8x8xf32> -> vector<8x8xf32>
    %cst_75 = arith.constant dense<0xFF800000> : vector<8xf32>
    %170 = vector.multi_reduction <maximumf>, %169, %cst_75 [1] : vector<8x8xf32> to vector<8xf32>
    %171 = vector.shape_cast %170 : vector<8xf32> to vector<8x1xf32>
    %172 = vector.broadcast %171 : vector<8x1xf32> to vector<8x8xf32>
    %173 = arith.subf %169, %172 : vector<8x8xf32>
    %174 = math.exp %173 : vector<8x8xf32>
    %cst_76 = arith.constant dense<0.000000e+00> : vector<8xf32>
    %175 = vector.multi_reduction <add>, %174, %cst_76 [1] : vector<8x8xf32> to vector<8xf32>
    %176 = vector.shape_cast %175 : vector<8xf32> to vector<8x1xf32>
    %177 = vector.broadcast %176 : vector<8x1xf32> to vector<8x8xf32>
    %178 = arith.divf %174, %177 : vector<8x8xf32>
    %179 = arith.truncf %178 : vector<8x8xf32> to vector<8x8xbf16>
    %c0_77 = arith.constant 0 : index
    %c0_78 = arith.constant 0 : index
    %c0_79 = arith.constant 0 : index
    %c0_80 = arith.constant 0 : index
    %180 = vector.load %arg26[%c0_77, %c0_78, %c0_79, %c0_80] : memref<1x4x8x8xbf16, #tpu.memory_space<vmem>>, vector<1x1x8x8xbf16>
    %181 = vector.shape_cast %180 : vector<1x1x8x8xbf16> to vector<8x8xbf16>
    %182 = vector.shape_cast %179 : vector<8x8xbf16> to vector<1x1x8x8xbf16>
    tpu.vector_store %arg26[%c0_77, %c0_78, %c0_79, %c0_80], %182 {strides = array<i32>} : memref<1x4x8x8xbf16, #tpu.memory_space<vmem>>, vector<1x1x8x8xbf16>,
    %183 = arith.truncf %178 : vector<8x8xf32> to vector<8x8xbf16>
    %184 = vector.extract_strided_slice %164 {offsets = [0, 0], sizes = [8, 8], strides = [1, 1]} : vector<8x32xbf16> to vector<8x8xbf16>
    %cst_81 = arith.constant dense<0.000000e+00> : vector<8x8xf32>
    %185 = tpu.matmul %183, %184, %cst_81 {dimension_numbers = #tpu.dot_dimension_numbers<[1], [0], [0], [1], [0, 0, 1, 1], [], []>} : vector<8x8xbf16>, vector<8x8xbf16>, vector<8x8xf32> -> vector<8x8xf32>
    %186 = arith.truncf %185 : vector<8x8xf32> to vector<8x8xbf16>
    %187 = vector.extract_strided_slice %165 {offsets = [0, 0], sizes = [8, 32], strides = [1, 1]} : vector<32x32xbf16> to vector<8x32xbf16>
    %cst_82 = arith.constant dense<0.000000e+00> : vector<8x32xf32>
    %188 = tpu.matmul %186, %187, %cst_82 {dimension_numbers = #tpu.dot_dimension_numbers<[1], [0], [0], [1], [0, 0, 1, 1], [], []>} : vector<8x8xbf16>, vector<8x32xbf16>, vector<8x32xf32> -> vector<8x32xf32>
    %189 = arith.addf %166, %188 : vector<8x32xf32>
    %190 = vector.extract_strided_slice %162 {offsets = [0, 8], sizes = [8, 8], strides = [1, 1]} : vector<8x32xbf16> to vector<8x8xbf16>
    %191 = vector.extract_strided_slice %163 {offsets = [0, 8], sizes = [8, 8], strides = [1, 1]} : vector<8x32xbf16> to vector<8x8xbf16>
    %cst_83 = arith.constant dense<0.000000e+00> : vector<8x8xf32>
    %192 = tpu.matmul %190, %191, %cst_83 {dimension_numbers = #tpu.dot_dimension_numbers<[1], [1], [0], [0], [0, 0, 1, 0], [], []>} : vector<8x8xbf16>, vector<8x8xbf16>, vector<8x8xf32> -> vector<8x8xf32>
    %cst_84 = arith.constant dense<0xFF800000> : vector<8xf32>
    %193 = vector.multi_reduction <maximumf>, %192, %cst_84 [1] : vector<8x8xf32> to vector<8xf32>
    %194 = vector.shape_cast %193 : vector<8xf32> to vector<8x1xf32>
    %195 = vector.broadcast %194 : vector<8x1xf32> to vector<8x8xf32>
    %196 = arith.subf %192, %195 : vector<8x8xf32>
    %197 = math.exp %196 : vector<8x8xf32>
    %cst_85 = arith.constant dense<0.000000e+00> : vector<8xf32>
    %198 = vector.multi_reduction <add>, %197, %cst_85 [1] : vector<8x8xf32> to vector<8xf32>
    %199 = vector.shape_cast %198 : vector<8xf32> to vector<8x1xf32>
    %200 = vector.broadcast %199 : vector<8x1xf32> to vector<8x8xf32>
    %201 = arith.divf %197, %200 : vector<8x8xf32>
    %202 = arith.truncf %201 : vector<8x8xf32> to vector<8x8xbf16>
    %c0_86 = arith.constant 0 : index
    %c1_87 = arith.constant 1 : index
    %c0_88 = arith.constant 0 : index
    %c0_89 = arith.constant 0 : index
    %203 = vector.load %arg26[%c0_86, %c1_87, %c0_88, %c0_89] : memref<1x4x8x8xbf16, #tpu.memory_space<vmem>>, vector<1x1x8x8xbf16>
    %204 = vector.shape_cast %203 : vector<1x1x8x8xbf16> to vector<8x8xbf16>
    %205 = vector.shape_cast %202 : vector<8x8xbf16> to vector<1x1x8x8xbf16>
    tpu.vector_store %arg26[%c0_86, %c1_87, %c0_88, %c0_89], %205 {strides = array<i32>} : memref<1x4x8x8xbf16, #tpu.memory_space<vmem>>, vector<1x1x8x8xbf16>,
    %206 = arith.truncf %201 : vector<8x8xf32> to vector<8x8xbf16>
    %207 = vector.extract_strided_slice %164 {offsets = [0, 8], sizes = [8, 8], strides = [1, 1]} : vector<8x32xbf16> to vector<8x8xbf16>
    %cst_90 = arith.constant dense<0.000000e+00> : vector<8x8xf32>
    %208 = tpu.matmul %206, %207, %cst_90 {dimension_numbers = #tpu.dot_dimension_numbers<[1], [0], [0], [1], [0, 0, 1, 1], [], []>} : vector<8x8xbf16>, vector<8x8xbf16>, vector<8x8xf32> -> vector<8x8xf32>
    %209 = arith.truncf %208 : vector<8x8xf32> to vector<8x8xbf16>
    %210 = vector.extract_strided_slice %165 {offsets = [8, 0], sizes = [8, 32], strides = [1, 1]} : vector<32x32xbf16> to vector<8x32xbf16>
    %cst_91 = arith.constant dense<0.000000e+00> : vector<8x32xf32>
    %211 = tpu.matmul %209, %210, %cst_91 {dimension_numbers = #tpu.dot_dimension_numbers<[1], [0], [0], [1], [0, 0, 1, 1], [], []>} : vector<8x8xbf16>, vector<8x32xbf16>, vector<8x32xf32> -> vector<8x32xf32>
    %212 = arith.addf %189, %211 : vector<8x32xf32>
    %213 = vector.extract_strided_slice %162 {offsets = [0, 16], sizes = [8, 8], strides = [1, 1]} : vector<8x32xbf16> to vector<8x8xbf16>
    %214 = vector.extract_strided_slice %163 {offsets = [0, 16], sizes = [8, 8], strides = [1, 1]} : vector<8x32xbf16> to vector<8x8xbf16>
    %cst_92 = arith.constant dense<0.000000e+00> : vector<8x8xf32>
    %215 = tpu.matmul %213, %214, %cst_92 {dimension_numbers = #tpu.dot_dimension_numbers<[1], [1], [0], [0], [0, 0, 1, 0], [], []>} : vector<8x8xbf16>, vector<8x8xbf16>, vector<8x8xf32> -> vector<8x8xf32>
    %cst_93 = arith.constant dense<0xFF800000> : vector<8xf32>
    %216 = vector.multi_reduction <maximumf>, %215, %cst_93 [1] : vector<8x8xf32> to vector<8xf32>
    %217 = vector.shape_cast %216 : vector<8xf32> to vector<8x1xf32>
    %218 = vector.broadcast %217 : vector<8x1xf32> to vector<8x8xf32>
    %219 = arith.subf %215, %218 : vector<8x8xf32>
    %220 = math.exp %219 : vector<8x8xf32>
    %cst_94 = arith.constant dense<0.000000e+00> : vector<8xf32>
    %221 = vector.multi_reduction <add>, %220, %cst_94 [1] : vector<8x8xf32> to vector<8xf32>
    %222 = vector.shape_cast %221 : vector<8xf32> to vector<8x1xf32>
    %223 = vector.broadcast %222 : vector<8x1xf32> to vector<8x8xf32>
    %224 = arith.divf %220, %223 : vector<8x8xf32>
    %225 = arith.truncf %224 : vector<8x8xf32> to vector<8x8xbf16>
    %c0_95 = arith.constant 0 : index
    %c2_96 = arith.constant 2 : index
    %c0_97 = arith.constant 0 : index
    %c0_98 = arith.constant 0 : index
    %226 = vector.load %arg26[%c0_95, %c2_96, %c0_97, %c0_98] : memref<1x4x8x8xbf16, #tpu.memory_space<vmem>>, vector<1x1x8x8xbf16>
    %227 = vector.shape_cast %226 : vector<1x1x8x8xbf16> to vector<8x8xbf16>
    %228 = vector.shape_cast %225 : vector<8x8xbf16> to vector<1x1x8x8xbf16>
    tpu.vector_store %arg26[%c0_95, %c2_96, %c0_97, %c0_98], %228 {strides = array<i32>} : memref<1x4x8x8xbf16, #tpu.memory_space<vmem>>, vector<1x1x8x8xbf16>,
    %229 = arith.truncf %224 : vector<8x8xf32> to vector<8x8xbf16>
    %230 = vector.extract_strided_slice %164 {offsets = [0, 16], sizes = [8, 8], strides = [1, 1]} : vector<8x32xbf16> to vector<8x8xbf16>
    %cst_99 = arith.constant dense<0.000000e+00> : vector<8x8xf32>
    %231 = tpu.matmul %229, %230, %cst_99 {dimension_numbers = #tpu.dot_dimension_numbers<[1], [0], [0], [1], [0, 0, 1, 1], [], []>} : vector<8x8xbf16>, vector<8x8xbf16>, vector<8x8xf32> -> vector<8x8xf32>
    %232 = arith.truncf %231 : vector<8x8xf32> to vector<8x8xbf16>
    %233 = vector.extract_strided_slice %165 {offsets = [16, 0], sizes = [8, 32], strides = [1, 1]} : vector<32x32xbf16> to vector<8x32xbf16>
    %cst_100 = arith.constant dense<0.000000e+00> : vector<8x32xf32>
    %234 = tpu.matmul %232, %233, %cst_100 {dimension_numbers = #tpu.dot_dimension_numbers<[1], [0], [0], [1], [0, 0, 1, 1], [], []>} : vector<8x8xbf16>, vector<8x32xbf16>, vector<8x32xf32> -> vector<8x32xf32>
    %235 = arith.addf %212, %234 : vector<8x32xf32>
    %236 = vector.extract_strided_slice %162 {offsets = [0, 24], sizes = [8, 8], strides = [1, 1]} : vector<8x32xbf16> to vector<8x8xbf16>
    %237 = vector.extract_strided_slice %163 {offsets = [0, 24], sizes = [8, 8], strides = [1, 1]} : vector<8x32xbf16> to vector<8x8xbf16>
    %cst_101 = arith.constant dense<0.000000e+00> : vector<8x8xf32>
    %238 = tpu.matmul %236, %237, %cst_101 {dimension_numbers = #tpu.dot_dimension_numbers<[1], [1], [0], [0], [0, 0, 1, 0], [], []>} : vector<8x8xbf16>, vector<8x8xbf16>, vector<8x8xf32> -> vector<8x8xf32>
    %cst_102 = arith.constant dense<0xFF800000> : vector<8xf32>
    %239 = vector.multi_reduction <maximumf>, %238, %cst_102 [1] : vector<8x8xf32> to vector<8xf32>
    %240 = vector.shape_cast %239 : vector<8xf32> to vector<8x1xf32>
    %241 = vector.broadcast %240 : vector<8x1xf32> to vector<8x8xf32>
    %242 = arith.subf %238, %241 : vector<8x8xf32>
    %243 = math.exp %242 : vector<8x8xf32>
    %cst_103 = arith.constant dense<0.000000e+00> : vector<8xf32>
    %244 = vector.multi_reduction <add>, %243, %cst_103 [1] : vector<8x8xf32> to vector<8xf32>
    %245 = vector.shape_cast %244 : vector<8xf32> to vector<8x1xf32>
    %246 = vector.broadcast %245 : vector<8x1xf32> to vector<8x8xf32>
    %247 = arith.divf %243, %246 : vector<8x8xf32>
    %248 = arith.truncf %247 : vector<8x8xf32> to vector<8x8xbf16>
    %c0_104 = arith.constant 0 : index
    %c3_105 = arith.constant 3 : index
    %c0_106 = arith.constant 0 : index
    %c0_107 = arith.constant 0 : index
    %249 = vector.load %arg26[%c0_104, %c3_105, %c0_106, %c0_107] : memref<1x4x8x8xbf16, #tpu.memory_space<vmem>>, vector<1x1x8x8xbf16>
    %250 = vector.shape_cast %249 : vector<1x1x8x8xbf16> to vector<8x8xbf16>
    %251 = vector.shape_cast %248 : vector<8x8xbf16> to vector<1x1x8x8xbf16>
    tpu.vector_store %arg26[%c0_104, %c3_105, %c0_106, %c0_107], %251 {strides = array<i32>} : memref<1x4x8x8xbf16, #tpu.memory_space<vmem>>, vector<1x1x8x8xbf16>,
    %252 = arith.truncf %247 : vector<8x8xf32> to vector<8x8xbf16>
    %253 = vector.extract_strided_slice %164 {offsets = [0, 24], sizes = [8, 8], strides = [1, 1]} : vector<8x32xbf16> to vector<8x8xbf16>
    %cst_108 = arith.constant dense<0.000000e+00> : vector<8x8xf32>
    %254 = tpu.matmul %252, %253, %cst_108 {dimension_numbers = #tpu.dot_dimension_numbers<[1], [0], [0], [1], [0, 0, 1, 1], [], []>} : vector<8x8xbf16>, vector<8x8xbf16>, vector<8x8xf32> -> vector<8x8xf32>
    %255 = arith.truncf %254 : vector<8x8xf32> to vector<8x8xbf16>
    %256 = vector.extract_strided_slice %165 {offsets = [24, 0], sizes = [8, 32], strides = [1, 1]} : vector<32x32xbf16> to vector<8x32xbf16>
    %cst_109 = arith.constant dense<0.000000e+00> : vector<8x32xf32>
    %257 = tpu.matmul %255, %256, %cst_109 {dimension_numbers = #tpu.dot_dimension_numbers<[1], [0], [0], [1], [0, 0, 1, 1], [], []>} : vector<8x8xbf16>, vector<8x32xbf16>, vector<8x32xf32> -> vector<8x32xf32>
    %258 = arith.addf %235, %257 : vector<8x32xf32>
    %259 = arith.addf %145, %258 : vector<8x32xf32>
    %c0_110 = arith.constant 0 : index
    %c0_111 = arith.constant 0 : index
    %260 = vector.load %arg13[%c0_110, %c0_111] : memref<1x32xf32, #tpu.memory_space<vmem>>, vector<1x32xf32>
    %261 = vector.broadcast %260 : vector<1x32xf32> to vector<8x32xf32>
    %262 = arith.addf %259, %261 : vector<8x32xf32>
    %cst_112 = arith.constant dense<0.000000e+00> : vector<8xf32>
    %263 = vector.multi_reduction <add>, %262, %cst_112 [1] : vector<8x32xf32> to vector<8xf32>
    %264 = vector.shape_cast %263 : vector<8xf32> to vector<8x1xf32>
    %cst_113 = arith.constant 3.200000e+01 : f32
    %265 = vector.broadcast %cst_113 : f32 to vector<8x1xf32>
    %266 = arith.divf %264, %265 : vector<8x1xf32>
    %267 = vector.broadcast %266 : vector<8x1xf32> to vector<8x32xf32>
    %268 = arith.subf %262, %267 : vector<8x32xf32>
    %269 = arith.mulf %268, %268 : vector<8x32xf32>
    %cst_114 = arith.constant dense<0.000000e+00> : vector<8xf32>
    %270 = vector.multi_reduction <add>, %269, %cst_114 [1] : vector<8x32xf32> to vector<8xf32>
    %271 = vector.shape_cast %270 : vector<8xf32> to vector<8x1xf32>
    %cst_115 = arith.constant 3.200000e+01 : f32
    %272 = vector.broadcast %cst_115 : f32 to vector<8x1xf32>
    %273 = arith.divf %271, %272 : vector<8x1xf32>
    %274 = vector.broadcast %266 : vector<8x1xf32> to vector<8x32xf32>
    %275 = arith.subf %262, %274 : vector<8x32xf32>
    %cst_116 = arith.constant 9.99999974E-6 : f32
    %276 = vector.broadcast %cst_116 : f32 to vector<8x1xf32>
    %277 = arith.addf %273, %276 : vector<8x1xf32>
    %278 = math.rsqrt %277 : vector<8x1xf32>
    %279 = vector.broadcast %278 : vector<8x1xf32> to vector<8x32xf32>
    %280 = arith.mulf %275, %279 : vector<8x32xf32>
    %c0_117 = arith.constant 0 : index
    %c0_118 = arith.constant 0 : index
    %281 = vector.load %arg20[%c0_117, %c0_118] : memref<1x32xf32, #tpu.memory_space<vmem>>, vector<1x32xf32>
    %282 = vector.broadcast %281 : vector<1x32xf32> to vector<8x32xf32>
    %283 = arith.mulf %280, %282 : vector<8x32xf32>
    %c0_119 = arith.constant 0 : index
    %c0_120 = arith.constant 0 : index
    %284 = vector.load %arg21[%c0_119, %c0_120] : memref<1x32xf32, #tpu.memory_space<vmem>>, vector<1x32xf32>
    %285 = vector.broadcast %284 : vector<1x32xf32> to vector<8x32xf32>
    %286 = arith.addf %283, %285 : vector<8x32xf32>
    %287 = arith.truncf %286 : vector<8x32xf32> to vector<8x32xbf16>
    %c0_121 = arith.constant 0 : index
    %c0_122 = arith.constant 0 : index
    %288 = vector.load %arg14[%c0_121, %c0_122] : memref<32x64xbf16, #tpu.memory_space<vmem>>, vector<32x64xbf16>
    %cst_123 = arith.constant dense<0.000000e+00> : vector<8x64xf32>
    %289 = tpu.matmul %287, %288, %cst_123 {dimension_numbers = #tpu.dot_dimension_numbers<[1], [0], [0], [1], [0, 0, 1, 1], [], []>} : vector<8x32xbf16>, vector<32x64xbf16>, vector<8x64xf32> -> vector<8x64xf32>
    %c0_124 = arith.constant 0 : index
    %c0_125 = arith.constant 0 : index
    %290 = vector.load %arg15[%c0_124, %c0_125] : memref<1x64xf32, #tpu.memory_space<vmem>>, vector<1x64xf32>
    %291 = vector.broadcast %290 : vector<1x64xf32> to vector<8x64xf32>
    %292 = arith.addf %289, %291 : vector<8x64xf32>
    %cst_126 = arith.constant 0.000000e+00 : f32
    %293 = vector.broadcast %cst_126 : f32 to vector<8x64xf32>
    %294 = arith.maximumf %292, %293 : vector<8x64xf32>
    %295 = arith.truncf %294 : vector<8x64xf32> to vector<8x64xbf16>
    %c0_127 = arith.constant 0 : index
    %c0_128 = arith.constant 0 : index
    %296 = vector.load %arg16[%c0_127, %c0_128] : memref<64x32xbf16, #tpu.memory_space<vmem>>, vector<64x32xbf16>
    %cst_129 = arith.constant dense<0.000000e+00> : vector<8x32xf32>
    %297 = tpu.matmul %295, %296, %cst_129 {dimension_numbers = #tpu.dot_dimension_numbers<[1], [0], [0], [1], [0, 0, 1, 1], [], []>} : vector<8x64xbf16>, vector<64x32xbf16>, vector<8x32xf32> -> vector<8x32xf32>
    %c0_130 = arith.constant 0 : index
    %c0_131 = arith.constant 0 : index
    %298 = vector.load %arg17[%c0_130, %c0_131] : memref<1x32xf32, #tpu.memory_space<vmem>>, vector<1x32xf32>
    %299 = vector.broadcast %298 : vector<1x32xf32> to vector<8x32xf32>
    %300 = arith.addf %297, %299 : vector<8x32xf32>
    %301 = arith.addf %286, %300 : vector<8x32xf32>
    %cst_132 = arith.constant dense<0.000000e+00> : vector<8xf32>
    %302 = vector.multi_reduction <add>, %301, %cst_132 [1] : vector<8x32xf32> to vector<8xf32>
    %303 = vector.shape_cast %302 : vector<8xf32> to vector<8x1xf32>
    %cst_133 = arith.constant 3.200000e+01 : f32
    %304 = vector.broadcast %cst_133 : f32 to vector<8x1xf32>
    %305 = arith.divf %303, %304 : vector<8x1xf32>
    %306 = vector.broadcast %305 : vector<8x1xf32> to vector<8x32xf32>
    %307 = arith.subf %301, %306 : vector<8x32xf32>
    %308 = arith.mulf %307, %307 : vector<8x32xf32>
    %cst_134 = arith.constant dense<0.000000e+00> : vector<8xf32>
    %309 = vector.multi_reduction <add>, %308, %cst_134 [1] : vector<8x32xf32> to vector<8xf32>
    %310 = vector.shape_cast %309 : vector<8xf32> to vector<8x1xf32>
    %cst_135 = arith.constant 3.200000e+01 : f32
    %311 = vector.broadcast %cst_135 : f32 to vector<8x1xf32>
    %312 = arith.divf %310, %311 : vector<8x1xf32>
    %313 = vector.broadcast %305 : vector<8x1xf32> to vector<8x32xf32>
    %314 = arith.subf %301, %313 : vector<8x32xf32>
    %cst_136 = arith.constant 9.99999974E-6 : f32
    %315 = vector.broadcast %cst_136 : f32 to vector<8x1xf32>
    %316 = arith.addf %312, %315 : vector<8x1xf32>
    %317 = math.rsqrt %316 : vector<8x1xf32>
    %318 = vector.broadcast %317 : vector<8x1xf32> to vector<8x32xf32>
    %319 = arith.mulf %314, %318 : vector<8x32xf32>
    %c0_137 = arith.constant 0 : index
    %c0_138 = arith.constant 0 : index
    %320 = vector.load %arg22[%c0_137, %c0_138] : memref<1x32xf32, #tpu.memory_space<vmem>>, vector<1x32xf32>
    %321 = vector.broadcast %320 : vector<1x32xf32> to vector<8x32xf32>
    %322 = arith.mulf %319, %321 : vector<8x32xf32>
    %c0_139 = arith.constant 0 : index
    %c0_140 = arith.constant 0 : index
    %323 = vector.load %arg23[%c0_139, %c0_140] : memref<1x32xf32, #tpu.memory_space<vmem>>, vector<1x32xf32>
    %324 = vector.broadcast %323 : vector<1x32xf32> to vector<8x32xf32>
    %325 = arith.addf %322, %324 : vector<8x32xf32>
    %c0_141 = arith.constant 0 : index
    %c0_142 = arith.constant 0 : index
    %c0_143 = arith.constant 0 : index
    %326 = vector.load %arg24[%c0_141, %c0_142, %c0_143] : memref<1x8x32xf32, #tpu.memory_space<vmem>>, vector<1x8x32xf32>
    %327 = vector.shape_cast %326 : vector<1x8x32xf32> to vector<8x32xf32>
    %328 = vector.shape_cast %325 : vector<8x32xf32> to vector<1x8x32xf32>
    tpu.vector_store %arg24[%c0_141, %c0_142, %c0_143], %328 {strides = array<i32>} : memref<1x8x32xf32, #tpu.memory_space<vmem>>, vector<1x8x32xf32>,
    return
  }
  func.func @transform_0(%arg0: i32) -> (i32, i32, i32) {
    %c0_i32 = arith.constant 0 : i32
    %c0_i32_0 = arith.constant 0 : i32
    %c0_i32_1 = arith.constant 0 : i32
    return %arg0, %c0_i32, %c0_i32_0 : i32, i32, i32
  }
  func.func @transform_1(%arg0: i32) -> (i32, i32, i32) {
    %c0_i32 = arith.constant 0 : i32
    %c0_i32_0 = arith.constant 0 : i32
    %c0_i32_1 = arith.constant 0 : i32
    return %arg0, %c0_i32, %c0_i32_0 : i32, i32, i32
  }
  func.func @transform_2(%arg0: i32) -> (i32, i32, i32) {
    %c0_i32 = arith.constant 0 : i32
    %c0_i32_0 = arith.constant 0 : i32
    %c0_i32_1 = arith.constant 0 : i32
    return %arg0, %c0_i32, %c0_i32_0 : i32, i32, i32
  }
  func.func @transform_3(%arg0: i32) -> (i32, i32) {
    %c0_i32 = arith.constant 0 : i32
    %c0_i32_0 = arith.constant 0 : i32
    %c0_i32_1 = arith.constant 0 : i32
    return %c0_i32, %c0_i32_0 : i32, i32
  }
  func.func @transform_4(%arg0: i32) -> (i32, i32) {
    %c0_i32 = arith.constant 0 : i32
    %c0_i32_0 = arith.constant 0 : i32
    %c0_i32_1 = arith.constant 0 : i32
    return %c0_i32, %c0_i32_0 : i32, i32
  }
  func.func @transform_5(%arg0: i32) -> (i32, i32) {
    %c0_i32 = arith.constant 0 : i32
    %c0_i32_0 = arith.constant 0 : i32
    %c0_i32_1 = arith.constant 0 : i32
    return %c0_i32, %c0_i32_0 : i32, i32
  }
  func.func @transform_6(%arg0: i32) -> (i32, i32) {
    %c0_i32 = arith.constant 0 : i32
    %c0_i32_0 = arith.constant 0 : i32
    %c0_i32_1 = arith.constant 0 : i32
    return %c0_i32, %c0_i32_0 : i32, i32
  }
  func.func @transform_7(%arg0: i32) -> (i32, i32) {
    %c0_i32 = arith.constant 0 : i32
    %c0_i32_0 = arith.constant 0 : i32
    %c0_i32_1 = arith.constant 0 : i32
    return %c0_i32, %c0_i32_0 : i32, i32
  }
  func.func @transform_8(%arg0: i32) -> (i32, i32) {
    %c0_i32 = arith.constant 0 : i32
    %c0_i32_0 = arith.constant 0 : i32
    %c0_i32_1 = arith.constant 0 : i32
    return %c0_i32, %c0_i32_0 : i32, i32
  }
  func.func @transform_9(%arg0: i32) -> (i32, i32) {
    %c0_i32 = arith.constant 0 : i32
    %c0_i32_0 = arith.constant 0 : i32
    %c0_i32_1 = arith.constant 0 : i32
    return %c0_i32, %c0_i32_0 : i32, i32
  }
  func.func @transform_10(%arg0: i32) -> (i32, i32) {
    %c0_i32 = arith.constant 0 : i32
    %c0_i32_0 = arith.constant 0 : i32
    %c0_i32_1 = arith.constant 0 : i32
    return %c0_i32, %c0_i32_0 : i32, i32
  }
  func.func @transform_11(%arg0: i32) -> (i32, i32) {
    %c0_i32 = arith.constant 0 : i32
    %c0_i32_0 = arith.constant 0 : i32
    %c0_i32_1 = arith.constant 0 : i32
    return %c0_i32, %c0_i32_0 : i32, i32
  }
  func.func @transform_12(%arg0: i32) -> (i32, i32) {
    %c0_i32 = arith.constant 0 : i32
    %c0_i32_0 = arith.constant 0 : i32
    %c0_i32_1 = arith.constant 0 : i32
    return %c0_i32, %c0_i32_0 : i32, i32
  }
  func.func @transform_13(%arg0: i32) -> (i32, i32) {
    %c0_i32 = arith.constant 0 : i32
    %c0_i32_0 = arith.constant 0 : i32
    %c0_i32_1 = arith.constant 0 : i32
    return %c0_i32, %c0_i32_0 : i32, i32
  }
  func.func @transform_14(%arg0: i32) -> (i32, i32) {
    %c0_i32 = arith.constant 0 : i32
    %c0_i32_0 = arith.constant 0 : i32
    %c0_i32_1 = arith.constant 0 : i32
    return %c0_i32, %c0_i32_0 : i32, i32
  }
  func.func @transform_15(%arg0: i32) -> (i32, i32) {
    %c0_i32 = arith.constant 0 : i32
    %c0_i32_0 = arith.constant 0 : i32
    %c0_i32_1 = arith.constant 0 : i32
    return %c0_i32, %c0_i32_0 : i32, i32
  }
  func.func @transform_16(%arg0: i32) -> (i32, i32) {
    %c0_i32 = arith.constant 0 : i32
    %c0_i32_0 = arith.constant 0 : i32
    %c0_i32_1 = arith.constant 0 : i32
    return %c0_i32, %c0_i32_0 : i32, i32
  }
  func.func @transform_17(%arg0: i32) -> (i32, i32) {
    %c0_i32 = arith.constant 0 : i32
    %c0_i32_0 = arith.constant 0 : i32
    %c0_i32_1 = arith.constant 0 : i32
    return %c0_i32, %c0_i32_0 : i32, i32
  }
  func.func @transform_18(%arg0: i32) -> (i32, i32) {
    %c0_i32 = arith.constant 0 : i32
    %c0_i32_0 = arith.constant 0 : i32
    %c0_i32_1 = arith.constant 0 : i32
    return %c0_i32, %c0_i32_0 : i32, i32
  }
  func.func @transform_19(%arg0: i32) -> (i32, i32) {
    %c0_i32 = arith.constant 0 : i32
    %c0_i32_0 = arith.constant 0 : i32
    %c0_i32_1 = arith.constant 0 : i32
    return %c0_i32, %c0_i32_0 : i32, i32
  }
  func.func @transform_20(%arg0: i32) -> (i32, i32) {
    %c0_i32 = arith.constant 0 : i32
    %c0_i32_0 = arith.constant 0 : i32
    %c0_i32_1 = arith.constant 0 : i32
    return %c0_i32, %c0_i32_0 : i32, i32
  }
  func.func @transform_21(%arg0: i32) -> (i32, i32) {
    %c0_i32 = arith.constant 0 : i32
    %c0_i32_0 = arith.constant 0 : i32
    %c0_i32_1 = arith.constant 0 : i32
    return %c0_i32, %c0_i32_0 : i32, i32
  }
  func.func @transform_22(%arg0: i32) -> (i32, i32) {
    %c0_i32 = arith.constant 0 : i32
    %c0_i32_0 = arith.constant 0 : i32
    %c0_i32_1 = arith.constant 0 : i32
    return %c0_i32, %c0_i32_0 : i32, i32
  }
  func.func @transform_23(%arg0: i32) -> (i32, i32, i32) {
    %c0_i32 = arith.constant 0 : i32
    %c0_i32_0 = arith.constant 0 : i32
    %c0_i32_1 = arith.constant 0 : i32
    return %arg0, %c0_i32, %c0_i32_0 : i32, i32, i32
  }
  func.func @transform_24(%arg0: i32) -> (i32, i32, i32, i32) {
    %c0_i32 = arith.constant 0 : i32
    %c0_i32_0 = arith.constant 0 : i32
    %c0_i32_1 = arith.constant 0 : i32
    %c0_i32_2 = arith.constant 0 : i32
    return %arg0, %c0_i32, %c0_i32_0, %c0_i32_1 : i32, i32, i32, i32
  }
  func.func @transform_25(%arg0: i32) -> (i32, i32, i32, i32) {
    %c0_i32 = arith.constant 0 : i32
    %c0_i32_0 = arith.constant 0 : i32
    %c0_i32_1 = arith.constant 0 : i32
    %c0_i32_2 = arith.constant 0 : i32
    return %arg0, %c0_i32, %c0_i32_0, %c0_i32_1 : i32, i32, i32, i32
  }
}

</mosaic_0001>

<llo_original>
// kernel: full_decoder.5
$region0: #{full_decoder.5}
  #allocation0 [shape = 'u32[]', space=smem, size = 0x4, offset = 0x4, fixed_abs, tag = 'smem constant byte address 0x4 - core index']
  #allocation1 [shape = 'u32[144,128]{1,0:T(1,128)}', space=vmem, size = 0x12000, scoped, tag = 'internal scratch']
  %s0 = inlined_call_operand.vmem [shape: bf16[16,32], index: 0, kind: input, shape index: {}]
  %s1 = inlined_call_operand.vmem [shape: bf16[32,128], index: 1, kind: input, shape index: {}]
  %s2 = inlined_call_operand.vmem [shape: f32[1,128], index: 2, kind: input, shape index: {}]
  %s3 = inlined_call_operand.vmem [shape: f32[16,128], index: 3, kind: output, shape index: {}]
  %s4 = sld [smem:[#allocation0]]
  $region22: #{full_decoder.5} parent=0
    _
  %s6 = ssub.s32 1, %s4
  %s7 = scalar_select 0, %s6, %s4
  // Predicated region
  $region2: #{full_decoder.5} parent=0 // pred_check
    _
  $region3: #{full_decoder.5} parent=0 // pred_check_branch
    %9 = sbr.rel (0) target = $region5
  $region4: #{full_decoder.5} parent=0 // pred_region
    _
  $region5: #{full_decoder.5} parent=0 // pred_fallthru
    _
  // Predicated region
  $region6: #{full_decoder.5} parent=0 // pred_check
    _
  $region7: #{full_decoder.5} parent=0 // pred_check_branch
    %11 = sbr.rel (0) target = $region9
  $region8: #{full_decoder.5} parent=0 // pred_region
    _
  $region9: #{full_decoder.5} parent=0 // pred_fallthru
    _
  // Predicated region
  $region10: #{full_decoder.5} parent=0 // pred_check
    _
  $region11: #{full_decoder.5} parent=0 // pred_check_branch
    %13 = sbr.rel (0) target = $region13
  $region12: #{full_decoder.5} parent=0 // pred_region
    _
  $region13: #{full_decoder.5} parent=0 // pred_fallthru
    _
  %v15 = vld [vmem:[%s0] sm:$0xf]
  %v16 = vld [vmem:[%s0 + $0x4] sm:$0xf]
  %v17 = vld [vmem:[%s1] sm:$0xf]
  %v18 = vld [vmem:[%s1 + $0x4] sm:$0xf]
  %v19 = vld [vmem:[%s1 + $0x8] sm:$0xf]
  %v20 = vld [vmem:[%s1 + $0xc] sm:$0xf]
  %v21 = vld [vmem:[%s2] sm:$0x1]
  %v23 = vlaneseq
  %v24 = vshrl.u32 %v23, 7
  %v25 = vsub.s32 0, %v24
  %v26 = vrot.slane %v21, %v25
  %v30 = vunpack.c.l.b16 %v15
  %v31 = vunpack.c.l.b16 %v16
  %v32 = vpack.c.b16 %v31, %v30
  %v37 = vunpack.c.l.b16 %v17
  %v38 = vunpack.c.l.b16 %v18
  %v39 = vunpack.c.l.b16 %v19
  %v40 = vunpack.c.l.b16 %v20
  %v41 = vpack.c.b16 %v38, %v37
  %v42 = vpack.c.b16 %v40, %v39
  %vm45 = vcmask 261120
  %v47 = vsel %vm45, %v32, 0
  %49 = vmatprep.subr.bf16.mxu0 0
  %50 = vmatpush1.bf16.msra.mxu0 %v41
  %51 = vmatprep.subr.bf16.mxu0 0
  %52 = vmatpush1.bf16.msra.mxu0 %v42
  %53 = vmatprep.subr.bf16.mxu0 0
  %54 = vmatpush1.bf16.msra.mxu0 0
  %55 = vmatprep.subr.bf16.mxu0 0
  %56 = vmatpush1.bf16.msra.mxu0 0
  %57 = vmatprep.subr.bf16.mxu0 0
  %58 = vmatpush1.bf16.msra.mxu0 0
  %59 = vmatprep.subr.bf16.mxu0 0
  %60 = vmatpush1.bf16.msra.mxu0 0
  %61 = vmatprep.subr.bf16.mxu0 0
  %62 = vmatpush1.bf16.msra.mxu0 0
  %63 = vmatprep.subr.bf16.mxu0 0
  %64 = vmatpush1.bf16.msra.mxu0 0
  %65 = vmatprep.subr.bf16.mxu0 0
  %66 = vmatpush1.bf16.msra.mxu0 0
  %67 = vmatprep.subr.bf16.mxu0 0
  %68 = vmatpush1.bf16.msra.mxu0 0
  %69 = vmatprep.subr.bf16.mxu0 0
  %70 = vmatpush1.bf16.msra.mxu0 0
  %71 = vmatprep.subr.bf16.mxu0 0
  %72 = vmatpush1.bf16.msra.mxu0 0
  %73 = vmatprep.subr.bf16.mxu0 0
  %74 = vmatpush1.bf16.msra.mxu0 0
  %75 = vmatprep.subr.bf16.mxu0 0
  %76 = vmatpush1.bf16.msra.mxu0 0
  %77 = vmatprep.subr.bf16.mxu0 0
  %78 = vmatpush1.bf16.msra.mxu0 0
  %79 = vmatprep.subr.bf16.mxu0 0
  %80 = vmatpush1.bf16.msra.mxu0 0
  %81 = vmatprep.mubr.bf16.mxu0 0
  %82 = vmatmul.mubr.bf16.gmra.mrb[0].mxu0 %v47
  %v83 = vpop.f32.mrb[0].mxu0
  %v84 = vadd.f32 %v26, %v83
  %v85 = vpop.f32.mrb[0].mxu0
  %v86 = vpop.f32.mrb[0].mxu0
  %v87 = vadd.f32 %v26, %v86
  %v88 = vpop.f32.mrb[0].mxu0
  %89 = vdwg.mxu0
  %90 = vst [vmem:[%s3] sm:$0xff] %v84
  %91 = vst [vmem:[%s3 + $0x8] sm:$0xff] %v87
  // Predicated region
  $region14: #{full_decoder.5} parent=0 // pred_check
    _
  $region15: #{full_decoder.5} parent=0 // pred_check_branch
    %93 = sbr.rel (0) target = $region17
  $region16: #{full_decoder.5} parent=0 // pred_region
    _
  $region17: #{full_decoder.5} parent=0 // pred_fallthru
    _
  // Predicated region
  $region18: #{full_decoder.5} parent=0 // pred_check
    _
  $region19: #{full_decoder.5} parent=0 // pred_check_branch
    %95 = sbr.rel (0) target = $region21
  $region20: #{full_decoder.5} parent=0 // pred_region
    _
  $region21: #{full_decoder.5} parent=0 // pred_fallthru
    _

// kernel: full_decoder.3
$region0: #{full_decoder.3}
  #allocation0 [shape = 'u32[]', space=smem, size = 0x4, offset = 0x4, fixed_abs, tag = 'smem constant byte address 0x4 - core index']
  #allocation1 [shape = 'u32[144,128]{1,0:T(1,128)}', space=vmem, size = 0x12000, scoped, tag = 'internal scratch']
  %s0 = inlined_call_operand.vmem [shape: f32[2,8,32], index: 0, kind: input, shape index: {}]
  %s1 = inlined_call_operand.vmem [shape: f32[2,8,32], index: 1, kind: input, shape index: {}]
  %s2 = inlined_call_operand.vmem [shape: f32[2,8,8], index: 2, kind: input, shape index: {}]
  %s3 = inlined_call_operand.vmem [shape: bf16[32,96], index: 3, kind: input, shape index: {}]
  %s4 = inlined_call_operand.vmem [shape: f32[1,96], index: 4, kind: input, shape index: {}]
  %s5 = inlined_call_operand.vmem [shape: bf16[32,32], index: 5, kind: input, shape index: {}]
  %s6 = inlined_call_operand.vmem [shape: f32[1,32], index: 6, kind: input, shape index: {}]
  %s7 = inlined_call_operand.vmem [shape: bf16[32,32], index: 7, kind: input, shape index: {}]
  %s8 = inlined_call_operand.vmem [shape: f32[1,32], index: 8, kind: input, shape index: {}]
  %s9 = inlined_call_operand.vmem [shape: bf16[32,64], index: 9, kind: input, shape index: {}]
  %s10 = inlined_call_operand.vmem [shape: f32[1,64], index: 10, kind: input, shape index: {}]
  %s11 = inlined_call_operand.vmem [shape: bf16[32,32], index: 11, kind: input, shape index: {}]
  %s12 = inlined_call_operand.vmem [shape: f32[1,32], index: 12, kind: input, shape index: {}]
  %s13 = inlined_call_operand.vmem [shape: bf16[32,64], index: 13, kind: input, shape index: {}]
  %s14 = inlined_call_operand.vmem [shape: f32[1,64], index: 14, kind: input, shape index: {}]
  %s15 = inlined_call_operand.vmem [shape: bf16[64,32], index: 15, kind: input, shape index: {}]
  %s16 = inlined_call_operand.vmem [shape: f32[1,32], index: 16, kind: input, shape index: {}]
  %s17 = inlined_call_operand.vmem [shape: f32[1,32], index: 17, kind: input, shape index: {}]
  %s18 = inlined_call_operand.vmem [shape: f32[1,32], index: 18, kind: input, shape index: {}]
  %s19 = inlined_call_operand.vmem [shape: f32[1,32], index: 19, kind: input, shape index: {}]
  %s20 = inlined_call_operand.vmem [shape: f32[1,32], index: 20, kind: input, shape index: {}]
  %s21 = inlined_call_operand.vmem [shape: f32[1,32], index: 21, kind: input, shape index: {}]
  %s22 = inlined_call_operand.vmem [shape: f32[1,32], index: 22, kind: input, shape index: {}]
  %s23 = inlined_call_operand.vmem [shape: f32[2,8,32], index: 23, kind: output, shape index: {0}]
  %s24 = inlined_call_operand.hbm [shape: bf16[2,4,8,8], index: 24, kind: output, shape index: {1}]
  %s25 = inlined_call_operand.hbm [shape: bf16[2,4,8,8], index: 25, kind: output, shape index: {2}]
  %26 = xla_tuple %s23, %s24, %s25
  %s27 = sld [smem:[#allocation0]]
  $region141: #{full_decoder.3} parent=0
    _
  %s29 = ssub.s32 1, %s27
  %s30 = scalar_select 0, %s29, %s27
  $region1: #{full_decoder.3} parent=0
    #allocation2 [shape = 'u8[16384]{0}', space=vmem, size = 0x4000, scoped, tag = 'output window, operand 1']
    #allocation3 [shape = 's32[2]{0}', space=sflag, size = 0x8, scoped, tag = 'scoped memory for full_decoder.3']
    #allocation4 [shape = 'u8[16384]{0}', space=vmem, size = 0x4000, scoped, tag = 'output window, operand 2']
    #allocation5 [shape = 's32[2]{0}', space=sflag, size = 0x8, scoped, tag = 'scoped memory for full_decoder.3']
    %31 = vsyncpa [#allocation3], 0
    %s32 = scalar_lea.sflag [#allocation3], 1
    %33 = vsyncpa %s32, 0
    %34 = vsyncpa [#allocation5], 0
    %s35 = scalar_lea.sflag [#allocation5], 1
    %36 = vsyncpa %s35, 0
    loop: start=0, step=1, limit=4
    $region2: #{full_decoder.3} parent=1 // loop_pre_header
      _
    $region3: #{full_decoder.3} parent=1 // loop_header
      %s38 = sphi 0, %s42
      %p39 = scmp.ge.s32.totalorder %s38, 4
      %s48 = sphi 0, %s50
      %s51 = sphi 0, %s48
      %s52 = sphi 0, %s51
      %s68 = sphi 0, %s52
      %s74 = sphi 0, %s76
      %s77 = sphi 0, %s74
      %s78 = sphi 0, %s77
      %s94 = sphi 0, %s78
      %s100 = sphi 0, %s102
      %s103 = sphi 0, %s100
      %s104 = sphi 0, %s103
      %s120 = sphi 0, %s104
      %s124 = sphi 0, %s124
      %s126 = sphi 0, %s124
      %s127 = sphi 0, %s126
      %s141 = sphi 0, %s127
      %s145 = sphi 0, %s145
      %s147 = sphi 0, %s145
      %s148 = sphi 0, %s147
      %s162 = sphi 0, %s148
      %s166 = sphi 0, %s166
      %s168 = sphi 0, %s166
      %s169 = sphi 0, %s168
      %s183 = sphi 0, %s169
      %s187 = sphi 0, %s187
      %s189 = sphi 0, %s187
      %s190 = sphi 0, %s189
      %s204 = sphi 0, %s190
      %s208 = sphi 0, %s208
      %s210 = sphi 0, %s208
      %s211 = sphi 0, %s210
      %s225 = sphi 0, %s211
      %s229 = sphi 0, %s229
      %s231 = sphi 0, %s229
      %s232 = sphi 0, %s231
      %s246 = sphi 0, %s232
      %s250 = sphi 0, %s250
      %s252 = sphi 0, %s250
      %s253 = sphi 0, %s252
      %s267 = sphi 0, %s253
      %s271 = sphi 0, %s271
      %s273 = sphi 0, %s271
      %s274 = sphi 0, %s273
      %s288 = sphi 0, %s274
      %s292 = sphi 0, %s292
      %s294 = sphi 0, %s292
      %s295 = sphi 0, %s294
      %s309 = sphi 0, %s295
      %s313 = sphi 0, %s313
      %s315 = sphi 0, %s313
      %s316 = sphi 0, %s315
      %s330 = sphi 0, %s316
      %s334 = sphi 0, %s334
      %s336 = sphi 0, %s334
      %s337 = sphi 0, %s336
      %s351 = sphi 0, %s337
      %s355 = sphi 0, %s355
      %s357 = sphi 0, %s355
      %s358 = sphi 0, %s357
      %s372 = sphi 0, %s358
      %s376 = sphi 0, %s376
      %s378 = sphi 0, %s376
      %s379 = sphi 0, %s378
      %s393 = sphi 0, %s379
      %s397 = sphi 0, %s397
      %s399 = sphi 0, %s397
      %s400 = sphi 0, %s399
      %s414 = sphi 0, %s400
      %s418 = sphi 0, %s418
      %s420 = sphi 0, %s418
      %s421 = sphi 0, %s420
      %s435 = sphi 0, %s421
      %s439 = sphi 0, %s439
      %s441 = sphi 0, %s439
      %s442 = sphi 0, %s441
      %s456 = sphi 0, %s442
      %s460 = sphi 0, %s460
      %s462 = sphi 0, %s460
      %s463 = sphi 0, %s462
      %s477 = sphi 0, %s463
      %s481 = sphi 0, %s481
      %s483 = sphi 0, %s481
      %s484 = sphi 0, %s483
      %s498 = sphi 0, %s484
      %s502 = sphi 0, %s502
      %s504 = sphi 0, %s502
      %s505 = sphi 0, %s504
      %s519 = sphi 0, %s505
      %s523 = sphi 0, %s523
      %s525 = sphi 0, %s523
      %s526 = sphi 0, %s525
      %s540 = sphi 0, %s526
      %s546 = sphi 0, %s548
      %s549 = sphi 0, %s546
      %s550 = sphi 0, %s549
      %s566 = sphi 0, %s550
      %s572 = sphi 0, %s574
      %s575 = sphi 0, %s572
      %s576 = sphi 0, %s575
      %s592 = sphi 0, %s576
      %s598 = sphi 0, %s600
      %s601 = sphi 0, %s598
      %s602 = sphi 0, %s601
      %s618 = sphi 0, %s602
    $region4: #{full_decoder.3} parent=1 // loop_header_branch
      %41 = sbr.rel (%p39) target = $region8
    $region5: #{full_decoder.3} parent=1 // loop_body
      %s43 = ssub.s32 %s38, 1
      %s44 = ssub.s32 %s38, 2
      %s45 = sadd.s32 %s38, 1
      %s46 = ssub.s32 %s38, %s45
      %p47 = scmp.eq.s32.totalorder %s46, 0
      %s49 = sadd.s32 %s48, 1
      %s50 = scalar_select %p47, %s48, %s49
      %p53 = pneg %p47
      %p54 = scmp.eq.s32.totalorder %s38, 1
      %p55 = por %p53, %p54
      %p56 = scmp.ne.s32.totalorder %s48, %s51
      %p57 = scmp.eq.s32.totalorder %s38, 0
      %p58 = por %p56, %p57
      %p59 = scmp.ne.s32.totalorder %s48, %s51
      %p60 = scmp.eq.s32.totalorder %s43, 1
      %p61 = por %p59, %p60
      %p62 = scmp.ne.s32.totalorder %s51, %s52
      %p63 = scmp.eq.s32.totalorder %s43, 0
      %p64 = por %p62, %p63
      %p65 = scmp.ne.s32.totalorder %s51, %s52
      %p66 = scmp.eq.s32.totalorder %s44, 1
      %p67 = por %p65, %p66
      %p69 = scmp.ne.s32.totalorder %s52, %s68
      %p70 = scmp.eq.s32.totalorder %s44, 0
      %p71 = por %p69, %p70
      %s72 = ssub.s32 %s38, %s45
      %p73 = scmp.eq.s32.totalorder %s72, 0
      %s75 = sadd.s32 %s74, 1
      %s76 = scalar_select %p73, %s74, %s75
      %p79 = pneg %p73
      %p80 = scmp.eq.s32.totalorder %s38, 1
      %p81 = por %p79, %p80
      %p82 = scmp.ne.s32.totalorder %s74, %s77
      %p83 = scmp.eq.s32.totalorder %s38, 0
      %p84 = por %p82, %p83
      %p85 = scmp.ne.s32.totalorder %s74, %s77
      %p86 = scmp.eq.s32.totalorder %s43, 1
      %p87 = por %p85, %p86
      %p88 = scmp.ne.s32.totalorder %s77, %s78
      %p89 = scmp.eq.s32.totalorder %s43, 0
      %p90 = por %p88, %p89
      %p91 = scmp.ne.s32.totalorder %s77, %s78
      %p92 = scmp.eq.s32.totalorder %s44, 1
      %p93 = por %p91, %p92
      %p95 = scmp.ne.s32.totalorder %s78, %s94
      %p96 = scmp.eq.s32.totalorder %s44, 0
      %p97 = por %p95, %p96
      %s98 = ssub.s32 %s38, %s45
      %p99 = scmp.eq.s32.totalorder %s98, 0
      %s101 = sadd.s32 %s100, 1
      %s102 = scalar_select %p99, %s100, %s101
      %p105 = pneg %p99
      %p106 = scmp.eq.s32.totalorder %s38, 1
      %p107 = por %p105, %p106
      %p108 = scmp.ne.s32.totalorder %s100, %s103
      %p109 = scmp.eq.s32.totalorder %s38, 0
      %p110 = por %p108, %p109
      %p111 = scmp.ne.s32.totalorder %s100, %s103
      %p112 = scmp.eq.s32.totalorder %s43, 1
      %p113 = por %p111, %p112
      %p114 = scmp.ne.s32.totalorder %s103, %s104
      %p115 = scmp.eq.s32.totalorder %s43, 0
      %p116 = por %p114, %p115
      %p117 = scmp.ne.s32.totalorder %s103, %s104
      %p118 = scmp.eq.s32.totalorder %s44, 1
      %p119 = por %p117, %p118
      %p121 = scmp.ne.s32.totalorder %s104, %s120
      %p122 = scmp.eq.s32.totalorder %s44, 0
      %p123 = por %p121, %p122
      %s125 = sadd.s32 %s124, 1
      %p128 = scmp.eq.s32.totalorder %s38, 1
      %p129 = scmp.ne.s32.totalorder %s124, %s126
      %p130 = scmp.eq.s32.totalorder %s38, 0
      %p131 = por %p129, %p130
      %p132 = scmp.ne.s32.totalorder %s124, %s126
      %p133 = scmp.eq.s32.totalorder %s43, 1
      %p134 = por %p132, %p133
      %p135 = scmp.ne.s32.totalorder %s126, %s127
      %p136 = scmp.eq.s32.totalorder %s43, 0
      %p137 = por %p135, %p136
      %p138 = scmp.ne.s32.totalorder %s126, %s127
      %p139 = scmp.eq.s32.totalorder %s44, 1
      %p140 = por %p138, %p139
      %p142 = scmp.ne.s32.totalorder %s127, %s141
      %p143 = scmp.eq.s32.totalorder %s44, 0
      %p144 = por %p142, %p143
      %s146 = sadd.s32 %s145, 1
      %p149 = scmp.eq.s32.totalorder %s38, 1
      %p150 = scmp.ne.s32.totalorder %s145, %s147
      %p151 = scmp.eq.s32.totalorder %s38, 0
      %p152 = por %p150, %p151
      %p153 = scmp.ne.s32.totalorder %s145, %s147
      %p154 = scmp.eq.s32.totalorder %s43, 1
      %p155 = por %p153, %p154
      %p156 = scmp.ne.s32.totalorder %s147, %s148
      %p157 = scmp.eq.s32.totalorder %s43, 0
      %p158 = por %p156, %p157
      %p159 = scmp.ne.s32.totalorder %s147, %s148
      %p160 = scmp.eq.s32.totalorder %s44, 1
      %p161 = por %p159, %p160
      %p163 = scmp.ne.s32.totalorder %s148, %s162
      %p164 = scmp.eq.s32.totalorder %s44, 0
      %p165 = por %p163, %p164
      %s167 = sadd.s32 %s166, 1
      %p170 = scmp.eq.s32.totalorder %s38, 1
      %p171 = scmp.ne.s32.totalorder %s166, %s168
      %p172 = scmp.eq.s32.totalorder %s38, 0
      %p173 = por %p171, %p172
      %p174 = scmp.ne.s32.totalorder %s166, %s168
      %p175 = scmp.eq.s32.totalorder %s43, 1
      %p176 = por %p174, %p175
      %p177 = scmp.ne.s32.totalorder %s168, %s169
      %p178 = scmp.eq.s32.totalorder %s43, 0
      %p179 = por %p177, %p178
      %p180 = scmp.ne.s32.totalorder %s168, %s169
      %p181 = scmp.eq.s32.totalorder %s44, 1
      %p182 = por %p180, %p181
      %p184 = scmp.ne.s32.totalorder %s169, %s183
      %p185 = scmp.eq.s32.totalorder %s44, 0
      %p186 = por %p184, %p185
      %s188 = sadd.s32 %s187, 1
      %p191 = scmp.eq.s32.totalorder %s38, 1
      %p192 = scmp.ne.s32.totalorder %s187, %s189
      %p193 = scmp.eq.s32.totalorder %s38, 0
      %p194 = por %p192, %p193
      %p195 = scmp.ne.s32.totalorder %s187, %s189
      %p196 = scmp.eq.s32.totalorder %s43, 1
      %p197 = por %p195, %p196
      %p198 = scmp.ne.s32.totalorder %s189, %s190
      %p199 = scmp.eq.s32.totalorder %s43, 0
      %p200 = por %p198, %p199
      %p201 = scmp.ne.s32.totalorder %s189, %s190
      %p202 = scmp.eq.s32.totalorder %s44, 1
      %p203 = por %p201, %p202
      %p205 = scmp.ne.s32.totalorder %s190, %s204
      %p206 = scmp.eq.s32.totalorder %s44, 0
      %p207 = por %p205, %p206
      %s209 = sadd.s32 %s208, 1
      %p212 = scmp.eq.s32.totalorder %s38, 1
      %p213 = scmp.ne.s32.totalorder %s208, %s210
      %p214 = scmp.eq.s32.totalorder %s38, 0
      %p215 = por %p213, %p214
      %p216 = scmp.ne.s32.totalorder %s208, %s210
      %p217 = scmp.eq.s32.totalorder %s43, 1
      %p218 = por %p216, %p217
      %p219 = scmp.ne.s32.totalorder %s210, %s211
      %p220 = scmp.eq.s32.totalorder %s43, 0
      %p221 = por %p219, %p220
      %p222 = scmp.ne.s32.totalorder %s210, %s211
      %p223 = scmp.eq.s32.totalorder %s44, 1
      %p224 = por %p222, %p223
      %p226 = scmp.ne.s32.totalorder %s211, %s225
      %p227 = scmp.eq.s32.totalorder %s44, 0
      %p228 = por %p226, %p227
      %s230 = sadd.s32 %s229, 1
      %p233 = scmp.eq.s32.totalorder %s38, 1
      %p234 = scmp.ne.s32.totalorder %s229, %s231
      %p235 = scmp.eq.s32.totalorder %s38, 0
      %p236 = por %p234, %p235
      %p237 = scmp.ne.s32.totalorder %s229, %s231
      %p238 = scmp.eq.s32.totalorder %s43, 1
      %p239 = por %p237, %p238
      %p240 = scmp.ne.s32.totalorder %s231, %s232
      %p241 = scmp.eq.s32.totalorder %s43, 0
      %p242 = por %p240, %p241
      %p243 = scmp.ne.s32.totalorder %s231, %s232
      %p244 = scmp.eq.s32.totalorder %s44, 1
      %p245 = por %p243, %p244
      %p247 = scmp.ne.s32.totalorder %s232, %s246
      %p248 = scmp.eq.s32.totalorder %s44, 0
      %p249 = por %p247, %p248
      %s251 = sadd.s32 %s250, 1
      %p254 = scmp.eq.s32.totalorder %s38, 1
      %p255 = scmp.ne.s32.totalorder %s250, %s252
      %p256 = scmp.eq.s32.totalorder %s38, 0
      %p257 = por %p255, %p256
      %p258 = scmp.ne.s32.totalorder %s250, %s252
      %p259 = scmp.eq.s32.totalorder %s43, 1
      %p260 = por %p258, %p259
      %p261 = scmp.ne.s32.totalorder %s252, %s253
      %p262 = scmp.eq.s32.totalorder %s43, 0
      %p263 = por %p261, %p262
      %p264 = scmp.ne.s32.totalorder %s252, %s253
      %p265 = scmp.eq.s32.totalorder %s44, 1
      %p266 = por %p264, %p265
      %p268 = scmp.ne.s32.totalorder %s253, %s267
      %p269 = scmp.eq.s32.totalorder %s44, 0
      %p270 = por %p268, %p269
      %s272 = sadd.s32 %s271, 1
      %p275 = scmp.eq.s32.totalorder %s38, 1
      %p276 = scmp.ne.s32.totalorder %s271, %s273
      %p277 = scmp.eq.s32.totalorder %s38, 0
      %p278 = por %p276, %p277
      %p279 = scmp.ne.s32.totalorder %s271, %s273
      %p280 = scmp.eq.s32.totalorder %s43, 1
      %p281 = por %p279, %p280
      %p282 = scmp.ne.s32.totalorder %s273, %s274
      %p283 = scmp.eq.s32.totalorder %s43, 0
      %p284 = por %p282, %p283
      %p285 = scmp.ne.s32.totalorder %s273, %s274
      %p286 = scmp.eq.s32.totalorder %s44, 1
      %p287 = por %p285, %p286
      %p289 = scmp.ne.s32.totalorder %s274, %s288
      %p290 = scmp.eq.s32.totalorder %s44, 0
      %p291 = por %p289, %p290
      %s293 = sadd.s32 %s292, 1
      %p296 = scmp.eq.s32.totalorder %s38, 1
      %p297 = scmp.ne.s32.totalorder %s292, %s294
      %p298 = scmp.eq.s32.totalorder %s38, 0
      %p299 = por %p297, %p298
      %p300 = scmp.ne.s32.totalorder %s292, %s294
      %p301 = scmp.eq.s32.totalorder %s43, 1
      %p302 = por %p300, %p301
      %p303 = scmp.ne.s32.totalorder %s294, %s295
      %p304 = scmp.eq.s32.totalorder %s43, 0
      %p305 = por %p303, %p304
      %p306 = scmp.ne.s32.totalorder %s294, %s295
      %p307 = scmp.eq.s32.totalorder %s44, 1
      %p308 = por %p306, %p307
      %p310 = scmp.ne.s32.totalorder %s295, %s309
      %p311 = scmp.eq.s32.totalorder %s44, 0
      %p312 = por %p310, %p311
      %s314 = sadd.s32 %s313, 1
      %p317 = scmp.eq.s32.totalorder %s38, 1
      %p318 = scmp.ne.s32.totalorder %s313, %s315
      %p319 = scmp.eq.s32.totalorder %s38, 0
      %p320 = por %p318, %p319
      %p321 = scmp.ne.s32.totalorder %s313, %s315
      %p322 = scmp.eq.s32.totalorder %s43, 1
      %p323 = por %p321, %p322
      %p324 = scmp.ne.s32.totalorder %s315, %s316
      %p325 = scmp.eq.s32.totalorder %s43, 0
      %p326 = por %p324, %p325
      %p327 = scmp.ne.s32.totalorder %s315, %s316
      %p328 = scmp.eq.s32.totalorder %s44, 1
      %p329 = por %p327, %p328
      %p331 = scmp.ne.s32.totalorder %s316, %s330
      %p332 = scmp.eq.s32.totalorder %s44, 0
      %p333 = por %p331, %p332
      %s335 = sadd.s32 %s334, 1
      %p338 = scmp.eq.s32.totalorder %s38, 1
      %p339 = scmp.ne.s32.totalorder %s334, %s336
      %p340 = scmp.eq.s32.totalorder %s38, 0
      %p341 = por %p339, %p340
      %p342 = scmp.ne.s32.totalorder %s334, %s336
      %p343 = scmp.eq.s32.totalorder %s43, 1
      %p344 = por %p342, %p343
      %p345 = scmp.ne.s32.totalorder %s336, %s337
      %p346 = scmp.eq.s32.totalorder %s43, 0
      %p347 = por %p345, %p346
      %p348 = scmp.ne.s32.totalorder %s336, %s337
      %p349 = scmp.eq.s32.totalorder %s44, 1
      %p350 = por %p348, %p349
      %p352 = scmp.ne.s32.totalorder %s337, %s351
      %p353 = scmp.eq.s32.totalorder %s44, 0
      %p354 = por %p352, %p353
      %s356 = sadd.s32 %s355, 1
      %p359 = scmp.eq.s32.totalorder %s38, 1
      %p360 = scmp.ne.s32.totalorder %s355, %s357
      %p361 = scmp.eq.s32.totalorder %s38, 0
      %p362 = por %p360, %p361
      %p363 = scmp.ne.s32.totalorder %s355, %s357
      %p364 = scmp.eq.s32.totalorder %s43, 1
      %p365 = por %p363, %p364
      %p366 = scmp.ne.s32.totalorder %s357, %s358
      %p367 = scmp.eq.s32.totalorder %s43, 0
      %p368 = por %p366, %p367
      %p369 = scmp.ne.s32.totalorder %s357, %s358
      %p370 = scmp.eq.s32.totalorder %s44, 1
      %p371 = por %p369, %p370
      %p373 = scmp.ne.s32.totalorder %s358, %s372
      %p374 = scmp.eq.s32.totalorder %s44, 0
      %p375 = por %p373, %p374
      %s377 = sadd.s32 %s376, 1
      %p380 = scmp.eq.s32.totalorder %s38, 1
      %p381 = scmp.ne.s32.totalorder %s376, %s378
      %p382 = scmp.eq.s32.totalorder %s38, 0
      %p383 = por %p381, %p382
      %p384 = scmp.ne.s32.totalorder %s376, %s378
      %p385 = scmp.eq.s32.totalorder %s43, 1
      %p386 = por %p384, %p385
      %p387 = scmp.ne.s32.totalorder %s378, %s379
      %p388 = scmp.eq.s32.totalorder %s43, 0
      %p389 = por %p387, %p388
      %p390 = scmp.ne.s32.totalorder %s378, %s379
      %p391 = scmp.eq.s32.totalorder %s44, 1
      %p392 = por %p390, %p391
      %p394 = scmp.ne.s32.totalorder %s379, %s393
      %p395 = scmp.eq.s32.totalorder %s44, 0
      %p396 = por %p394, %p395
      %s398 = sadd.s32 %s397, 1
      %p401 = scmp.eq.s32.totalorder %s38, 1
      %p402 = scmp.ne.s32.totalorder %s397, %s399
      %p403 = scmp.eq.s32.totalorder %s38, 0
      %p404 = por %p402, %p403
      %p405 = scmp.ne.s32.totalorder %s397, %s399
      %p406 = scmp.eq.s32.totalorder %s43, 1
      %p407 = por %p405, %p406
      %p408 = scmp.ne.s32.totalorder %s399, %s400
      %p409 = scmp.eq.s32.totalorder %s43, 0
      %p410 = por %p408, %p409
      %p411 = scmp.ne.s32.totalorder %s399, %s400
      %p412 = scmp.eq.s32.totalorder %s44, 1
      %p413 = por %p411, %p412
      %p415 = scmp.ne.s32.totalorder %s400, %s414
      %p416 = scmp.eq.s32.totalorder %s44, 0
      %p417 = por %p415, %p416
      %s419 = sadd.s32 %s418, 1
      %p422 = scmp.eq.s32.totalorder %s38, 1
      %p423 = scmp.ne.s32.totalorder %s418, %s420
      %p424 = scmp.eq.s32.totalorder %s38, 0
      %p425 = por %p423, %p424
      %p426 = scmp.ne.s32.totalorder %s418, %s420
      %p427 = scmp.eq.s32.totalorder %s43, 1
      %p428 = por %p426, %p427
      %p429 = scmp.ne.s32.totalorder %s420, %s421
      %p430 = scmp.eq.s32.totalorder %s43, 0
      %p431 = por %p429, %p430
      %p432 = scmp.ne.s32.totalorder %s420, %s421
      %p433 = scmp.eq.s32.totalorder %s44, 1
      %p434 = por %p432, %p433
      %p436 = scmp.ne.s32.totalorder %s421, %s435
      %p437 = scmp.eq.s32.totalorder %s44, 0
      %p438 = por %p436, %p437
      %s440 = sadd.s32 %s439, 1
      %p443 = scmp.eq.s32.totalorder %s38, 1
      %p444 = scmp.ne.s32.totalorder %s439, %s441
      %p445 = scmp.eq.s32.totalorder %s38, 0
      %p446 = por %p444, %p445
      %p447 = scmp.ne.s32.totalorder %s439, %s441
      %p448 = scmp.eq.s32.totalorder %s43, 1
      %p449 = por %p447, %p448
      %p450 = scmp.ne.s32.totalorder %s441, %s442
      %p451 = scmp.eq.s32.totalorder %s43, 0
      %p452 = por %p450, %p451
      %p453 = scmp.ne.s32.totalorder %s441, %s442
      %p454 = scmp.eq.s32.totalorder %s44, 1
      %p455 = por %p453, %p454
      %p457 = scmp.ne.s32.totalorder %s442, %s456
      %p458 = scmp.eq.s32.totalorder %s44, 0
      %p459 = por %p457, %p458
      %s461 = sadd.s32 %s460, 1
      %p464 = scmp.eq.s32.totalorder %s38, 1
      %p465 = scmp.ne.s32.totalorder %s460, %s462
      %p466 = scmp.eq.s32.totalorder %s38, 0
      %p467 = por %p465, %p466
      %p468 = scmp.ne.s32.totalorder %s460, %s462
      %p469 = scmp.eq.s32.totalorder %s43, 1
      %p470 = por %p468, %p469
      %p471 = scmp.ne.s32.totalorder %s462, %s463
      %p472 = scmp.eq.s32.totalorder %s43, 0
      %p473 = por %p471, %p472
      %p474 = scmp.ne.s32.totalorder %s462, %s463
      %p475 = scmp.eq.s32.totalorder %s44, 1
      %p476 = por %p474, %p475
      %p478 = scmp.ne.s32.totalorder %s463, %s477
      %p479 = scmp.eq.s32.totalorder %s44, 0
      %p480 = por %p478, %p479
      %s482 = sadd.s32 %s481, 1
      %p485 = scmp.eq.s32.totalorder %s38, 1
      %p486 = scmp.ne.s32.totalorder %s481, %s483
      %p487 = scmp.eq.s32.totalorder %s38, 0
      %p488 = por %p486, %p487
      %p489 = scmp.ne.s32.totalorder %s481, %s483
      %p490 = scmp.eq.s32.totalorder %s43, 1
      %p491 = por %p489, %p490
      %p492 = scmp.ne.s32.totalorder %s483, %s484
      %p493 = scmp.eq.s32.totalorder %s43, 0
      %p494 = por %p492, %p493
      %p495 = scmp.ne.s32.totalorder %s483, %s484
      %p496 = scmp.eq.s32.totalorder %s44, 1
      %p497 = por %p495, %p496
      %p499 = scmp.ne.s32.totalorder %s484, %s498
      %p500 = scmp.eq.s32.totalorder %s44, 0
      %p501 = por %p499, %p500
      %s503 = sadd.s32 %s502, 1
      %p506 = scmp.eq.s32.totalorder %s38, 1
      %p507 = scmp.ne.s32.totalorder %s502, %s504
      %p508 = scmp.eq.s32.totalorder %s38, 0
      %p509 = por %p507, %p508
      %p510 = scmp.ne.s32.totalorder %s502, %s504
      %p511 = scmp.eq.s32.totalorder %s43, 1
      %p512 = por %p510, %p511
      %p513 = scmp.ne.s32.totalorder %s504, %s505
      %p514 = scmp.eq.s32.totalorder %s43, 0
      %p515 = por %p513, %p514
      %p516 = scmp.ne.s32.totalorder %s504, %s505
      %p517 = scmp.eq.s32.totalorder %s44, 1
      %p518 = por %p516, %p517
      %p520 = scmp.ne.s32.totalorder %s505, %s519
      %p521 = scmp.eq.s32.totalorder %s44, 0
      %p522 = por %p520, %p521
      %s524 = sadd.s32 %s523, 1
      %p527 = scmp.eq.s32.totalorder %s38, 1
      %p528 = scmp.ne.s32.totalorder %s523, %s525
      %p529 = scmp.eq.s32.totalorder %s38, 0
      %p530 = por %p528, %p529
      %p531 = scmp.ne.s32.totalorder %s523, %s525
      %p532 = scmp.eq.s32.totalorder %s43, 1
      %p533 = por %p531, %p532
      %p534 = scmp.ne.s32.totalorder %s525, %s526
      %p535 = scmp.eq.s32.totalorder %s43, 0
      %p536 = por %p534, %p535
      %p537 = scmp.ne.s32.totalorder %s525, %s526
      %p538 = scmp.eq.s32.totalorder %s44, 1
      %p539 = por %p537, %p538
      %p541 = scmp.ne.s32.totalorder %s526, %s540
      %p542 = scmp.eq.s32.totalorder %s44, 0
      %p543 = por %p541, %p542
      %s544 = ssub.s32 %s38, %s45
      %p545 = scmp.eq.s32.totalorder %s544, 0
      %s547 = sadd.s32 %s546, 1
      %s548 = scalar_select %p545, %s546, %s547
      %p551 = pneg %p545
      %p552 = scmp.eq.s32.totalorder %s38, 1
      %p553 = por %p551, %p552
      %p554 = scmp.ne.s32.totalorder %s546, %s549
      %p555 = scmp.eq.s32.totalorder %s38, 0
      %p556 = por %p554, %p555
      %p557 = scmp.ne.s32.totalorder %s546, %s549
      %p558 = scmp.eq.s32.totalorder %s43, 1
      %p559 = por %p557, %p558
      %p560 = scmp.ne.s32.totalorder %s549, %s550
      %p561 = scmp.eq.s32.totalorder %s43, 0
      %p562 = por %p560, %p561
      %p563 = scmp.ne.s32.totalorder %s549, %s550
      %p564 = scmp.eq.s32.totalorder %s44, 1
      %p565 = por %p563, %p564
      %p567 = scmp.ne.s32.totalorder %s550, %s566
      %p568 = scmp.eq.s32.totalorder %s44, 0
      %p569 = por %p567, %p568
      %s570 = ssub.s32 %s38, %s45
      %p571 = scmp.eq.s32.totalorder %s570, 0
      %s573 = sadd.s32 %s572, 1
      %s574 = scalar_select %p571, %s572, %s573
      %p577 = pneg %p571
      %p578 = scmp.eq.s32.totalorder %s38, 1
      %p579 = por %p577, %p578
      %p580 = scmp.ne.s32.totalorder %s572, %s575
      %p581 = scmp.eq.s32.totalorder %s38, 0
      %p582 = por %p580, %p581
      %p583 = scmp.ne.s32.totalorder %s572, %s575
      %p584 = scmp.eq.s32.totalorder %s43, 1
      %p585 = por %p583, %p584
      %p586 = scmp.ne.s32.totalorder %s575, %s576
      %p587 = scmp.eq.s32.totalorder %s43, 0
      %p588 = por %p586, %p587
      %p589 = scmp.ne.s32.totalorder %s575, %s576
      %p590 = scmp.eq.s32.totalorder %s44, 1
      %p591 = por %p589, %p590
      %p593 = scmp.ne.s32.totalorder %s576, %s592
      %p594 = scmp.eq.s32.totalorder %s44, 0
      %p595 = por %p593, %p594
      %s596 = ssub.s32 %s38, %s45
      %p597 = scmp.eq.s32.totalorder %s596, 0
      %s599 = sadd.s32 %s598, 1
      %s600 = scalar_select %p597, %s598, %s599
      %p603 = pneg %p597
      %p604 = scmp.eq.s32.totalorder %s38, 1
      %p605 = por %p603, %p604
      %p606 = scmp.ne.s32.totalorder %s598, %s601
      %p607 = scmp.eq.s32.totalorder %s38, 0
      %p608 = por %p606, %p607
      %p609 = scmp.ne.s32.totalorder %s598, %s601
      %p610 = scmp.eq.s32.totalorder %s43, 1
      %p611 = por %p609, %p610
      %p612 = scmp.ne.s32.totalorder %s601, %s602
      %p613 = scmp.eq.s32.totalorder %s43, 0
      %p614 = por %p612, %p613
      %p615 = scmp.ne.s32.totalorder %s601, %s602
      %p616 = scmp.eq.s32.totalorder %s44, 1
      %p617 = por %p615, %p616
      %p619 = scmp.ne.s32.totalorder %s602, %s618
      %p620 = scmp.eq.s32.totalorder %s44, 0
      %p621 = por %p619, %p620
      %p622 = scmp.le.s32.totalorder 1, %s38
      %p623 = scmp.lt.s32.totalorder %s38, 3
      %p624 = pnand %p622, %p623
      %p625 = pneg %p624
      // Predicated region
      $region9: #{full_decoder.3} parent=5 // pred_check
        _
      $region10: #{full_decoder.3} parent=5 // pred_check_branch
        %627 = sbr.rel (%p624) target = $region12
      $region11: #{full_decoder.3} parent=5 // pred_region
        %s628 = ssub.s32 %s38, 1
        // Predicated region
        $region13: #{full_decoder.3} parent=11 // pred_check
          %p629 = pneg %p137
        $region14: #{full_decoder.3} parent=11 // pred_check_branch
          %631 = sbr.rel (%p629) target = $region16
        $region15: #{full_decoder.3} parent=11 // pred_region
          _
        $region16: #{full_decoder.3} parent=11 // pred_fallthru
          _
        // Predicated region
        $region17: #{full_decoder.3} parent=11 // pred_check
          %p632 = pneg %p158
        $region18: #{full_decoder.3} parent=11 // pred_check_branch
          %634 = sbr.rel (%p632) target = $region20
        $region19: #{full_decoder.3} parent=11 // pred_region
          _
        $region20: #{full_decoder.3} parent=11 // pred_fallthru
          _
        // Predicated region
        $region21: #{full_decoder.3} parent=11 // pred_check
          %p635 = pneg %p179
        $region22: #{full_decoder.3} parent=11 // pred_check_branch
          %637 = sbr.rel (%p635) target = $region24
        $region23: #{full_decoder.3} parent=11 // pred_region
          _
        $region24: #{full_decoder.3} parent=11 // pred_fallthru
          _
        // Predicated region
        $region25: #{full_decoder.3} parent=11 // pred_check
          %p638 = pneg %p200
        $region26: #{full_decoder.3} parent=11 // pred_check_branch
          %640 = sbr.rel (%p638) target = $region28
        $region27: #{full_decoder.3} parent=11 // pred_region
          _
        $region28: #{full_decoder.3} parent=11 // pred_fallthru
          _
        // Predicated region
        $region29: #{full_decoder.3} parent=11 // pred_check
          %p641 = pneg %p221
        $region30: #{full_decoder.3} parent=11 // pred_check_branch
          %643 = sbr.rel (%p641) target = $region32
        $region31: #{full_decoder.3} parent=11 // pred_region
          _
        $region32: #{full_decoder.3} parent=11 // pred_fallthru
          _
        // Predicated region
        $region33: #{full_decoder.3} parent=11 // pred_check
          %p644 = pneg %p242
        $region34: #{full_decoder.3} parent=11 // pred_check_branch
          %646 = sbr.rel (%p644) target = $region36
        $region35: #{full_decoder.3} parent=11 // pred_region
          _
        $region36: #{full_decoder.3} parent=11 // pred_fallthru
          _
        // Predicated region
        $region37: #{full_decoder.3} parent=11 // pred_check
          %p647 = pneg %p263
        $region38: #{full_decoder.3} parent=11 // pred_check_branch
          %649 = sbr.rel (%p647) target = $region40
        $region39: #{full_decoder.3} parent=11 // pred_region
          _
        $region40: #{full_decoder.3} parent=11 // pred_fallthru
          _
        // Predicated region
        $region41: #{full_decoder.3} parent=11 // pred_check
          %p650 = pneg %p284
        $region42: #{full_decoder.3} parent=11 // pred_check_branch
          %652 = sbr.rel (%p650) target = $region44
        $region43: #{full_decoder.3} parent=11 // pred_region
          _
        $region44: #{full_decoder.3} parent=11 // pred_fallthru
          _
        // Predicated region
        $region45: #{full_decoder.3} parent=11 // pred_check
          %p653 = pneg %p305
        $region46: #{full_decoder.3} parent=11 // pred_check_branch
          %655 = sbr.rel (%p653) target = $region48
        $region47: #{full_decoder.3} parent=11 // pred_region
          _
        $region48: #{full_decoder.3} parent=11 // pred_fallthru
          _
        // Predicated region
        $region49: #{full_decoder.3} parent=11 // pred_check
          %p656 = pneg %p326
        $region50: #{full_decoder.3} parent=11 // pred_check_branch
          %658 = sbr.rel (%p656) target = $region52
        $region51: #{full_decoder.3} parent=11 // pred_region
          _
        $region52: #{full_decoder.3} parent=11 // pred_fallthru
          _
        // Predicated region
        $region53: #{full_decoder.3} parent=11 // pred_check
          %p659 = pneg %p347
        $region54: #{full_decoder.3} parent=11 // pred_check_branch
          %661 = sbr.rel (%p659) target = $region56
        $region55: #{full_decoder.3} parent=11 // pred_region
          _
        $region56: #{full_decoder.3} parent=11 // pred_fallthru
          _
        // Predicated region
        $region57: #{full_decoder.3} parent=11 // pred_check
          %p662 = pneg %p368
        $region58: #{full_decoder.3} parent=11 // pred_check_branch
          %664 = sbr.rel (%p662) target = $region60
        $region59: #{full_decoder.3} parent=11 // pred_region
          _
        $region60: #{full_decoder.3} parent=11 // pred_fallthru
          _
        // Predicated region
        $region61: #{full_decoder.3} parent=11 // pred_check
          %p665 = pneg %p389
        $region62: #{full_decoder.3} parent=11 // pred_check_branch
          %667 = sbr.rel (%p665) target = $region64
        $region63: #{full_decoder.3} parent=11 // pred_region
          _
        $region64: #{full_decoder.3} parent=11 // pred_fallthru
          _
        // Predicated region
        $region65: #{full_decoder.3} parent=11 // pred_check
          %p668 = pneg %p410
        $region66: #{full_decoder.3} parent=11 // pred_check_branch
          %670 = sbr.rel (%p668) target = $region68
        $region67: #{full_decoder.3} parent=11 // pred_region
          _
        $region68: #{full_decoder.3} parent=11 // pred_fallthru
          _
        // Predicated region
        $region69: #{full_decoder.3} parent=11 // pred_check
          %p671 = pneg %p431
        $region70: #{full_decoder.3} parent=11 // pred_check_branch
          %673 = sbr.rel (%p671) target = $region72
        $region71: #{full_decoder.3} parent=11 // pred_region
          _
        $region72: #{full_decoder.3} parent=11 // pred_fallthru
          _
        // Predicated region
        $region73: #{full_decoder.3} parent=11 // pred_check
          %p674 = pneg %p452
        $region74: #{full_decoder.3} parent=11 // pred_check_branch
          %676 = sbr.rel (%p674) target = $region76
        $region75: #{full_decoder.3} parent=11 // pred_region
          _
        $region76: #{full_decoder.3} parent=11 // pred_fallthru
          _
        // Predicated region
        $region77: #{full_decoder.3} parent=11 // pred_check
          %p677 = pneg %p473
        $region78: #{full_decoder.3} parent=11 // pred_check_branch
          %679 = sbr.rel (%p677) target = $region80
        $region79: #{full_decoder.3} parent=11 // pred_region
          _
        $region80: #{full_decoder.3} parent=11 // pred_fallthru
          _
        // Predicated region
        $region81: #{full_decoder.3} parent=11 // pred_check
          %p680 = pneg %p494
        $region82: #{full_decoder.3} parent=11 // pred_check_branch
          %682 = sbr.rel (%p680) target = $region84
        $region83: #{full_decoder.3} parent=11 // pred_region
          _
        $region84: #{full_decoder.3} parent=11 // pred_fallthru
          _
        // Predicated region
        $region85: #{full_decoder.3} parent=11 // pred_check
          %p683 = pneg %p515
        $region86: #{full_decoder.3} parent=11 // pred_check_branch
          %685 = sbr.rel (%p683) target = $region88
        $region87: #{full_decoder.3} parent=11 // pred_region
          _
        $region88: #{full_decoder.3} parent=11 // pred_fallthru
          _
        // Predicated region
        $region89: #{full_decoder.3} parent=11 // pred_check
          %p686 = pneg %p536
        $region90: #{full_decoder.3} parent=11 // pred_check_branch
          %688 = sbr.rel (%p686) target = $region92
        $region91: #{full_decoder.3} parent=11 // pred_region
          _
        $region92: #{full_decoder.3} parent=11 // pred_fallthru
          _
      $region12: #{full_decoder.3} parent=5 // pred_fallthru
        _
      %p689 = scmp.lt.s32.totalorder %s38, 2
      // Predicated region
      $region93: #{full_decoder.3} parent=5 // pred_check
        %p690 = pneg %p689
      $region94: #{full_decoder.3} parent=5 // pred_check_branch
        %692 = sbr.rel (%p690) target = $region96
      $region95: #{full_decoder.3} parent=5 // pred_region
        // Predicated region
        $region97: #{full_decoder.3} parent=95 // pred_check
          %p693 = pneg %p58
        $region98: #{full_decoder.3} parent=95 // pred_check_branch
          %695 = sbr.rel (%p693) target = $region100
        $region99: #{full_decoder.3} parent=95 // pred_region
          %p696 = scmp.lt.s32.totalorder %s38, 1
          %s697 = scalar_select %p696, %s38, 1
          %s698 = smul.addr %s697, 8
          %s699 = scalar_lea.vmem %s0, %s698
        $region100: #{full_decoder.3} parent=95 // pred_fallthru
          _
        // Predicated region
        $region101: #{full_decoder.3} parent=95 // pred_check
          %p700 = pneg %p84
        $region102: #{full_decoder.3} parent=95 // pred_check_branch
          %702 = sbr.rel (%p700) target = $region104
        $region103: #{full_decoder.3} parent=95 // pred_region
          %p703 = scmp.lt.s32.totalorder %s38, 1
          %s704 = scalar_select %p703, %s38, 1
          %s705 = smul.addr %s704, 8
          %s706 = scalar_lea.vmem %s1, %s705
        $region104: #{full_decoder.3} parent=95 // pred_fallthru
          _
        // Predicated region
        $region105: #{full_decoder.3} parent=95 // pred_check
          %p707 = pneg %p110
        $region106: #{full_decoder.3} parent=95 // pred_check_branch
          %709 = sbr.rel (%p707) target = $region108
        $region107: #{full_decoder.3} parent=95 // pred_region
          %p710 = scmp.lt.s32.totalorder %s38, 1
          %s711 = scalar_select %p710, %s38, 1
          %s712 = smul.addr %s711, 8
          %s713 = scalar_lea.vmem %s2, %s712
        $region108: #{full_decoder.3} parent=95 // pred_fallthru
          _
      $region96: #{full_decoder.3} parent=5 // pred_fallthru
        _
      %p714 = scmp.le.s32.totalorder 1, %s38
      %p715 = scmp.lt.s32.totalorder %s38, 3
      %p716 = pnand %p714, %p715
      %p717 = pneg %p716
      // Predicated region
      $region109: #{full_decoder.3} parent=5 // pred_check
        _
      $region110: #{full_decoder.3} parent=5 // pred_check_branch
        %719 = sbr.rel (%p716) target = $region112
      $region111: #{full_decoder.3} parent=5 // pred_region
        %s720 = ssub.s32 %s38, 1
        %p721 = scmp.lt.s32.totalorder %s43, 1
        %s722 = scalar_select %p721, %s43, 1
        %s723 = smul.addr %s722, 8
        %s724 = scalar_lea.vmem %s0, %s723
        %p725 = pneg %p64
        %p726 = pneg %p61
        %p727 = scmp.lt.s32.totalorder %s43, 1
        %s728 = scalar_select %p727, %s43, 1
        %s729 = smul.addr %s728, 8
        %s730 = scalar_lea.vmem %s1, %s729
        %p731 = pneg %p90
        %p732 = pneg %p87
        %p733 = scmp.lt.s32.totalorder %s43, 1
        %s734 = scalar_select %p733, %s43, 1
        %s735 = smul.addr %s734, 8
        %s736 = scalar_lea.vmem %s2, %s735
        %p737 = pneg %p116
        %p738 = pneg %p113
        %p739 = pneg %p137
        %p740 = pneg %p134
        %p741 = pneg %p158
        %p742 = pneg %p155
        %p743 = pneg %p179
        %p744 = pneg %p176
        %p745 = pneg %p200
        %p746 = pneg %p197
        %p747 = pneg %p221
        %p748 = pneg %p218
        %p749 = pneg %p242
        %p750 = pneg %p239
        %p751 = pneg %p263
        %p752 = pneg %p260
        %p753 = pneg %p284
        %p754 = pneg %p281
        %p755 = pneg %p305
        %p756 = pneg %p302
        %p757 = pneg %p326
        %p758 = pneg %p323
        %p759 = pneg %p347
        %p760 = pneg %p344
        %p761 = pneg %p368
        %p762 = pneg %p365
        %p763 = pneg %p389
        %p764 = pneg %p386
        %p765 = pneg %p410
        %p766 = pneg %p407
        %p767 = pneg %p431
        %p768 = pneg %p428
        %p769 = pneg %p452
        %p770 = pneg %p449
        %p771 = pneg %p473
        %p772 = pneg %p470
        %p773 = pneg %p494
        %p774 = pneg %p491
        %p775 = pneg %p515
        %p776 = pneg %p512
        %p777 = pneg %p536
        %p778 = pneg %p533
        %p779 = pneg %p562
        %p780 = pneg %p559
        %p781 = scmp.lt.s32.totalorder %s43, 1
        %s782 = scalar_select %p781, %s43, 1
        %s783 = smul.addr %s782, 8
        %s784 = scalar_lea.vmem %s23, %s783
        %p785 = pneg %p588
        %p786 = pneg %p585
        %s787 = sand.u32 %s575, 1
        %s788 = scalar_lea.sflag [#allocation3], %s787
        %s789 = sand.u32 %s575, 1
        %s790 = smul.addr %s789, 16
        %s791 = scalar_lea.vmem [#allocation2], %s790
        %p792 = pneg %p614
        %p793 = pneg %p611
        %s794 = sand.u32 %s601, 1
        %s795 = scalar_lea.sflag [#allocation5], %s794
        %s796 = sand.u32 %s601, 1
        %s797 = smul.addr %s796, 16
        %s798 = scalar_lea.vmem [#allocation4], %s797
        %p799 = scmp.lt.s32.totalorder %s43, 1
        %s800 = scalar_select %p799, %s43, 1
        %s801 = smul.addr %s800, 8
        %s802 = scalar_lea.vmem %s0, %s801
        %p803 = scmp.lt.s32.totalorder %s43, 1
        %s804 = scalar_select %p803, %s43, 1
        %s805 = smul.addr %s804, 8
        %s806 = scalar_lea.vmem %s1, %s805
        %p807 = scmp.lt.s32.totalorder %s43, 1
        %s808 = scalar_select %p807, %s43, 1
        %s809 = smul.addr %s808, 8
        %s810 = scalar_lea.vmem %s2, %s809
        %p811 = scmp.lt.s32.totalorder %s43, 1
        %s812 = scalar_select %p811, %s43, 1
        %s813 = smul.addr %s812, 8
        %s814 = scalar_lea.vmem %s23, %s813
        %v816 = vld [vmem:[%s802] sm:$0xff]
        %v817 = vld [vmem:[%s806] sm:$0xff]
        %v818 = vld [vmem:[%s810] sm:$0xff]
        %v819 = vpack.c.bf16 %v816, %v816
        %v820 = vld [vmem:[%s3] sm:$0xf]
        %v821 = vld [vmem:[%s3 + $0x4] sm:$0xf]
        %v822 = vld [vmem:[%s3 + $0x8] sm:$0xf]
        %v823 = vld [vmem:[%s3 + $0xc] sm:$0xf]
        %v824 = vld [vmem:[%s4] sm:$0x1]
        %v826 = vlaneseq
        %v827 = vshrl.u32 %v826, 7
        %v828 = vsub.s32 0, %v827
        %v829 = vrot.slane %v824, %v828
        %v835 = vunpack.c.l.b16 %v820
        %v836 = vunpack.c.l.b16 %v821
        %v837 = vunpack.c.l.b16 %v822
        %v838 = vunpack.c.l.b16 %v823
        %v839 = vpack.c.b16 %v836, %v835
        %v840 = vpack.c.b16 %v838, %v837
        %vm843 = vcmask 261120
        %v845 = vsel %vm843, %v819, 0
        %847 = vmatprep.subr.bf16.mxu0 0
        %848 = vmatpush1.bf16.msra.mxu0 %v839
        %849 = vmatprep.subr.bf16.mxu0 0
        %850 = vmatpush1.bf16.msra.mxu0 %v840
        %851 = vmatprep.subr.bf16.mxu0 0
        %852 = vmatpush1.bf16.msra.mxu0 0
        %853 = vmatprep.subr.bf16.mxu0 0
        %854 = vmatpush1.bf16.msra.mxu0 0
        %855 = vmatprep.subr.bf16.mxu0 0
        %856 = vmatpush1.bf16.msra.mxu0 0
        %857 = vmatprep.subr.bf16.mxu0 0
        %858 = vmatpush1.bf16.msra.mxu0 0
        %859 = vmatprep.subr.bf16.mxu0 0
        %860 = vmatpush1.bf16.msra.mxu0 0
        %861 = vmatprep.subr.bf16.mxu0 0
        %862 = vmatpush1.bf16.msra.mxu0 0
        %863 = vmatprep.subr.bf16.mxu0 0
        %864 = vmatpush1.bf16.msra.mxu0 0
        %865 = vmatprep.subr.bf16.mxu0 0
        %866 = vmatpush1.bf16.msra.mxu0 0
        %867 = vmatprep.subr.bf16.mxu0 0
        %868 = vmatpush1.bf16.msra.mxu0 0
        %869 = vmatprep.subr.bf16.mxu0 0
        %870 = vmatpush1.bf16.msra.mxu0 0
        %871 = vmatprep.subr.bf16.mxu0 0
        %872 = vmatpush1.bf16.msra.mxu0 0
        %873 = vmatprep.subr.bf16.mxu0 0
        %874 = vmatpush1.bf16.msra.mxu0 0
        %875 = vmatprep.subr.bf16.mxu0 0
        %876 = vmatpush1.bf16.msra.mxu0 0
        %877 = vmatprep.subr.bf16.mxu0 0
        %878 = vmatpush1.bf16.msra.mxu0 0
        %879 = vmatprep.mubr.bf16.mxu0 0
        %880 = vmatmul.mubr.bf16.gmra.mrb[0].mxu0 %v845
        %v881 = vpop.f32.mrb[0].mxu0
        %v882 = vadd.f32 %v829, %v881
        %v883 = vpop.f32.mrb[0].mxu0
        %v884 = vpop.f32.mrb[0].mxu0
        %v885 = vpop.f32.mrb[0].mxu0
        %886 = vdwg.mxu0
        %v887 = vmul.f32 %v882, 0.35355338
        %v888 = vpack.c.bf16 %v887, %v887
        %v889 = vpack.c.bf16 %v882, %v882
        %v890 = vld [vmem:[%s5] sm:$0xf]
        %v891 = vld [vmem:[%s5 + $0x4] sm:$0xf]
        %v892 = vld [vmem:[%s5 + $0x8] sm:$0xf]
        %v893 = vld [vmem:[%s5 + $0xc] sm:$0xf]
        %895 = vrot.lane.b32.xlu0 %v889, 96
        %v896 = vpop.permute.xlu0 %895
        %vm897 = vcmask 64512
        %v899 = vsel %vm897, %v888, 0
        %v902 = vsel %vm897, %v896, 0
        %904 = vmatprep.subr.bf16.mxu0 0
        %905 = vmatpush1.bf16.xpose.msra.mxu0 %v902
        %906 = vmatprep.subr.bf16.mxu0 0
        %907 = vmatpush1.bf16.xpose.msra.mxu0 0
        %908 = vmatprep.subr.bf16.mxu0 0
        %909 = vmatpush1.bf16.xpose.msra.mxu0 0
        %910 = vmatprep.subr.bf16.mxu0 0
        %911 = vmatpush1.bf16.xpose.msra.mxu0 0
        %912 = vmatprep.subr.bf16.mxu0 0
        %913 = vmatpush1.bf16.xpose.msra.mxu0 0
        %914 = vmatprep.subr.bf16.mxu0 0
        %915 = vmatpush1.bf16.xpose.msra.mxu0 0
        %916 = vmatprep.subr.bf16.mxu0 0
        %917 = vmatpush1.bf16.xpose.msra.mxu0 0
        %918 = vmatprep.subr.bf16.mxu0 0
        %919 = vmatpush1.bf16.xpose.msra.mxu0 0
        %920 = vmatprep.subr.bf16.mxu0 0
        %921 = vmatpush1.bf16.xpose.msra.mxu0 0
        %922 = vmatprep.subr.bf16.mxu0 0
        %923 = vmatpush1.bf16.xpose.msra.mxu0 0
        %924 = vmatprep.subr.bf16.mxu0 0
        %925 = vmatpush1.bf16.xpose.msra.mxu0 0
        %926 = vmatprep.subr.bf16.mxu0 0
        %927 = vmatpush1.bf16.xpose.msra.mxu0 0
        %928 = vmatprep.subr.bf16.mxu0 0
        %929 = vmatpush1.bf16.xpose.msra.mxu0 0
        %930 = vmatprep.subr.bf16.mxu0 0
        %931 = vmatpush1.bf16.xpose.msra.mxu0 0
        %932 = vmatprep.subr.bf16.mxu0 0
        %933 = vmatpush1.bf16.xpose.msra.mxu0 0
        %934 = vmatprep.subr.bf16.mxu0 0
        %935 = vmatpush1.bf16.xpose.msra.mxu0 0
        %936 = vmatprep.mubr.bf16.mxu0 0
        %937 = vmatmul.mubr.bf16.gmra.mrb[0].mxu0 %v899
        %v938 = vpop.f32.mrb[0].mxu0
        %v939 = vadd.f32 %v818, %v938
        %v940 = vpop.f32.mrb[0].mxu0
        %v941 = vpop.f32.mrb[0].mxu0
        %v942 = vpop.f32.mrb[0].mxu0
        %943 = vdwg.mxu0
        %v944 = vsel %vm897, %v939, -inf
        %945 = vmax.xlane.f32.xlu0 %v944
        %v946 = vpop.xlane.xlu0 %945
        %v947 = vsub.f32 %v939, %v946
        %v948 = vmul.f32 %v947, 1.442695
        %v949 = vpow.pop %v948
        %v950 = vsel %vm897, %v949, 0.0
        %951 = vadd.xlane.f32.xlu0 %v950
        %v952 = vpop.xlane.xlu0 %951
        %v953 = vrcp.pop %v952
        %v954 = vmul.f32 %v949, %v953
        %v955 = vpack.c.bf16 %v954, %v954
        %vm956 = vcmask 60416
        %957 = vst.msk [vmem:[%s791] sm:$0xf] %vm956, %v955
        %958 = vrot.lane.b32.xlu0 %v889, 64
        %v959 = vpop.permute.xlu0 %958
        %v961 = vsel %vm897, %v955, 0
        %vm963 = vcmask 1043456
        %v965 = vsel %vm963, %v959, 0
        %967 = vmatprep.subr.bf16.mxu0 0
        %968 = vmatpush1.bf16.msra.mxu0 %v965
        %969 = vmatprep.subr.bf16.mxu0 0
        %970 = vmatpush1.bf16.msra.mxu0 0
        %971 = vmatprep.subr.bf16.mxu0 0
        %972 = vmatpush1.bf16.msra.mxu0 0
        %973 = vmatprep.subr.bf16.mxu0 0
        %974 = vmatpush1.bf16.msra.mxu0 0
        %975 = vmatprep.subr.bf16.mxu0 0
        %976 = vmatpush1.bf16.msra.mxu0 0
        %977 = vmatprep.subr.bf16.mxu0 0
        %978 = vmatpush1.bf16.msra.mxu0 0
        %979 = vmatprep.subr.bf16.mxu0 0
        %980 = vmatpush1.bf16.msra.mxu0 0
        %981 = vmatprep.subr.bf16.mxu0 0
        %982 = vmatpush1.bf16.msra.mxu0 0
        %983 = vmatprep.subr.bf16.mxu0 0
        %984 = vmatpush1.bf16.msra.mxu0 0
        %985 = vmatprep.subr.bf16.mxu0 0
        %986 = vmatpush1.bf16.msra.mxu0 0
        %987 = vmatprep.subr.bf16.mxu0 0
        %988 = vmatpush1.bf16.msra.mxu0 0
        %989 = vmatprep.subr.bf16.mxu0 0
        %990 = vmatpush1.bf16.msra.mxu0 0
        %991 = vmatprep.subr.bf16.mxu0 0
        %992 = vmatpush1.bf16.msra.mxu0 0
        %993 = vmatprep.subr.bf16.mxu0 0
        %994 = vmatpush1.bf16.msra.mxu0 0
        %995 = vmatprep.subr.bf16.mxu0 0
        %996 = vmatpush1.bf16.msra.mxu0 0
        %997 = vmatprep.subr.bf16.mxu0 0
        %998 = vmatpush1.bf16.msra.mxu0 0
        %999 = vmatprep.mubr.bf16.mxu0 0
        %1000 = vmatmul.mubr.bf16.gmra.mrb[0].mxu0 %v961
        %v1001 = vpop.f32.mrb[0].mxu0
        %v1002 = vadd.f32 0.0, %v1001
        %v1003 = vpop.f32.mrb[0].mxu0
        %v1004 = vpop.f32.mrb[0].mxu0
        %v1005 = vpop.f32.mrb[0].mxu0
        %1006 = vdwg.mxu0
        %v1007 = vpack.c.bf16 %v1002, %v1002
        %1009 = vrot.lane.b32.xlu0 %v888, 120
        %v1010 = vpop.permute.xlu0 %1009
        %1011 = vrot.lane.b32.xlu0 %v889, 88
        %v1012 = vpop.permute.xlu0 %1011
        %v1014 = vsel %vm897, %v1010, 0
        %v1017 = vsel %vm897, %v1012, 0
        %1019 = vmatprep.subr.bf16.mxu0 0
        %1020 = vmatpush1.bf16.xpose.msra.mxu0 %v1017
        %1021 = vmatprep.subr.bf16.mxu0 0
        %1022 = vmatpush1.bf16.xpose.msra.mxu0 0
        %1023 = vmatprep.subr.bf16.mxu0 0
        %1024 = vmatpush1.bf16.xpose.msra.mxu0 0
        %1025 = vmatprep.subr.bf16.mxu0 0
        %1026 = vmatpush1.bf16.xpose.msra.mxu0 0
        %1027 = vmatprep.subr.bf16.mxu0 0
        %1028 = vmatpush1.bf16.xpose.msra.mxu0 0
        %1029 = vmatprep.subr.bf16.mxu0 0
        %1030 = vmatpush1.bf16.xpose.msra.mxu0 0
        %1031 = vmatprep.subr.bf16.mxu0 0
        %1032 = vmatpush1.bf16.xpose.msra.mxu0 0
        %1033 = vmatprep.subr.bf16.mxu0 0
        %1034 = vmatpush1.bf16.xpose.msra.mxu0 0
        %1035 = vmatprep.subr.bf16.mxu0 0
        %1036 = vmatpush1.bf16.xpose.msra.mxu0 0
        %1037 = vmatprep.subr.bf16.mxu0 0
        %1038 = vmatpush1.bf16.xpose.msra.mxu0 0
        %1039 = vmatprep.subr.bf16.mxu0 0
        %1040 = vmatpush1.bf16.xpose.msra.mxu0 0
        %1041 = vmatprep.subr.bf16.mxu0 0
        %1042 = vmatpush1.bf16.xpose.msra.mxu0 0
        %1043 = vmatprep.subr.bf16.mxu0 0
        %1044 = vmatpush1.bf16.xpose.msra.mxu0 0
        %1045 = vmatprep.subr.bf16.mxu0 0
        %1046 = vmatpush1.bf16.xpose.msra.mxu0 0
        %1047 = vmatprep.subr.bf16.mxu0 0
        %1048 = vmatpush1.bf16.xpose.msra.mxu0 0
        %1049 = vmatprep.subr.bf16.mxu0 0
        %1050 = vmatpush1.bf16.xpose.msra.mxu0 0
        %1051 = vmatprep.mubr.bf16.mxu0 0
        %1052 = vmatmul.mubr.bf16.gmra.mrb[0].mxu0 %v1014
        %v1053 = vpop.f32.mrb[0].mxu0
        %v1054 = vadd.f32 %v818, %v1053
        %v1055 = vpop.f32.mrb[0].mxu0
        %v1056 = vpop.f32.mrb[0].mxu0
        %v1057 = vpop.f32.mrb[0].mxu0
        %1058 = vdwg.mxu0
        %v1059 = vsel %vm897, %v1054, -inf
        %1060 = vmax.xlane.f32.xlu0 %v1059
        %v1061 = vpop.xlane.xlu0 %1060
        %v1062 = vsub.f32 %v1054, %v1061
        %v1063 = vmul.f32 %v1062, 1.442695
        %v1064 = vpow.pop %v1063
        %v1065 = vsel %vm897, %v1064, 0.0
        %1066 = vadd.xlane.f32.xlu0 %v1065
        %v1067 = vpop.xlane.xlu0 %1066
        %v1068 = vrcp.pop %v1067
        %v1069 = vmul.f32 %v1064, %v1068
        %v1070 = vpack.c.bf16 %v1069, %v1069
        %s1071 = scalar_lea.vmem %s791, 4 [#allocation2]
        %1072 = vst.msk [vmem:[%s1071] sm:$0xf] %vm956, %v1070
        %1073 = vrot.lane.b32.xlu0 %v889, 56
        %v1074 = vpop.permute.xlu0 %1073
        %v1076 = vsel %vm897, %v1070, 0
        %v1079 = vsel %vm963, %v1074, 0
        %1081 = vmatprep.subr.bf16.mxu0 0
        %1082 = vmatpush1.bf16.msra.mxu0 %v1079
        %1083 = vmatprep.subr.bf16.mxu0 0
        %1084 = vmatpush1.bf16.msra.mxu0 0
        %1085 = vmatprep.subr.bf16.mxu0 0
        %1086 = vmatpush1.bf16.msra.mxu0 0
        %1087 = vmatprep.subr.bf16.mxu0 0
        %1088 = vmatpush1.bf16.msra.mxu0 0
        %1089 = vmatprep.subr.bf16.mxu0 0
        %1090 = vmatpush1.bf16.msra.mxu0 0
        %1091 = vmatprep.subr.bf16.mxu0 0
        %1092 = vmatpush1.bf16.msra.mxu0 0
        %1093 = vmatprep.subr.bf16.mxu0 0
        %1094 = vmatpush1.bf16.msra.mxu0 0
        %1095 = vmatprep.subr.bf16.mxu0 0
        %1096 = vmatpush1.bf16.msra.mxu0 0
        %1097 = vmatprep.subr.bf16.mxu0 0
        %1098 = vmatpush1.bf16.msra.mxu0 0
        %1099 = vmatprep.subr.bf16.mxu0 0
        %1100 = vmatpush1.bf16.msra.mxu0 0
        %1101 = vmatprep.subr.bf16.mxu0 0
        %1102 = vmatpush1.bf16.msra.mxu0 0
        %1103 = vmatprep.subr.bf16.mxu0 0
        %1104 = vmatpush1.bf16.msra.mxu0 0
        %1105 = vmatprep.subr.bf16.mxu0 0
        %1106 = vmatpush1.bf16.msra.mxu0 0
        %1107 = vmatprep.subr.bf16.mxu0 0
        %1108 = vmatpush1.bf16.msra.mxu0 0
        %1109 = vmatprep.subr.bf16.mxu0 0
        %1110 = vmatpush1.bf16.msra.mxu0 0
        %1111 = vmatprep.subr.bf16.mxu0 0
        %1112 = vmatpush1.bf16.msra.mxu0 0
        %1113 = vmatprep.mubr.bf16.mxu0 0
        %1114 = vmatmul.mubr.bf16.gmra.mrb[0].mxu0 %v1076
        %v1115 = vpop.f32.mrb[0].mxu0
        %v1116 = vadd.f32 0.0, %v1115
        %v1117 = vpop.f32.mrb[0].mxu0
        %v1118 = vpop.f32.mrb[0].mxu0
        %v1119 = vpop.f32.mrb[0].mxu0
        %1120 = vdwg.mxu0
        %v1121 = vpack.c.bf16 %v1116, %v1116
        %v1123 = vsel %vm897, %v1121, 0
        %v1126 = vsel %vm963, %v891, 0
        %1128 = vmatprep.subr.bf16.mxu0 0
        %1129 = vmatpush1.bf16.msra.mxu0 %v1126
        %1130 = vmatprep.subr.bf16.mxu0 0
        %1131 = vmatpush1.bf16.msra.mxu0 0
        %1132 = vmatprep.subr.bf16.mxu0 0
        %1133 = vmatpush1.bf16.msra.mxu0 0
        %1134 = vmatprep.subr.bf16.mxu0 0
        %1135 = vmatpush1.bf16.msra.mxu0 0
        %1136 = vmatprep.subr.bf16.mxu0 0
        %1137 = vmatpush1.bf16.msra.mxu0 0
        %1138 = vmatprep.subr.bf16.mxu0 0
        %1139 = vmatpush1.bf16.msra.mxu0 0
        %1140 = vmatprep.subr.bf16.mxu0 0
        %1141 = vmatpush1.bf16.msra.mxu0 0
        %1142 = vmatprep.subr.bf16.mxu0 0
        %1143 = vmatpush1.bf16.msra.mxu0 0
        %1144 = vmatprep.subr.bf16.mxu0 0
        %1145 = vmatpush1.bf16.msra.mxu0 0
        %1146 = vmatprep.subr.bf16.mxu0 0
        %1147 = vmatpush1.bf16.msra.mxu0 0
        %1148 = vmatprep.subr.bf16.mxu0 0
        %1149 = vmatpush1.bf16.msra.mxu0 0
        %1150 = vmatprep.subr.bf16.mxu0 0
        %1151 = vmatpush1.bf16.msra.mxu0 0
        %1152 = vmatprep.subr.bf16.mxu0 0
        %1153 = vmatpush1.bf16.msra.mxu0 0
        %1154 = vmatprep.subr.bf16.mxu0 0
        %1155 = vmatpush1.bf16.msra.mxu0 0
        %1156 = vmatprep.subr.bf16.mxu0 0
        %1157 = vmatpush1.bf16.msra.mxu0 0
        %1158 = vmatprep.subr.bf16.mxu0 0
        %1159 = vmatpush1.bf16.msra.mxu0 0
        %1160 = vmatprep.mubr.bf16.mxu0 0
        %1161 = vmatmul.mubr.bf16.gmra.mrb[0].mxu0 %v1123
        %v1162 = vpop.f32.mrb[0].mxu0
        %v1163 = vadd.f32 0.0, %v1162
        %v1164 = vpop.f32.mrb[0].mxu0
        %v1165 = vpop.f32.mrb[0].mxu0
        %v1166 = vpop.f32.mrb[0].mxu0
        %1167 = vdwg.mxu0
        %v1169 = vsel %vm897, %v1007, 0
        %v1172 = vsel %vm963, %v890, 0
        %1174 = vmatprep.subr.bf16.mxu0 0
        %1175 = vmatpush1.bf16.msra.mxu0 %v1172
        %1176 = vmatprep.subr.bf16.mxu0 0
        %1177 = vmatpush1.bf16.msra.mxu0 0
        %1178 = vmatprep.subr.bf16.mxu0 0
        %1179 = vmatpush1.bf16.msra.mxu0 0
        %1180 = vmatprep.subr.bf16.mxu0 0
        %1181 = vmatpush1.bf16.msra.mxu0 0
        %1182 = vmatprep.subr.bf16.mxu0 0
        %1183 = vmatpush1.bf16.msra.mxu0 0
        %1184 = vmatprep.subr.bf16.mxu0 0
        %1185 = vmatpush1.bf16.msra.mxu0 0
        %1186 = vmatprep.subr.bf16.mxu0 0
        %1187 = vmatpush1.bf16.msra.mxu0 0
        %1188 = vmatprep.subr.bf16.mxu0 0
        %1189 = vmatpush1.bf16.msra.mxu0 0
        %1190 = vmatprep.subr.bf16.mxu0 0
        %1191 = vmatpush1.bf16.msra.mxu0 0
        %1192 = vmatprep.subr.bf16.mxu0 0
        %1193 = vmatpush1.bf16.msra.mxu0 0
        %1194 = vmatprep.subr.bf16.mxu0 0
        %1195 = vmatpush1.bf16.msra.mxu0 0
        %1196 = vmatprep.subr.bf16.mxu0 0
        %1197 = vmatpush1.bf16.msra.mxu0 0
        %1198 = vmatprep.subr.bf16.mxu0 0
        %1199 = vmatpush1.bf16.msra.mxu0 0
        %1200 = vmatprep.subr.bf16.mxu0 0
        %1201 = vmatpush1.bf16.msra.mxu0 0
        %1202 = vmatprep.subr.bf16.mxu0 0
        %1203 = vmatpush1.bf16.msra.mxu0 0
        %1204 = vmatprep.subr.bf16.mxu0 0
        %1205 = vmatpush1.bf16.msra.mxu0 0
        %1206 = vmatprep.mubr.bf16.mxu0 0
        %1207 = vmatmul.mubr.bf16.gmra.mrb[0].mxu0 %v1169
        %v1208 = vpop.f32.mrb[0].mxu0
        %v1209 = vadd.f32 %v1163, %v1208
        %v1210 = vpop.f32.mrb[0].mxu0
        %v1211 = vpop.f32.mrb[0].mxu0
        %v1212 = vpop.f32.mrb[0].mxu0
        %1213 = vdwg.mxu0
        %1214 = vrot.lane.b32.xlu0 %v888, 112
        %v1215 = vpop.permute.xlu0 %1214
        %1216 = vrot.lane.b32.xlu0 %v889, 80
        %v1217 = vpop.permute.xlu0 %1216
        %v1219 = vsel %vm897, %v1215, 0
        %v1222 = vsel %vm897, %v1217, 0
        %1224 = vmatprep.subr.bf16.mxu0 0
        %1225 = vmatpush1.bf16.xpose.msra.mxu0 %v1222
        %1226 = vmatprep.subr.bf16.mxu0 0
        %1227 = vmatpush1.bf16.xpose.msra.mxu0 0
        %1228 = vmatprep.subr.bf16.mxu0 0
        %1229 = vmatpush1.bf16.xpose.msra.mxu0 0
        %1230 = vmatprep.subr.bf16.mxu0 0
        %1231 = vmatpush1.bf16.xpose.msra.mxu0 0
        %1232 = vmatprep.subr.bf16.mxu0 0
        %1233 = vmatpush1.bf16.xpose.msra.mxu0 0
        %1234 = vmatprep.subr.bf16.mxu0 0
        %1235 = vmatpush1.bf16.xpose.msra.mxu0 0
        %1236 = vmatprep.subr.bf16.mxu0 0
        %1237 = vmatpush1.bf16.xpose.msra.mxu0 0
        %1238 = vmatprep.subr.bf16.mxu0 0
        %1239 = vmatpush1.bf16.xpose.msra.mxu0 0
        %1240 = vmatprep.subr.bf16.mxu0 0
        %1241 = vmatpush1.bf16.xpose.msra.mxu0 0
        %1242 = vmatprep.subr.bf16.mxu0 0
        %1243 = vmatpush1.bf16.xpose.msra.mxu0 0
        %1244 = vmatprep.subr.bf16.mxu0 0
        %1245 = vmatpush1.bf16.xpose.msra.mxu0 0
        %1246 = vmatprep.subr.bf16.mxu0 0
        %1247 = vmatpush1.bf16.xpose.msra.mxu0 0
        %1248 = vmatprep.subr.bf16.mxu0 0
        %1249 = vmatpush1.bf16.xpose.msra.mxu0 0
        %1250 = vmatprep.subr.bf16.mxu0 0
        %1251 = vmatpush1.bf16.xpose.msra.mxu0 0
        %1252 = vmatprep.subr.bf16.mxu0 0
        %1253 = vmatpush1.bf16.xpose.msra.mxu0 0
        %1254 = vmatprep.subr.bf16.mxu0 0
        %1255 = vmatpush1.bf16.xpose.msra.mxu0 0
        %1256 = vmatprep.mubr.bf16.mxu0 0
        %1257 = vmatmul.mubr.bf16.gmra.mrb[0].mxu0 %v1219
        %v1258 = vpop.f32.mrb[0].mxu0
        %v1259 = vadd.f32 %v818, %v1258
        %v1260 = vpop.f32.mrb[0].mxu0
        %v1261 = vpop.f32.mrb[0].mxu0
        %v1262 = vpop.f32.mrb[0].mxu0
        %1263 = vdwg.mxu0
        %v1264 = vsel %vm897, %v1259, -inf
        %1265 = vmax.xlane.f32.xlu0 %v1264
        %v1266 = vpop.xlane.xlu0 %1265
        %v1267 = vsub.f32 %v1259, %v1266
        %v1268 = vmul.f32 %v1267, 1.442695
        %v1269 = vpow.pop %v1268
        %v1270 = vsel %vm897, %v1269, 0.0
        %1271 = vadd.xlane.f32.xlu0 %v1270
        %v1272 = vpop.xlane.xlu0 %1271
        %v1273 = vrcp.pop %v1272
        %v1274 = vmul.f32 %v1269, %v1273
        %v1275 = vpack.c.bf16 %v1274, %v1274
        %s1276 = scalar_lea.vmem %s791, 8 [#allocation2]
        %1277 = vst.msk [vmem:[%s1276] sm:$0xf] %vm956, %v1275
        %1278 = vrot.lane.b32.xlu0 %v889, 48
        %v1279 = vpop.permute.xlu0 %1278
        %v1281 = vsel %vm897, %v1275, 0
        %v1284 = vsel %vm963, %v1279, 0
        %1286 = vmatprep.subr.bf16.mxu0 0
        %1287 = vmatpush1.bf16.msra.mxu0 %v1284
        %1288 = vmatprep.subr.bf16.mxu0 0
        %1289 = vmatpush1.bf16.msra.mxu0 0
        %1290 = vmatprep.subr.bf16.mxu0 0
        %1291 = vmatpush1.bf16.msra.mxu0 0
        %1292 = vmatprep.subr.bf16.mxu0 0
        %1293 = vmatpush1.bf16.msra.mxu0 0
        %1294 = vmatprep.subr.bf16.mxu0 0
        %1295 = vmatpush1.bf16.msra.mxu0 0
        %1296 = vmatprep.subr.bf16.mxu0 0
        %1297 = vmatpush1.bf16.msra.mxu0 0
        %1298 = vmatprep.subr.bf16.mxu0 0
        %1299 = vmatpush1.bf16.msra.mxu0 0
        %1300 = vmatprep.subr.bf16.mxu0 0
        %1301 = vmatpush1.bf16.msra.mxu0 0
        %1302 = vmatprep.subr.bf16.mxu0 0
        %1303 = vmatpush1.bf16.msra.mxu0 0
        %1304 = vmatprep.subr.bf16.mxu0 0
        %1305 = vmatpush1.bf16.msra.mxu0 0
        %1306 = vmatprep.subr.bf16.mxu0 0
        %1307 = vmatpush1.bf16.msra.mxu0 0
        %1308 = vmatprep.subr.bf16.mxu0 0
        %1309 = vmatpush1.bf16.msra.mxu0 0
        %1310 = vmatprep.subr.bf16.mxu0 0
        %1311 = vmatpush1.bf16.msra.mxu0 0
        %1312 = vmatprep.subr.bf16.mxu0 0
        %1313 = vmatpush1.bf16.msra.mxu0 0
        %1314 = vmatprep.subr.bf16.mxu0 0
        %1315 = vmatpush1.bf16.msra.mxu0 0
        %1316 = vmatprep.subr.bf16.mxu0 0
        %1317 = vmatpush1.bf16.msra.mxu0 0
        %1318 = vmatprep.mubr.bf16.mxu0 0
        %1319 = vmatmul.mubr.bf16.gmra.mrb[0].mxu0 %v1281
        %v1320 = vpop.f32.mrb[0].mxu0
        %v1321 = vadd.f32 0.0, %v1320
        %v1322 = vpop.f32.mrb[0].mxu0
        %v1323 = vpop.f32.mrb[0].mxu0
        %v1324 = vpop.f32.mrb[0].mxu0
        %1325 = vdwg.mxu0
        %v1326 = vpack.c.bf16 %v1321, %v1321
        %v1328 = vsel %vm897, %v1326, 0
        %v1331 = vsel %vm963, %v892, 0
        %1333 = vmatprep.subr.bf16.mxu0 0
        %1334 = vmatpush1.bf16.msra.mxu0 %v1331
        %1335 = vmatprep.subr.bf16.mxu0 0
        %1336 = vmatpush1.bf16.msra.mxu0 0
        %1337 = vmatprep.subr.bf16.mxu0 0
        %1338 = vmatpush1.bf16.msra.mxu0 0
        %1339 = vmatprep.subr.bf16.mxu0 0
        %1340 = vmatpush1.bf16.msra.mxu0 0
        %1341 = vmatprep.subr.bf16.mxu0 0
        %1342 = vmatpush1.bf16.msra.mxu0 0
        %1343 = vmatprep.subr.bf16.mxu0 0
        %1344 = vmatpush1.bf16.msra.mxu0 0
        %1345 = vmatprep.subr.bf16.mxu0 0
        %1346 = vmatpush1.bf16.msra.mxu0 0
        %1347 = vmatprep.subr.bf16.mxu0 0
        %1348 = vmatpush1.bf16.msra.mxu0 0
        %1349 = vmatprep.subr.bf16.mxu0 0
        %1350 = vmatpush1.bf16.msra.mxu0 0
        %1351 = vmatprep.subr.bf16.mxu0 0
        %1352 = vmatpush1.bf16.msra.mxu0 0
        %1353 = vmatprep.subr.bf16.mxu0 0
        %1354 = vmatpush1.bf16.msra.mxu0 0
        %1355 = vmatprep.subr.bf16.mxu0 0
        %1356 = vmatpush1.bf16.msra.mxu0 0
        %1357 = vmatprep.subr.bf16.mxu0 0
        %1358 = vmatpush1.bf16.msra.mxu0 0
        %1359 = vmatprep.subr.bf16.mxu0 0
        %1360 = vmatpush1.bf16.msra.mxu0 0
        %1361 = vmatprep.subr.bf16.mxu0 0
        %1362 = vmatpush1.bf16.msra.mxu0 0
        %1363 = vmatprep.subr.bf16.mxu0 0
        %1364 = vmatpush1.bf16.msra.mxu0 0
        %1365 = vmatprep.mubr.bf16.mxu0 0
        %1366 = vmatmul.mubr.bf16.gmra.mrb[0].mxu0 %v1328
        %v1367 = vpop.f32.mrb[0].mxu0
        %v1368 = vadd.f32 0.0, %v1367
        %v1369 = vpop.f32.mrb[0].mxu0
        %v1370 = vpop.f32.mrb[0].mxu0
        %v1371 = vpop.f32.mrb[0].mxu0
        %1372 = vdwg.mxu0
        %v1373 = vadd.f32 %v1209, %v1368
        %1374 = vrot.lane.b32.xlu0 %v888, 104
        %v1375 = vpop.permute.xlu0 %1374
        %1376 = vrot.lane.b32.xlu0 %v889, 72
        %v1377 = vpop.permute.xlu0 %1376
        %v1379 = vsel %vm897, %v1375, 0
        %v1382 = vsel %vm897, %v1377, 0
        %1384 = vmatprep.subr.bf16.mxu0 0
        %1385 = vmatpush1.bf16.xpose.msra.mxu0 %v1382
        %1386 = vmatprep.subr.bf16.mxu0 0
        %1387 = vmatpush1.bf16.xpose.msra.mxu0 0
        %1388 = vmatprep.subr.bf16.mxu0 0
        %1389 = vmatpush1.bf16.xpose.msra.mxu0 0
        %1390 = vmatprep.subr.bf16.mxu0 0
        %1391 = vmatpush1.bf16.xpose.msra.mxu0 0
        %1392 = vmatprep.subr.bf16.mxu0 0
        %1393 = vmatpush1.bf16.xpose.msra.mxu0 0
        %1394 = vmatprep.subr.bf16.mxu0 0
        %1395 = vmatpush1.bf16.xpose.msra.mxu0 0
        %1396 = vmatprep.subr.bf16.mxu0 0
        %1397 = vmatpush1.bf16.xpose.msra.mxu0 0
        %1398 = vmatprep.subr.bf16.mxu0 0
        %1399 = vmatpush1.bf16.xpose.msra.mxu0 0
        %1400 = vmatprep.subr.bf16.mxu0 0
        %1401 = vmatpush1.bf16.xpose.msra.mxu0 0
        %1402 = vmatprep.subr.bf16.mxu0 0
        %1403 = vmatpush1.bf16.xpose.msra.mxu0 0
        %1404 = vmatprep.subr.bf16.mxu0 0
        %1405 = vmatpush1.bf16.xpose.msra.mxu0 0
        %1406 = vmatprep.subr.bf16.mxu0 0
        %1407 = vmatpush1.bf16.xpose.msra.mxu0 0
        %1408 = vmatprep.subr.bf16.mxu0 0
        %1409 = vmatpush1.bf16.xpose.msra.mxu0 0
        %1410 = vmatprep.subr.bf16.mxu0 0
        %1411 = vmatpush1.bf16.xpose.msra.mxu0 0
        %1412 = vmatprep.subr.bf16.mxu0 0
        %1413 = vmatpush1.bf16.xpose.msra.mxu0 0
        %1414 = vmatprep.subr.bf16.mxu0 0
        %1415 = vmatpush1.bf16.xpose.msra.mxu0 0
        %1416 = vmatprep.mubr.bf16.mxu0 0
        %1417 = vmatmul.mubr.bf16.gmra.mrb[0].mxu0 %v1379
        %v1418 = vpop.f32.mrb[0].mxu0
        %v1419 = vadd.f32 %v818, %v1418
        %v1420 = vpop.f32.mrb[0].mxu0
        %v1421 = vpop.f32.mrb[0].mxu0
        %v1422 = vpop.f32.mrb[0].mxu0
        %1423 = vdwg.mxu0
        %v1424 = vsel %vm897, %v1419, -inf
        %1425 = vmax.xlane.f32.xlu0 %v1424
        %v1426 = vpop.xlane.xlu0 %1425
        %v1427 = vsub.f32 %v1419, %v1426
        %v1428 = vmul.f32 %v1427, 1.442695
        %v1429 = vpow.pop %v1428
        %v1430 = vsel %vm897, %v1429, 0.0
        %1431 = vadd.xlane.f32.xlu0 %v1430
        %v1432 = vpop.xlane.xlu0 %1431
        %v1433 = vrcp.pop %v1432
        %v1434 = vmul.f32 %v1429, %v1433
        %v1435 = vpack.c.bf16 %v1434, %v1434
        %s1436 = scalar_lea.vmem %s791, 12 [#allocation2]
        %1437 = vst.msk [vmem:[%s1436] sm:$0xf] %vm956, %v1435
        %1438 = vrot.lane.b32.xlu0 %v889, 40
        %v1439 = vpop.permute.xlu0 %1438
        %v1441 = vsel %vm897, %v1435, 0
        %v1444 = vsel %vm963, %v1439, 0
        %1446 = vmatprep.subr.bf16.mxu0 0
        %1447 = vmatpush1.bf16.msra.mxu0 %v1444
        %1448 = vmatprep.subr.bf16.mxu0 0
        %1449 = vmatpush1.bf16.msra.mxu0 0
        %1450 = vmatprep.subr.bf16.mxu0 0
        %1451 = vmatpush1.bf16.msra.mxu0 0
        %1452 = vmatprep.subr.bf16.mxu0 0
        %1453 = vmatpush1.bf16.msra.mxu0 0
        %1454 = vmatprep.subr.bf16.mxu0 0
        %1455 = vmatpush1.bf16.msra.mxu0 0
        %1456 = vmatprep.subr.bf16.mxu0 0
        %1457 = vmatpush1.bf16.msra.mxu0 0
        %1458 = vmatprep.subr.bf16.mxu0 0
        %1459 = vmatpush1.bf16.msra.mxu0 0
        %1460 = vmatprep.subr.bf16.mxu0 0
        %1461 = vmatpush1.bf16.msra.mxu0 0
        %1462 = vmatprep.subr.bf16.mxu0 0
        %1463 = vmatpush1.bf16.msra.mxu0 0
        %1464 = vmatprep.subr.bf16.mxu0 0
        %1465 = vmatpush1.bf16.msra.mxu0 0
        %1466 = vmatprep.subr.bf16.mxu0 0
        %1467 = vmatpush1.bf16.msra.mxu0 0
        %1468 = vmatprep.subr.bf16.mxu0 0
        %1469 = vmatpush1.bf16.msra.mxu0 0
        %1470 = vmatprep.subr.bf16.mxu0 0
        %1471 = vmatpush1.bf16.msra.mxu0 0
        %1472 = vmatprep.subr.bf16.mxu0 0
        %1473 = vmatpush1.bf16.msra.mxu0 0
        %1474 = vmatprep.subr.bf16.mxu0 0
        %1475 = vmatpush1.bf16.msra.mxu0 0
        %1476 = vmatprep.subr.bf16.mxu0 0
        %1477 = vmatpush1.bf16.msra.mxu0 0
        %1478 = vmatprep.mubr.bf16.mxu0 0
        %1479 = vmatmul.mubr.bf16.gmra.mrb[0].mxu0 %v1441
        %v1480 = vpop.f32.mrb[0].mxu0
        %v1481 = vadd.f32 0.0, %v1480
        %v1482 = vpop.f32.mrb[0].mxu0
        %v1483 = vpop.f32.mrb[0].mxu0
        %v1484 = vpop.f32.mrb[0].mxu0
        %1485 = vdwg.mxu0
        %v1486 = vpack.c.bf16 %v1481, %v1481
        %v1488 = vsel %vm897, %v1486, 0
        %v1491 = vsel %vm963, %v893, 0
        %1493 = vmatprep.subr.bf16.mxu0 0
        %1494 = vmatpush1.bf16.msra.mxu0 %v1491
        %1495 = vmatprep.subr.bf16.mxu0 0
        %1496 = vmatpush1.bf16.msra.mxu0 0
        %1497 = vmatprep.subr.bf16.mxu0 0
        %1498 = vmatpush1.bf16.msra.mxu0 0
        %1499 = vmatprep.subr.bf16.mxu0 0
        %1500 = vmatpush1.bf16.msra.mxu0 0
        %1501 = vmatprep.subr.bf16.mxu0 0
        %1502 = vmatpush1.bf16.msra.mxu0 0
        %1503 = vmatprep.subr.bf16.mxu0 0
        %1504 = vmatpush1.bf16.msra.mxu0 0
        %1505 = vmatprep.subr.bf16.mxu0 0
        %1506 = vmatpush1.bf16.msra.mxu0 0
        %1507 = vmatprep.subr.bf16.mxu0 0
        %1508 = vmatpush1.bf16.msra.mxu0 0
        %1509 = vmatprep.subr.bf16.mxu0 0
        %1510 = vmatpush1.bf16.msra.mxu0 0
        %1511 = vmatprep.subr.bf16.mxu0 0
        %1512 = vmatpush1.bf16.msra.mxu0 0
        %1513 = vmatprep.subr.bf16.mxu0 0
        %1514 = vmatpush1.bf16.msra.mxu0 0
        %1515 = vmatprep.subr.bf16.mxu0 0
        %1516 = vmatpush1.bf16.msra.mxu0 0
        %1517 = vmatprep.subr.bf16.mxu0 0
        %1518 = vmatpush1.bf16.msra.mxu0 0
        %1519 = vmatprep.subr.bf16.mxu0 0
        %1520 = vmatpush1.bf16.msra.mxu0 0
        %1521 = vmatprep.subr.bf16.mxu0 0
        %1522 = vmatpush1.bf16.msra.mxu0 0
        %1523 = vmatprep.subr.bf16.mxu0 0
        %1524 = vmatpush1.bf16.msra.mxu0 0
        %1525 = vmatprep.mubr.bf16.mxu0 0
        %1526 = vmatmul.mubr.bf16.gmra.mrb[0].mxu0 %v1488
        %v1527 = vpop.f32.mrb[0].mxu0
        %v1528 = vadd.f32 0.0, %v1527
        %v1529 = vpop.f32.mrb[0].mxu0
        %v1530 = vpop.f32.mrb[0].mxu0
        %v1531 = vpop.f32.mrb[0].mxu0
        %1532 = vdwg.mxu0
        %v1533 = vadd.f32 %v1373, %v1528
        %v1534 = vadd.f32 %v816, %v1533
        %v1535 = vld [vmem:[%s6] sm:$0x1]
        %v1537 = vlaneseq
        %v1538 = vshrl.u32 %v1537, 7
        %v1539 = vsub.s32 0, %v1538
        %v1540 = vrot.slane %v1535, %v1539
        %v1542 = vadd.f32 %v1534, %v1540
        %v1543 = vsel %vm843, %v1542, 0.0
        %1544 = vadd.xlane.f32.xlu0 %v1543
        %v1545 = vpop.xlane.xlu0 %1544
        %v1546 = vrcp.pop 32.0
        %v1547 = vmul.f32 %v1545, %v1546
        %v1548 = vsub.f32 %v1542, %v1547
        %v1549 = vmul.f32 %v1548, %v1548
        %v1550 = vsel %vm843, %v1549, 0.0
        %1551 = vadd.xlane.f32.xlu0 %v1550
        %v1552 = vpop.xlane.xlu0 %1551
        %v1553 = vmul.f32 %v1552, %v1546
        %v1554 = vadd.f32 %v1553, 1e-05
        %v1555 = vrsqrt.pop %v1554
        %v1556 = vmul.f32 %v1548, %v1555
        %v1557 = vld [vmem:[%s17] sm:$0x1]
        %v1559 = vlaneseq
        %v1560 = vshrl.u32 %v1559, 7
        %v1561 = vsub.s32 0, %v1560
        %v1562 = vrot.slane %v1557, %v1561
        %v1564 = vmul.f32 %v1556, %v1562
        %v1565 = vld [vmem:[%s18] sm:$0x1]
        %v1567 = vlaneseq
        %v1568 = vshrl.u32 %v1567, 7
        %v1569 = vsub.s32 0, %v1568
        %v1570 = vrot.slane %v1565, %v1569
        %v1572 = vadd.f32 %v1564, %v1570
        %v1573 = vpack.c.bf16 %v1572, %v1572
        %v1574 = vld [vmem:[%s7] sm:$0xf]
        %v1575 = vld [vmem:[%s7 + $0x4] sm:$0xf]
        %v1576 = vld [vmem:[%s7 + $0x8] sm:$0xf]
        %v1577 = vld [vmem:[%s7 + $0xc] sm:$0xf]
        %v1578 = vld [vmem:[%s8] sm:$0x1]
        %v1580 = vlaneseq
        %v1581 = vshrl.u32 %v1580, 7
        %v1582 = vsub.s32 0, %v1581
        %v1583 = vrot.slane %v1578, %v1582
        %v1589 = vunpack.c.l.b16 %v1574
        %v1590 = vunpack.c.l.b16 %v1575
        %v1591 = vunpack.c.l.b16 %v1576
        %v1592 = vunpack.c.l.b16 %v1577
        %v1593 = vpack.c.b16 %v1590, %v1589
        %v1594 = vpack.c.b16 %v1592, %v1591
        %v1598 = vsel %vm843, %v1573, 0
        %1600 = vmatprep.subr.bf16.mxu0 0
        %1601 = vmatpush1.bf16.msra.mxu0 %v1593
        %1602 = vmatprep.subr.bf16.mxu0 0
        %1603 = vmatpush1.bf16.msra.mxu0 %v1594
        %1604 = vmatprep.subr.bf16.mxu0 0
        %1605 = vmatpush1.bf16.msra.mxu0 0
        %1606 = vmatprep.subr.bf16.mxu0 0
        %1607 = vmatpush1.bf16.msra.mxu0 0
        %1608 = vmatprep.subr.bf16.mxu0 0
        %1609 = vmatpush1.bf16.msra.mxu0 0
        %1610 = vmatprep.subr.bf16.mxu0 0
        %1611 = vmatpush1.bf16.msra.mxu0 0
        %1612 = vmatprep.subr.bf16.mxu0 0
        %1613 = vmatpush1.bf16.msra.mxu0 0
        %1614 = vmatprep.subr.bf16.mxu0 0
        %1615 = vmatpush1.bf16.msra.mxu0 0
        %1616 = vmatprep.subr.bf16.mxu0 0
        %1617 = vmatpush1.bf16.msra.mxu0 0
        %1618 = vmatprep.subr.bf16.mxu0 0
        %1619 = vmatpush1.bf16.msra.mxu0 0
        %1620 = vmatprep.subr.bf16.mxu0 0
        %1621 = vmatpush1.bf16.msra.mxu0 0
        %1622 = vmatprep.subr.bf16.mxu0 0
        %1623 = vmatpush1.bf16.msra.mxu0 0
        %1624 = vmatprep.subr.bf16.mxu0 0
        %1625 = vmatpush1.bf16.msra.mxu0 0
        %1626 = vmatprep.subr.bf16.mxu0 0
        %1627 = vmatpush1.bf16.msra.mxu0 0
        %1628 = vmatprep.subr.bf16.mxu0 0
        %1629 = vmatpush1.bf16.msra.mxu0 0
        %1630 = vmatprep.subr.bf16.mxu0 0
        %1631 = vmatpush1.bf16.msra.mxu0 0
        %1632 = vmatprep.mubr.bf16.mxu0 0
        %1633 = vmatmul.mubr.bf16.gmra.mrb[0].mxu0 %v1598
        %v1634 = vpop.f32.mrb[0].mxu0
        %v1635 = vadd.f32 %v1583, %v1634
        %v1636 = vpop.f32.mrb[0].mxu0
        %v1637 = vpop.f32.mrb[0].mxu0
        %v1638 = vpop.f32.mrb[0].mxu0
        %1639 = vdwg.mxu0
        %v1640 = vpack.c.bf16 %v817, %v817
        %v1641 = vld [vmem:[%s9] sm:$0xf]
        %v1642 = vld [vmem:[%s9 + $0x4] sm:$0xf]
        %v1643 = vld [vmem:[%s9 + $0x8] sm:$0xf]
        %v1644 = vld [vmem:[%s9 + $0xc] sm:$0xf]
        %v1645 = vld [vmem:[%s10] sm:$0x1]
        %v1647 = vlaneseq
        %v1648 = vshrl.u32 %v1647, 7
        %v1649 = vsub.s32 0, %v1648
        %v1650 = vrot.slane %v1645, %v1649
        %v1656 = vunpack.c.l.b16 %v1641
        %v1657 = vunpack.c.l.b16 %v1642
        %v1658 = vunpack.c.l.b16 %v1643
        %v1659 = vunpack.c.l.b16 %v1644
        %v1660 = vpack.c.b16 %v1657, %v1656
        %v1661 = vpack.c.b16 %v1659, %v1658
        %v1665 = vsel %vm843, %v1640, 0
        %1667 = vmatprep.subr.bf16.mxu0 0
        %1668 = vmatpush1.bf16.msra.mxu0 %v1660
        %1669 = vmatprep.subr.bf16.mxu0 0
        %1670 = vmatpush1.bf16.msra.mxu0 %v1661
        %1671 = vmatprep.subr.bf16.mxu0 0
        %1672 = vmatpush1.bf16.msra.mxu0 0
        %1673 = vmatprep.subr.bf16.mxu0 0
        %1674 = vmatpush1.bf16.msra.mxu0 0
        %1675 = vmatprep.subr.bf16.mxu0 0
        %1676 = vmatpush1.bf16.msra.mxu0 0
        %1677 = vmatprep.subr.bf16.mxu0 0
        %1678 = vmatpush1.bf16.msra.mxu0 0
        %1679 = vmatprep.subr.bf16.mxu0 0
        %1680 = vmatpush1.bf16.msra.mxu0 0
        %1681 = vmatprep.subr.bf16.mxu0 0
        %1682 = vmatpush1.bf16.msra.mxu0 0
        %1683 = vmatprep.subr.bf16.mxu0 0
        %1684 = vmatpush1.bf16.msra.mxu0 0
        %1685 = vmatprep.subr.bf16.mxu0 0
        %1686 = vmatpush1.bf16.msra.mxu0 0
        %1687 = vmatprep.subr.bf16.mxu0 0
        %1688 = vmatpush1.bf16.msra.mxu0 0
        %1689 = vmatprep.subr.bf16.mxu0 0
        %1690 = vmatpush1.bf16.msra.mxu0 0
        %1691 = vmatprep.subr.bf16.mxu0 0
        %1692 = vmatpush1.bf16.msra.mxu0 0
        %1693 = vmatprep.subr.bf16.mxu0 0
        %1694 = vmatpush1.bf16.msra.mxu0 0
        %1695 = vmatprep.subr.bf16.mxu0 0
        %1696 = vmatpush1.bf16.msra.mxu0 0
        %1697 = vmatprep.subr.bf16.mxu0 0
        %1698 = vmatpush1.bf16.msra.mxu0 0
        %1699 = vmatprep.mubr.bf16.mxu0 0
        %1700 = vmatmul.mubr.bf16.gmra.mrb[0].mxu0 %v1665
        %v1701 = vpop.f32.mrb[0].mxu0
        %v1702 = vadd.f32 %v1650, %v1701
        %v1703 = vpop.f32.mrb[0].mxu0
        %v1704 = vpop.f32.mrb[0].mxu0
        %v1705 = vpop.f32.mrb[0].mxu0
        %1706 = vdwg.mxu0
        %v1707 = vmul.f32 %v1635, 0.35355338
        %v1708 = vpack.c.bf16 %v1707, %v1707
        %v1709 = vpack.c.bf16 %v1702, %v1702
        %v1710 = vld [vmem:[%s11] sm:$0xf]
        %v1711 = vld [vmem:[%s11 + $0x4] sm:$0xf]
        %v1712 = vld [vmem:[%s11 + $0x8] sm:$0xf]
        %v1713 = vld [vmem:[%s11 + $0xc] sm:$0xf]
        %v1715 = vsel %vm897, %v1708, 0
        %v1718 = vsel %vm897, %v1709, 0
        %1720 = vmatprep.subr.bf16.mxu0 0
        %1721 = vmatpush1.bf16.xpose.msra.mxu0 %v1718
        %1722 = vmatprep.subr.bf16.mxu0 0
        %1723 = vmatpush1.bf16.xpose.msra.mxu0 0
        %1724 = vmatprep.subr.bf16.mxu0 0
        %1725 = vmatpush1.bf16.xpose.msra.mxu0 0
        %1726 = vmatprep.subr.bf16.mxu0 0
        %1727 = vmatpush1.bf16.xpose.msra.mxu0 0
        %1728 = vmatprep.subr.bf16.mxu0 0
        %1729 = vmatpush1.bf16.xpose.msra.mxu0 0
        %1730 = vmatprep.subr.bf16.mxu0 0
        %1731 = vmatpush1.bf16.xpose.msra.mxu0 0
        %1732 = vmatprep.subr.bf16.mxu0 0
        %1733 = vmatpush1.bf16.xpose.msra.mxu0 0
        %1734 = vmatprep.subr.bf16.mxu0 0
        %1735 = vmatpush1.bf16.xpose.msra.mxu0 0
        %1736 = vmatprep.subr.bf16.mxu0 0
        %1737 = vmatpush1.bf16.xpose.msra.mxu0 0
        %1738 = vmatprep.subr.bf16.mxu0 0
        %1739 = vmatpush1.bf16.xpose.msra.mxu0 0
        %1740 = vmatprep.subr.bf16.mxu0 0
        %1741 = vmatpush1.bf16.xpose.msra.mxu0 0
        %1742 = vmatprep.subr.bf16.mxu0 0
        %1743 = vmatpush1.bf16.xpose.msra.mxu0 0
        %1744 = vmatprep.subr.bf16.mxu0 0
        %1745 = vmatpush1.bf16.xpose.msra.mxu0 0
        %1746 = vmatprep.subr.bf16.mxu0 0
        %1747 = vmatpush1.bf16.xpose.msra.mxu0 0
        %1748 = vmatprep.subr.bf16.mxu0 0
        %1749 = vmatpush1.bf16.xpose.msra.mxu0 0
        %1750 = vmatprep.subr.bf16.mxu0 0
        %1751 = vmatpush1.bf16.xpose.msra.mxu0 0
        %1752 = vmatprep.mubr.bf16.mxu0 0
        %1753 = vmatmul.mubr.bf16.gmra.mrb[0].mxu0 %v1715
        %v1754 = vpop.f32.mrb[0].mxu0
        %v1755 = vadd.f32 0.0, %v1754
        %v1756 = vpop.f32.mrb[0].mxu0
        %v1757 = vpop.f32.mrb[0].mxu0
        %v1758 = vpop.f32.mrb[0].mxu0
        %1759 = vdwg.mxu0
        %v1760 = vsel %vm897, %v1755, -inf
        %1761 = vmax.xlane.f32.xlu0 %v1760
        %v1762 = vpop.xlane.xlu0 %1761
        %v1763 = vsub.f32 %v1755, %v1762
        %v1764 = vmul.f32 %v1763, 1.442695
        %v1765 = vpow.pop %v1764
        %v1766 = vsel %vm897, %v1765, 0.0
        %1767 = vadd.xlane.f32.xlu0 %v1766
        %v1768 = vpop.xlane.xlu0 %1767
        %v1769 = vrcp.pop %v1768
        %v1770 = vmul.f32 %v1765, %v1769
        %v1771 = vpack.c.bf16 %v1770, %v1770
        %1772 = vst.msk [vmem:[%s798] sm:$0xf] %vm956, %v1771
        %1774 = vrot.lane.b32.xlu0 %v1709, 96
        %v1775 = vpop.permute.xlu0 %1774
        %v1777 = vsel %vm897, %v1771, 0
        %v1780 = vsel %vm963, %v1775, 0
        %1782 = vmatprep.subr.bf16.mxu0 0
        %1783 = vmatpush1.bf16.msra.mxu0 %v1780
        %1784 = vmatprep.subr.bf16.mxu0 0
        %1785 = vmatpush1.bf16.msra.mxu0 0
        %1786 = vmatprep.subr.bf16.mxu0 0
        %1787 = vmatpush1.bf16.msra.mxu0 0
        %1788 = vmatprep.subr.bf16.mxu0 0
        %1789 = vmatpush1.bf16.msra.mxu0 0
        %1790 = vmatprep.subr.bf16.mxu0 0
        %1791 = vmatpush1.bf16.msra.mxu0 0
        %1792 = vmatprep.subr.bf16.mxu0 0
        %1793 = vmatpush1.bf16.msra.mxu0 0
        %1794 = vmatprep.subr.bf16.mxu0 0
        %1795 = vmatpush1.bf16.msra.mxu0 0
        %1796 = vmatprep.subr.bf16.mxu0 0
        %1797 = vmatpush1.bf16.msra.mxu0 0
        %1798 = vmatprep.subr.bf16.mxu0 0
        %1799 = vmatpush1.bf16.msra.mxu0 0
        %1800 = vmatprep.subr.bf16.mxu0 0
        %1801 = vmatpush1.bf16.msra.mxu0 0
        %1802 = vmatprep.subr.bf16.mxu0 0
        %1803 = vmatpush1.bf16.msra.mxu0 0
        %1804 = vmatprep.subr.bf16.mxu0 0
        %1805 = vmatpush1.bf16.msra.mxu0 0
        %1806 = vmatprep.subr.bf16.mxu0 0
        %1807 = vmatpush1.bf16.msra.mxu0 0
        %1808 = vmatprep.subr.bf16.mxu0 0
        %1809 = vmatpush1.bf16.msra.mxu0 0
        %1810 = vmatprep.subr.bf16.mxu0 0
        %1811 = vmatpush1.bf16.msra.mxu0 0
        %1812 = vmatprep.subr.bf16.mxu0 0
        %1813 = vmatpush1.bf16.msra.mxu0 0
        %1814 = vmatprep.mubr.bf16.mxu0 0
        %1815 = vmatmul.mubr.bf16.gmra.mrb[0].mxu0 %v1777
        %v1816 = vpop.f32.mrb[0].mxu0
        %v1817 = vadd.f32 0.0, %v1816
        %v1818 = vpop.f32.mrb[0].mxu0
        %v1819 = vpop.f32.mrb[0].mxu0
        %v1820 = vpop.f32.mrb[0].mxu0
        %1821 = vdwg.mxu0
        %v1822 = vpack.c.bf16 %v1817, %v1817
        %1824 = vrot.lane.b32.xlu0 %v1708, 120
        %v1825 = vpop.permute.xlu0 %1824
        %1826 = vrot.lane.b32.xlu0 %v1709, 120
        %v1827 = vpop.permute.xlu0 %1826
        %v1829 = vsel %vm897, %v1825, 0
        %v1832 = vsel %vm897, %v1827, 0
        %1834 = vmatprep.subr.bf16.mxu0 0
        %1835 = vmatpush1.bf16.xpose.msra.mxu0 %v1832
        %1836 = vmatprep.subr.bf16.mxu0 0
        %1837 = vmatpush1.bf16.xpose.msra.mxu0 0
        %1838 = vmatprep.subr.bf16.mxu0 0
        %1839 = vmatpush1.bf16.xpose.msra.mxu0 0
        %1840 = vmatprep.subr.bf16.mxu0 0
        %1841 = vmatpush1.bf16.xpose.msra.mxu0 0
        %1842 = vmatprep.subr.bf16.mxu0 0
        %1843 = vmatpush1.bf16.xpose.msra.mxu0 0
        %1844 = vmatprep.subr.bf16.mxu0 0
        %1845 = vmatpush1.bf16.xpose.msra.mxu0 0
        %1846 = vmatprep.subr.bf16.mxu0 0
        %1847 = vmatpush1.bf16.xpose.msra.mxu0 0
        %1848 = vmatprep.subr.bf16.mxu0 0
        %1849 = vmatpush1.bf16.xpose.msra.mxu0 0
        %1850 = vmatprep.subr.bf16.mxu0 0
        %1851 = vmatpush1.bf16.xpose.msra.mxu0 0
        %1852 = vmatprep.subr.bf16.mxu0 0
        %1853 = vmatpush1.bf16.xpose.msra.mxu0 0
        %1854 = vmatprep.subr.bf16.mxu0 0
        %1855 = vmatpush1.bf16.xpose.msra.mxu0 0
        %1856 = vmatprep.subr.bf16.mxu0 0
        %1857 = vmatpush1.bf16.xpose.msra.mxu0 0
        %1858 = vmatprep.subr.bf16.mxu0 0
        %1859 = vmatpush1.bf16.xpose.msra.mxu0 0
        %1860 = vmatprep.subr.bf16.mxu0 0
        %1861 = vmatpush1.bf16.xpose.msra.mxu0 0
        %1862 = vmatprep.subr.bf16.mxu0 0
        %1863 = vmatpush1.bf16.xpose.msra.mxu0 0
        %1864 = vmatprep.subr.bf16.mxu0 0
        %1865 = vmatpush1.bf16.xpose.msra.mxu0 0
        %1866 = vmatprep.mubr.bf16.mxu0 0
        %1867 = vmatmul.mubr.bf16.gmra.mrb[0].mxu0 %v1829
        %v1868 = vpop.f32.mrb[0].mxu0
        %v1869 = vadd.f32 0.0, %v1868
        %v1870 = vpop.f32.mrb[0].mxu0
        %v1871 = vpop.f32.mrb[0].mxu0
        %v1872 = vpop.f32.mrb[0].mxu0
        %1873 = vdwg.mxu0
        %v1874 = vsel %vm897, %v1869, -inf
        %1875 = vmax.xlane.f32.xlu0 %v1874
        %v1876 = vpop.xlane.xlu0 %1875
        %v1877 = vsub.f32 %v1869, %v1876
        %v1878 = vmul.f32 %v1877, 1.442695
        %v1879 = vpow.pop %v1878
        %v1880 = vsel %vm897, %v1879, 0.0
        %1881 = vadd.xlane.f32.xlu0 %v1880
        %v1882 = vpop.xlane.xlu0 %1881
        %v1883 = vrcp.pop %v1882
        %v1884 = vmul.f32 %v1879, %v1883
        %v1885 = vpack.c.bf16 %v1884, %v1884
        %s1886 = scalar_lea.vmem %s798, 4 [#allocation4]
        %1887 = vst.msk [vmem:[%s1886] sm:$0xf] %vm956, %v1885
        %1888 = vrot.lane.b32.xlu0 %v1709, 88
        %v1889 = vpop.permute.xlu0 %1888
        %v1891 = vsel %vm897, %v1885, 0
        %v1894 = vsel %vm963, %v1889, 0
        %1896 = vmatprep.subr.bf16.mxu0 0
        %1897 = vmatpush1.bf16.msra.mxu0 %v1894
        %1898 = vmatprep.subr.bf16.mxu0 0
        %1899 = vmatpush1.bf16.msra.mxu0 0
        %1900 = vmatprep.subr.bf16.mxu0 0
        %1901 = vmatpush1.bf16.msra.mxu0 0
        %1902 = vmatprep.subr.bf16.mxu0 0
        %1903 = vmatpush1.bf16.msra.mxu0 0
        %1904 = vmatprep.subr.bf16.mxu0 0
        %1905 = vmatpush1.bf16.msra.mxu0 0
        %1906 = vmatprep.subr.bf16.mxu0 0
        %1907 = vmatpush1.bf16.msra.mxu0 0
        %1908 = vmatprep.subr.bf16.mxu0 0
        %1909 = vmatpush1.bf16.msra.mxu0 0
        %1910 = vmatprep.subr.bf16.mxu0 0
        %1911 = vmatpush1.bf16.msra.mxu0 0
        %1912 = vmatprep.subr.bf16.mxu0 0
        %1913 = vmatpush1.bf16.msra.mxu0 0
        %1914 = vmatprep.subr.bf16.mxu0 0
        %1915 = vmatpush1.bf16.msra.mxu0 0
        %1916 = vmatprep.subr.bf16.mxu0 0
        %1917 = vmatpush1.bf16.msra.mxu0 0
        %1918 = vmatprep.subr.bf16.mxu0 0
        %1919 = vmatpush1.bf16.msra.mxu0 0
        %1920 = vmatprep.subr.bf16.mxu0 0
        %1921 = vmatpush1.bf16.msra.mxu0 0
        %1922 = vmatprep.subr.bf16.mxu0 0
        %1923 = vmatpush1.bf16.msra.mxu0 0
        %1924 = vmatprep.subr.bf16.mxu0 0
        %1925 = vmatpush1.bf16.msra.mxu0 0
        %1926 = vmatprep.subr.bf16.mxu0 0
        %1927 = vmatpush1.bf16.msra.mxu0 0
        %1928 = vmatprep.mubr.bf16.mxu0 0
        %1929 = vmatmul.mubr.bf16.gmra.mrb[0].mxu0 %v1891
        %v1930 = vpop.f32.mrb[0].mxu0
        %v1931 = vadd.f32 0.0, %v1930
        %v1932 = vpop.f32.mrb[0].mxu0
        %v1933 = vpop.f32.mrb[0].mxu0
        %v1934 = vpop.f32.mrb[0].mxu0
        %1935 = vdwg.mxu0
        %v1936 = vpack.c.bf16 %v1931, %v1931
        %v1938 = vsel %vm897, %v1936, 0
        %v1941 = vsel %vm963, %v1711, 0
        %1943 = vmatprep.subr.bf16.mxu0 0
        %1944 = vmatpush1.bf16.msra.mxu0 %v1941
        %1945 = vmatprep.subr.bf16.mxu0 0
        %1946 = vmatpush1.bf16.msra.mxu0 0
        %1947 = vmatprep.subr.bf16.mxu0 0
        %1948 = vmatpush1.bf16.msra.mxu0 0
        %1949 = vmatprep.subr.bf16.mxu0 0
        %1950 = vmatpush1.bf16.msra.mxu0 0
        %1951 = vmatprep.subr.bf16.mxu0 0
        %1952 = vmatpush1.bf16.msra.mxu0 0
        %1953 = vmatprep.subr.bf16.mxu0 0
        %1954 = vmatpush1.bf16.msra.mxu0 0
        %1955 = vmatprep.subr.bf16.mxu0 0
        %1956 = vmatpush1.bf16.msra.mxu0 0
        %1957 = vmatprep.subr.bf16.mxu0 0
        %1958 = vmatpush1.bf16.msra.mxu0 0
        %1959 = vmatprep.subr.bf16.mxu0 0
        %1960 = vmatpush1.bf16.msra.mxu0 0
        %1961 = vmatprep.subr.bf16.mxu0 0
        %1962 = vmatpush1.bf16.msra.mxu0 0
        %1963 = vmatprep.subr.bf16.mxu0 0
        %1964 = vmatpush1.bf16.msra.mxu0 0
        %1965 = vmatprep.subr.bf16.mxu0 0
        %1966 = vmatpush1.bf16.msra.mxu0 0
        %1967 = vmatprep.subr.bf16.mxu0 0
        %1968 = vmatpush1.bf16.msra.mxu0 0
        %1969 = vmatprep.subr.bf16.mxu0 0
        %1970 = vmatpush1.bf16.msra.mxu0 0
        %1971 = vmatprep.subr.bf16.mxu0 0
        %1972 = vmatpush1.bf16.msra.mxu0 0
        %1973 = vmatprep.subr.bf16.mxu0 0
        %1974 = vmatpush1.bf16.msra.mxu0 0
        %1975 = vmatprep.mubr.bf16.mxu0 0
        %1976 = vmatmul.mubr.bf16.gmra.mrb[0].mxu0 %v1938
        %v1977 = vpop.f32.mrb[0].mxu0
        %v1978 = vadd.f32 0.0, %v1977
        %v1979 = vpop.f32.mrb[0].mxu0
        %v1980 = vpop.f32.mrb[0].mxu0
        %v1981 = vpop.f32.mrb[0].mxu0
        %1982 = vdwg.mxu0
        %v1984 = vsel %vm897, %v1822, 0
        %v1987 = vsel %vm963, %v1710, 0
        %1989 = vmatprep.subr.bf16.mxu0 0
        %1990 = vmatpush1.bf16.msra.mxu0 %v1987
        %1991 = vmatprep.subr.bf16.mxu0 0
        %1992 = vmatpush1.bf16.msra.mxu0 0
        %1993 = vmatprep.subr.bf16.mxu0 0
        %1994 = vmatpush1.bf16.msra.mxu0 0
        %1995 = vmatprep.subr.bf16.mxu0 0
        %1996 = vmatpush1.bf16.msra.mxu0 0
        %1997 = vmatprep.subr.bf16.mxu0 0
        %1998 = vmatpush1.bf16.msra.mxu0 0
        %1999 = vmatprep.subr.bf16.mxu0 0
        %2000 = vmatpush1.bf16.msra.mxu0 0
        %2001 = vmatprep.subr.bf16.mxu0 0
        %2002 = vmatpush1.bf16.msra.mxu0 0
        %2003 = vmatprep.subr.bf16.mxu0 0
        %2004 = vmatpush1.bf16.msra.mxu0 0
        %2005 = vmatprep.subr.bf16.mxu0 0
        %2006 = vmatpush1.bf16.msra.mxu0 0
        %2007 = vmatprep.subr.bf16.mxu0 0
        %2008 = vmatpush1.bf16.msra.mxu0 0
        %2009 = vmatprep.subr.bf16.mxu0 0
        %2010 = vmatpush1.bf16.msra.mxu0 0
        %2011 = vmatprep.subr.bf16.mxu0 0
        %2012 = vmatpush1.bf16.msra.mxu0 0
        %2013 = vmatprep.subr.bf16.mxu0 0
        %2014 = vmatpush1.bf16.msra.mxu0 0
        %2015 = vmatprep.subr.bf16.mxu0 0
        %2016 = vmatpush1.bf16.msra.mxu0 0
        %2017 = vmatprep.subr.bf16.mxu0 0
        %2018 = vmatpush1.bf16.msra.mxu0 0
        %2019 = vmatprep.subr.bf16.mxu0 0
        %2020 = vmatpush1.bf16.msra.mxu0 0
        %2021 = vmatprep.mubr.bf16.mxu0 0
        %2022 = vmatmul.mubr.bf16.gmra.mrb[0].mxu0 %v1984
        %v2023 = vpop.f32.mrb[0].mxu0
        %v2024 = vadd.f32 %v1978, %v2023
        %v2025 = vpop.f32.mrb[0].mxu0
        %v2026 = vpop.f32.mrb[0].mxu0
        %v2027 = vpop.f32.mrb[0].mxu0
        %2028 = vdwg.mxu0
        %2029 = vrot.lane.b32.xlu0 %v1708, 112
        %v2030 = vpop.permute.xlu0 %2029
        %2031 = vrot.lane.b32.xlu0 %v1709, 112
        %v2032 = vpop.permute.xlu0 %2031
        %v2034 = vsel %vm897, %v2030, 0
        %v2037 = vsel %vm897, %v2032, 0
        %2039 = vmatprep.subr.bf16.mxu0 0
        %2040 = vmatpush1.bf16.xpose.msra.mxu0 %v2037
        %2041 = vmatprep.subr.bf16.mxu0 0
        %2042 = vmatpush1.bf16.xpose.msra.mxu0 0
        %2043 = vmatprep.subr.bf16.mxu0 0
        %2044 = vmatpush1.bf16.xpose.msra.mxu0 0
        %2045 = vmatprep.subr.bf16.mxu0 0
        %2046 = vmatpush1.bf16.xpose.msra.mxu0 0
        %2047 = vmatprep.subr.bf16.mxu0 0
        %2048 = vmatpush1.bf16.xpose.msra.mxu0 0
        %2049 = vmatprep.subr.bf16.mxu0 0
        %2050 = vmatpush1.bf16.xpose.msra.mxu0 0
        %2051 = vmatprep.subr.bf16.mxu0 0
        %2052 = vmatpush1.bf16.xpose.msra.mxu0 0
        %2053 = vmatprep.subr.bf16.mxu0 0
        %2054 = vmatpush1.bf16.xpose.msra.mxu0 0
        %2055 = vmatprep.subr.bf16.mxu0 0
        %2056 = vmatpush1.bf16.xpose.msra.mxu0 0
        %2057 = vmatprep.subr.bf16.mxu0 0
        %2058 = vmatpush1.bf16.xpose.msra.mxu0 0
        %2059 = vmatprep.subr.bf16.mxu0 0
        %2060 = vmatpush1.bf16.xpose.msra.mxu0 0
        %2061 = vmatprep.subr.bf16.mxu0 0
        %2062 = vmatpush1.bf16.xpose.msra.mxu0 0
        %2063 = vmatprep.subr.bf16.mxu0 0
        %2064 = vmatpush1.bf16.xpose.msra.mxu0 0
        %2065 = vmatprep.subr.bf16.mxu0 0
        %2066 = vmatpush1.bf16.xpose.msra.mxu0 0
        %2067 = vmatprep.subr.bf16.mxu0 0
        %2068 = vmatpush1.bf16.xpose.msra.mxu0 0
        %2069 = vmatprep.subr.bf16.mxu0 0
        %2070 = vmatpush1.bf16.xpose.msra.mxu0 0
        %2071 = vmatprep.mubr.bf16.mxu0 0
        %2072 = vmatmul.mubr.bf16.gmra.mrb[0].mxu0 %v2034
        %v2073 = vpop.f32.mrb[0].mxu0
        %v2074 = vadd.f32 0.0, %v2073
        %v2075 = vpop.f32.mrb[0].mxu0
        %v2076 = vpop.f32.mrb[0].mxu0
        %v2077 = vpop.f32.mrb[0].mxu0
        %2078 = vdwg.mxu0
        %v2079 = vsel %vm897, %v2074, -inf
        %2080 = vmax.xlane.f32.xlu0 %v2079
        %v2081 = vpop.xlane.xlu0 %2080
        %v2082 = vsub.f32 %v2074, %v2081
        %v2083 = vmul.f32 %v2082, 1.442695
        %v2084 = vpow.pop %v2083
        %v2085 = vsel %vm897, %v2084, 0.0
        %2086 = vadd.xlane.f32.xlu0 %v2085
        %v2087 = vpop.xlane.xlu0 %2086
        %v2088 = vrcp.pop %v2087
        %v2089 = vmul.f32 %v2084, %v2088
        %v2090 = vpack.c.bf16 %v2089, %v2089
        %s2091 = scalar_lea.vmem %s798, 8 [#allocation4]
        %2092 = vst.msk [vmem:[%s2091] sm:$0xf] %vm956, %v2090
        %2093 = vrot.lane.b32.xlu0 %v1709, 80
        %v2094 = vpop.permute.xlu0 %2093
        %v2096 = vsel %vm897, %v2090, 0
        %v2099 = vsel %vm963, %v2094, 0
        %2101 = vmatprep.subr.bf16.mxu0 0
        %2102 = vmatpush1.bf16.msra.mxu0 %v2099
        %2103 = vmatprep.subr.bf16.mxu0 0
        %2104 = vmatpush1.bf16.msra.mxu0 0
        %2105 = vmatprep.subr.bf16.mxu0 0
        %2106 = vmatpush1.bf16.msra.mxu0 0
        %2107 = vmatprep.subr.bf16.mxu0 0
        %2108 = vmatpush1.bf16.msra.mxu0 0
        %2109 = vmatprep.subr.bf16.mxu0 0
        %2110 = vmatpush1.bf16.msra.mxu0 0
        %2111 = vmatprep.subr.bf16.mxu0 0
        %2112 = vmatpush1.bf16.msra.mxu0 0
        %2113 = vmatprep.subr.bf16.mxu0 0
        %2114 = vmatpush1.bf16.msra.mxu0 0
        %2115 = vmatprep.subr.bf16.mxu0 0
        %2116 = vmatpush1.bf16.msra.mxu0 0
        %2117 = vmatprep.subr.bf16.mxu0 0
        %2118 = vmatpush1.bf16.msra.mxu0 0
        %2119 = vmatprep.subr.bf16.mxu0 0
        %2120 = vmatpush1.bf16.msra.mxu0 0
        %2121 = vmatprep.subr.bf16.mxu0 0
        %2122 = vmatpush1.bf16.msra.mxu0 0
        %2123 = vmatprep.subr.bf16.mxu0 0
        %2124 = vmatpush1.bf16.msra.mxu0 0
        %2125 = vmatprep.subr.bf16.mxu0 0
        %2126 = vmatpush1.bf16.msra.mxu0 0
        %2127 = vmatprep.subr.bf16.mxu0 0
        %2128 = vmatpush1.bf16.msra.mxu0 0
        %2129 = vmatprep.subr.bf16.mxu0 0
        %2130 = vmatpush1.bf16.msra.mxu0 0
        %2131 = vmatprep.subr.bf16.mxu0 0
        %2132 = vmatpush1.bf16.msra.mxu0 0
        %2133 = vmatprep.mubr.bf16.mxu0 0
        %2134 = vmatmul.mubr.bf16.gmra.mrb[0].mxu0 %v2096
        %v2135 = vpop.f32.mrb[0].mxu0
        %v2136 = vadd.f32 0.0, %v2135
        %v2137 = vpop.f32.mrb[0].mxu0
        %v2138 = vpop.f32.mrb[0].mxu0
        %v2139 = vpop.f32.mrb[0].mxu0
        %2140 = vdwg.mxu0
        %v2141 = vpack.c.bf16 %v2136, %v2136
        %v2143 = vsel %vm897, %v2141, 0
        %v2146 = vsel %vm963, %v1712, 0
        %2148 = vmatprep.subr.bf16.mxu0 0
        %2149 = vmatpush1.bf16.msra.mxu0 %v2146
        %2150 = vmatprep.subr.bf16.mxu0 0
        %2151 = vmatpush1.bf16.msra.mxu0 0
        %2152 = vmatprep.subr.bf16.mxu0 0
        %2153 = vmatpush1.bf16.msra.mxu0 0
        %2154 = vmatprep.subr.bf16.mxu0 0
        %2155 = vmatpush1.bf16.msra.mxu0 0
        %2156 = vmatprep.subr.bf16.mxu0 0
        %2157 = vmatpush1.bf16.msra.mxu0 0
        %2158 = vmatprep.subr.bf16.mxu0 0
        %2159 = vmatpush1.bf16.msra.mxu0 0
        %2160 = vmatprep.subr.bf16.mxu0 0
        %2161 = vmatpush1.bf16.msra.mxu0 0
        %2162 = vmatprep.subr.bf16.mxu0 0
        %2163 = vmatpush1.bf16.msra.mxu0 0
        %2164 = vmatprep.subr.bf16.mxu0 0
        %2165 = vmatpush1.bf16.msra.mxu0 0
        %2166 = vmatprep.subr.bf16.mxu0 0
        %2167 = vmatpush1.bf16.msra.mxu0 0
        %2168 = vmatprep.subr.bf16.mxu0 0
        %2169 = vmatpush1.bf16.msra.mxu0 0
        %2170 = vmatprep.subr.bf16.mxu0 0
        %2171 = vmatpush1.bf16.msra.mxu0 0
        %2172 = vmatprep.subr.bf16.mxu0 0
        %2173 = vmatpush1.bf16.msra.mxu0 0
        %2174 = vmatprep.subr.bf16.mxu0 0
        %2175 = vmatpush1.bf16.msra.mxu0 0
        %2176 = vmatprep.subr.bf16.mxu0 0
        %2177 = vmatpush1.bf16.msra.mxu0 0
        %2178 = vmatprep.subr.bf16.mxu0 0
        %2179 = vmatpush1.bf16.msra.mxu0 0
        %2180 = vmatprep.mubr.bf16.mxu0 0
        %2181 = vmatmul.mubr.bf16.gmra.mrb[0].mxu0 %v2143
        %v2182 = vpop.f32.mrb[0].mxu0
        %v2183 = vadd.f32 0.0, %v2182
        %v2184 = vpop.f32.mrb[0].mxu0
        %v2185 = vpop.f32.mrb[0].mxu0
        %v2186 = vpop.f32.mrb[0].mxu0
        %2187 = vdwg.mxu0
        %v2188 = vadd.f32 %v2024, %v2183
        %2189 = vrot.lane.b32.xlu0 %v1708, 104
        %v2190 = vpop.permute.xlu0 %2189
        %2191 = vrot.lane.b32.xlu0 %v1709, 104
        %v2192 = vpop.permute.xlu0 %2191
        %v2194 = vsel %vm897, %v2190, 0
        %v2197 = vsel %vm897, %v2192, 0
        %2199 = vmatprep.subr.bf16.mxu0 0
        %2200 = vmatpush1.bf16.xpose.msra.mxu0 %v2197
        %2201 = vmatprep.subr.bf16.mxu0 0
        %2202 = vmatpush1.bf16.xpose.msra.mxu0 0
        %2203 = vmatprep.subr.bf16.mxu0 0
        %2204 = vmatpush1.bf16.xpose.msra.mxu0 0
        %2205 = vmatprep.subr.bf16.mxu0 0
        %2206 = vmatpush1.bf16.xpose.msra.mxu0 0
        %2207 = vmatprep.subr.bf16.mxu0 0
        %2208 = vmatpush1.bf16.xpose.msra.mxu0 0
        %2209 = vmatprep.subr.bf16.mxu0 0
        %2210 = vmatpush1.bf16.xpose.msra.mxu0 0
        %2211 = vmatprep.subr.bf16.mxu0 0
        %2212 = vmatpush1.bf16.xpose.msra.mxu0 0
        %2213 = vmatprep.subr.bf16.mxu0 0
        %2214 = vmatpush1.bf16.xpose.msra.mxu0 0
        %2215 = vmatprep.subr.bf16.mxu0 0
        %2216 = vmatpush1.bf16.xpose.msra.mxu0 0
        %2217 = vmatprep.subr.bf16.mxu0 0
        %2218 = vmatpush1.bf16.xpose.msra.mxu0 0
        %2219 = vmatprep.subr.bf16.mxu0 0
        %2220 = vmatpush1.bf16.xpose.msra.mxu0 0
        %2221 = vmatprep.subr.bf16.mxu0 0
        %2222 = vmatpush1.bf16.xpose.msra.mxu0 0
        %2223 = vmatprep.subr.bf16.mxu0 0
        %2224 = vmatpush1.bf16.xpose.msra.mxu0 0
        %2225 = vmatprep.subr.bf16.mxu0 0
        %2226 = vmatpush1.bf16.xpose.msra.mxu0 0
        %2227 = vmatprep.subr.bf16.mxu0 0
        %2228 = vmatpush1.bf16.xpose.msra.mxu0 0
        %2229 = vmatprep.subr.bf16.mxu0 0
        %2230 = vmatpush1.bf16.xpose.msra.mxu0 0
        %2231 = vmatprep.mubr.bf16.mxu0 0
        %2232 = vmatmul.mubr.bf16.gmra.mrb[0].mxu0 %v2194
        %v2233 = vpop.f32.mrb[0].mxu0
        %v2234 = vadd.f32 0.0, %v2233
        %v2235 = vpop.f32.mrb[0].mxu0
        %v2236 = vpop.f32.mrb[0].mxu0
        %v2237 = vpop.f32.mrb[0].mxu0
        %2238 = vdwg.mxu0
        %v2239 = vsel %vm897, %v2234, -inf
        %2240 = vmax.xlane.f32.xlu0 %v2239
        %v2241 = vpop.xlane.xlu0 %2240
        %v2242 = vsub.f32 %v2234, %v2241
        %v2243 = vmul.f32 %v2242, 1.442695
        %v2244 = vpow.pop %v2243
        %v2245 = vsel %vm897, %v2244, 0.0
        %2246 = vadd.xlane.f32.xlu0 %v2245
        %v2247 = vpop.xlane.xlu0 %2246
        %v2248 = vrcp.pop %v2247
        %v2249 = vmul.f32 %v2244, %v2248
        %v2250 = vpack.c.bf16 %v2249, %v2249
        %s2251 = scalar_lea.vmem %s798, 12 [#allocation4]
        %2252 = vst.msk [vmem:[%s2251] sm:$0xf] %vm956, %v2250
        %2253 = vrot.lane.b32.xlu0 %v1709, 72
        %v2254 = vpop.permute.xlu0 %2253
        %v2256 = vsel %vm897, %v2250, 0
        %v2259 = vsel %vm963, %v2254, 0
        %2261 = vmatprep.subr.bf16.mxu0 0
        %2262 = vmatpush1.bf16.msra.mxu0 %v2259
        %2263 = vmatprep.subr.bf16.mxu0 0
        %2264 = vmatpush1.bf16.msra.mxu0 0
        %2265 = vmatprep.subr.bf16.mxu0 0
        %2266 = vmatpush1.bf16.msra.mxu0 0
        %2267 = vmatprep.subr.bf16.mxu0 0
        %2268 = vmatpush1.bf16.msra.mxu0 0
        %2269 = vmatprep.subr.bf16.mxu0 0
        %2270 = vmatpush1.bf16.msra.mxu0 0
        %2271 = vmatprep.subr.bf16.mxu0 0
        %2272 = vmatpush1.bf16.msra.mxu0 0
        %2273 = vmatprep.subr.bf16.mxu0 0
        %2274 = vmatpush1.bf16.msra.mxu0 0
        %2275 = vmatprep.subr.bf16.mxu0 0
        %2276 = vmatpush1.bf16.msra.mxu0 0
        %2277 = vmatprep.subr.bf16.mxu0 0
        %2278 = vmatpush1.bf16.msra.mxu0 0
        %2279 = vmatprep.subr.bf16.mxu0 0
        %2280 = vmatpush1.bf16.msra.mxu0 0
        %2281 = vmatprep.subr.bf16.mxu0 0
        %2282 = vmatpush1.bf16.msra.mxu0 0
        %2283 = vmatprep.subr.bf16.mxu0 0
        %2284 = vmatpush1.bf16.msra.mxu0 0
        %2285 = vmatprep.subr.bf16.mxu0 0
        %2286 = vmatpush1.bf16.msra.mxu0 0
        %2287 = vmatprep.subr.bf16.mxu0 0
        %2288 = vmatpush1.bf16.msra.mxu0 0
        %2289 = vmatprep.subr.bf16.mxu0 0
        %2290 = vmatpush1.bf16.msra.mxu0 0
        %2291 = vmatprep.subr.bf16.mxu0 0
        %2292 = vmatpush1.bf16.msra.mxu0 0
        %2293 = vmatprep.mubr.bf16.mxu0 0
        %2294 = vmatmul.mubr.bf16.gmra.mrb[0].mxu0 %v2256
        %v2295 = vpop.f32.mrb[0].mxu0
        %v2296 = vadd.f32 0.0, %v2295
        %v2297 = vpop.f32.mrb[0].mxu0
        %v2298 = vpop.f32.mrb[0].mxu0
        %v2299 = vpop.f32.mrb[0].mxu0
        %2300 = vdwg.mxu0
        %v2301 = vpack.c.bf16 %v2296, %v2296
        %v2303 = vsel %vm897, %v2301, 0
        %v2306 = vsel %vm963, %v1713, 0
        %2308 = vmatprep.subr.bf16.mxu0 0
        %2309 = vmatpush1.bf16.msra.mxu0 %v2306
        %2310 = vmatprep.subr.bf16.mxu0 0
        %2311 = vmatpush1.bf16.msra.mxu0 0
        %2312 = vmatprep.subr.bf16.mxu0 0
        %2313 = vmatpush1.bf16.msra.mxu0 0
        %2314 = vmatprep.subr.bf16.mxu0 0
        %2315 = vmatpush1.bf16.msra.mxu0 0
        %2316 = vmatprep.subr.bf16.mxu0 0
        %2317 = vmatpush1.bf16.msra.mxu0 0
        %2318 = vmatprep.subr.bf16.mxu0 0
        %2319 = vmatpush1.bf16.msra.mxu0 0
        %2320 = vmatprep.subr.bf16.mxu0 0
        %2321 = vmatpush1.bf16.msra.mxu0 0
        %2322 = vmatprep.subr.bf16.mxu0 0
        %2323 = vmatpush1.bf16.msra.mxu0 0
        %2324 = vmatprep.subr.bf16.mxu0 0
        %2325 = vmatpush1.bf16.msra.mxu0 0
        %2326 = vmatprep.subr.bf16.mxu0 0
        %2327 = vmatpush1.bf16.msra.mxu0 0
        %2328 = vmatprep.subr.bf16.mxu0 0
        %2329 = vmatpush1.bf16.msra.mxu0 0
        %2330 = vmatprep.subr.bf16.mxu0 0
        %2331 = vmatpush1.bf16.msra.mxu0 0
        %2332 = vmatprep.subr.bf16.mxu0 0
        %2333 = vmatpush1.bf16.msra.mxu0 0
        %2334 = vmatprep.subr.bf16.mxu0 0
        %2335 = vmatpush1.bf16.msra.mxu0 0
        %2336 = vmatprep.subr.bf16.mxu0 0
        %2337 = vmatpush1.bf16.msra.mxu0 0
        %2338 = vmatprep.subr.bf16.mxu0 0
        %2339 = vmatpush1.bf16.msra.mxu0 0
        %2340 = vmatprep.mubr.bf16.mxu0 0
        %2341 = vmatmul.mubr.bf16.gmra.mrb[0].mxu0 %v2303
        %v2342 = vpop.f32.mrb[0].mxu0
        %v2343 = vadd.f32 0.0, %v2342
        %v2344 = vpop.f32.mrb[0].mxu0
        %v2345 = vpop.f32.mrb[0].mxu0
        %v2346 = vpop.f32.mrb[0].mxu0
        %2347 = vdwg.mxu0
        %v2348 = vadd.f32 %v2188, %v2343
        %v2349 = vadd.f32 %v1572, %v2348
        %v2350 = vld [vmem:[%s12] sm:$0x1]
        %v2352 = vlaneseq
        %v2353 = vshrl.u32 %v2352, 7
        %v2354 = vsub.s32 0, %v2353
        %v2355 = vrot.slane %v2350, %v2354
        %v2357 = vadd.f32 %v2349, %v2355
        %v2358 = vsel %vm843, %v2357, 0.0
        %2359 = vadd.xlane.f32.xlu0 %v2358
        %v2360 = vpop.xlane.xlu0 %2359
        %v2361 = vmul.f32 %v2360, %v1546
        %v2362 = vsub.f32 %v2357, %v2361
        %v2363 = vmul.f32 %v2362, %v2362
        %v2364 = vsel %vm843, %v2363, 0.0
        %2365 = vadd.xlane.f32.xlu0 %v2364
        %v2366 = vpop.xlane.xlu0 %2365
        %v2367 = vmul.f32 %v2366, %v1546
        %v2368 = vadd.f32 %v2367, 1e-05
        %v2369 = vrsqrt.pop %v2368
        %v2370 = vmul.f32 %v2362, %v2369
        %v2371 = vld [vmem:[%s19] sm:$0x1]
        %v2373 = vlaneseq
        %v2374 = vshrl.u32 %v2373, 7
        %v2375 = vsub.s32 0, %v2374
        %v2376 = vrot.slane %v2371, %v2375
        %v2378 = vmul.f32 %v2370, %v2376
        %v2379 = vld [vmem:[%s20] sm:$0x1]
        %v2381 = vlaneseq
        %v2382 = vshrl.u32 %v2381, 7
        %v2383 = vsub.s32 0, %v2382
        %v2384 = vrot.slane %v2379, %v2383
        %v2386 = vadd.f32 %v2378, %v2384
        %v2387 = vpack.c.bf16 %v2386, %v2386
        %v2388 = vld [vmem:[%s13] sm:$0xf]
        %v2389 = vld [vmem:[%s13 + $0x4] sm:$0xf]
        %v2390 = vld [vmem:[%s13 + $0x8] sm:$0xf]
        %v2391 = vld [vmem:[%s13 + $0xc] sm:$0xf]
        %v2392 = vld [vmem:[%s14] sm:$0x1]
        %v2394 = vlaneseq
        %v2395 = vshrl.u32 %v2394, 7
        %v2396 = vsub.s32 0, %v2395
        %v2397 = vrot.slane %v2392, %v2396
        %v2403 = vunpack.c.l.b16 %v2388
        %v2404 = vunpack.c.l.b16 %v2389
        %v2405 = vunpack.c.l.b16 %v2390
        %v2406 = vunpack.c.l.b16 %v2391
        %v2407 = vpack.c.b16 %v2404, %v2403
        %v2408 = vpack.c.b16 %v2406, %v2405
        %v2412 = vsel %vm843, %v2387, 0
        %2414 = vmatprep.subr.bf16.mxu0 0
        %2415 = vmatpush1.bf16.msra.mxu0 %v2407
        %2416 = vmatprep.subr.bf16.mxu0 0
        %2417 = vmatpush1.bf16.msra.mxu0 %v2408
        %2418 = vmatprep.subr.bf16.mxu0 0
        %2419 = vmatpush1.bf16.msra.mxu0 0
        %2420 = vmatprep.subr.bf16.mxu0 0
        %2421 = vmatpush1.bf16.msra.mxu0 0
        %2422 = vmatprep.subr.bf16.mxu0 0
        %2423 = vmatpush1.bf16.msra.mxu0 0
        %2424 = vmatprep.subr.bf16.mxu0 0
        %2425 = vmatpush1.bf16.msra.mxu0 0
        %2426 = vmatprep.subr.bf16.mxu0 0
        %2427 = vmatpush1.bf16.msra.mxu0 0
        %2428 = vmatprep.subr.bf16.mxu0 0
        %2429 = vmatpush1.bf16.msra.mxu0 0
        %2430 = vmatprep.subr.bf16.mxu0 0
        %2431 = vmatpush1.bf16.msra.mxu0 0
        %2432 = vmatprep.subr.bf16.mxu0 0
        %2433 = vmatpush1.bf16.msra.mxu0 0
        %2434 = vmatprep.subr.bf16.mxu0 0
        %2435 = vmatpush1.bf16.msra.mxu0 0
        %2436 = vmatprep.subr.bf16.mxu0 0
        %2437 = vmatpush1.bf16.msra.mxu0 0
        %2438 = vmatprep.subr.bf16.mxu0 0
        %2439 = vmatpush1.bf16.msra.mxu0 0
        %2440 = vmatprep.subr.bf16.mxu0 0
        %2441 = vmatpush1.bf16.msra.mxu0 0
        %2442 = vmatprep.subr.bf16.mxu0 0
        %2443 = vmatpush1.bf16.msra.mxu0 0
        %2444 = vmatprep.subr.bf16.mxu0 0
        %2445 = vmatpush1.bf16.msra.mxu0 0
        %2446 = vmatprep.mubr.bf16.mxu0 0
        %2447 = vmatmul.mubr.bf16.gmra.mrb[0].mxu0 %v2412
        %v2448 = vpop.f32.mrb[0].mxu0
        %v2449 = vadd.f32 %v2397, %v2448
        %v2450 = vpop.f32.mrb[0].mxu0
        %v2451 = vpop.f32.mrb[0].mxu0
        %v2452 = vpop.f32.mrb[0].mxu0
        %2453 = vdwg.mxu0
        %v2454 = vmax.f32 %v2449, 0.0
        %v2455 = vpack.c.bf16 %v2454, %v2454
        %v2456 = vld [vmem:[%s15] sm:$0xf]
        %v2457 = vld [vmem:[%s15 + $0x4] sm:$0xf]
        %v2458 = vld [vmem:[%s15 + $0x8] sm:$0xf]
        %v2459 = vld [vmem:[%s15 + $0xc] sm:$0xf]
        %v2460 = vld [vmem:[%s15 + $0x10] sm:$0xf]
        %v2461 = vld [vmem:[%s15 + $0x14] sm:$0xf]
        %v2462 = vld [vmem:[%s15 + $0x18] sm:$0xf]
        %v2463 = vld [vmem:[%s15 + $0x1c] sm:$0xf]
        %v2464 = vld [vmem:[%s16] sm:$0x1]
        %v2466 = vlaneseq
        %v2467 = vshrl.u32 %v2466, 7
        %v2468 = vsub.s32 0, %v2467
        %v2469 = vrot.slane %v2464, %v2468
        %v2479 = vunpack.c.l.b16 %v2456
        %v2480 = vunpack.c.l.b16 %v2457
        %v2481 = vunpack.c.l.b16 %v2458
        %v2482 = vunpack.c.l.b16 %v2459
        %v2483 = vunpack.c.l.b16 %v2460
        %v2484 = vunpack.c.l.b16 %v2461
        %v2485 = vunpack.c.l.b16 %v2462
        %v2486 = vunpack.c.l.b16 %v2463
        %v2487 = vpack.c.b16 %v2480, %v2479
        %v2488 = vpack.c.b16 %v2482, %v2481
        %v2489 = vpack.c.b16 %v2484, %v2483
        %v2490 = vpack.c.b16 %v2486, %v2485
        %vm2495 = vcmask 523264
        %v2497 = vsel %vm2495, %v2455, 0
        %2499 = vmatprep.subr.bf16.mxu0 0
        %2500 = vmatpush1.bf16.msra.mxu0 %v2487
        %2501 = vmatprep.subr.bf16.mxu0 0
        %2502 = vmatpush1.bf16.msra.mxu0 %v2488
        %2503 = vmatprep.subr.bf16.mxu0 0
        %2504 = vmatpush1.bf16.msra.mxu0 %v2489
        %2505 = vmatprep.subr.bf16.mxu0 0
        %2506 = vmatpush1.bf16.msra.mxu0 %v2490
        %2507 = vmatprep.subr.bf16.mxu0 0
        %2508 = vmatpush1.bf16.msra.mxu0 0
        %2509 = vmatprep.subr.bf16.mxu0 0
        %2510 = vmatpush1.bf16.msra.mxu0 0
        %2511 = vmatprep.subr.bf16.mxu0 0
        %2512 = vmatpush1.bf16.msra.mxu0 0
        %2513 = vmatprep.subr.bf16.mxu0 0
        %2514 = vmatpush1.bf16.msra.mxu0 0
        %2515 = vmatprep.subr.bf16.mxu0 0
        %2516 = vmatpush1.bf16.msra.mxu0 0
        %2517 = vmatprep.subr.bf16.mxu0 0
        %2518 = vmatpush1.bf16.msra.mxu0 0
        %2519 = vmatprep.subr.bf16.mxu0 0
        %2520 = vmatpush1.bf16.msra.mxu0 0
        %2521 = vmatprep.subr.bf16.mxu0 0
        %2522 = vmatpush1.bf16.msra.mxu0 0
        %2523 = vmatprep.subr.bf16.mxu0 0
        %2524 = vmatpush1.bf16.msra.mxu0 0
        %2525 = vmatprep.subr.bf16.mxu0 0
        %2526 = vmatpush1.bf16.msra.mxu0 0
        %2527 = vmatprep.subr.bf16.mxu0 0
        %2528 = vmatpush1.bf16.msra.mxu0 0
        %2529 = vmatprep.subr.bf16.mxu0 0
        %2530 = vmatpush1.bf16.msra.mxu0 0
        %2531 = vmatprep.mubr.bf16.mxu0 0
        %2532 = vmatmul.mubr.bf16.gmra.mrb[0].mxu0 %v2497
        %v2533 = vpop.f32.mrb[0].mxu0
        %v2534 = vadd.f32 %v2469, %v2533
        %v2535 = vpop.f32.mrb[0].mxu0
        %v2536 = vpop.f32.mrb[0].mxu0
        %v2537 = vpop.f32.mrb[0].mxu0
        %2538 = vdwg.mxu0
        %v2539 = vadd.f32 %v2386, %v2534
        %v2540 = vsel %vm843, %v2539, 0.0
        %2541 = vadd.xlane.f32.xlu0 %v2540
        %v2542 = vpop.xlane.xlu0 %2541
        %v2543 = vmul.f32 %v2542, %v1546
        %v2544 = vsub.f32 %v2539, %v2543
        %v2545 = vmul.f32 %v2544, %v2544
        %v2546 = vsel %vm843, %v2545, 0.0
        %2547 = vadd.xlane.f32.xlu0 %v2546
        %v2548 = vpop.xlane.xlu0 %2547
        %v2549 = vmul.f32 %v2548, %v1546
        %v2550 = vadd.f32 %v2549, 1e-05
        %v2551 = vrsqrt.pop %v2550
        %v2552 = vmul.f32 %v2544, %v2551
        %v2553 = vld [vmem:[%s21] sm:$0x1]
        %v2555 = vlaneseq
        %v2556 = vshrl.u32 %v2555, 7
        %v2557 = vsub.s32 0, %v2556
        %v2558 = vrot.slane %v2553, %v2557
        %v2560 = vmul.f32 %v2552, %v2558
        %v2561 = vld [vmem:[%s22] sm:$0x1]
        %v2563 = vlaneseq
        %v2564 = vshrl.u32 %v2563, 7
        %v2565 = vsub.s32 0, %v2564
        %v2566 = vrot.slane %v2561, %v2565
        %v2568 = vadd.f32 %v2560, %v2566
        %2569 = vst.msk [vmem:[%s814] sm:$0xff] %vm843, %v2568
        %p2570 = scmp.lt.s32.totalorder %s43, 1
        %s2571 = scalar_select %p2570, %s43, 1
        %s2572 = smul.addr %s2571, 8
        %s2573 = scalar_lea.vmem %s23, %s2572
        %s2574 = sand.u32 %s575, 1
        %s2575 = scalar_lea.sflag [#allocation3], %s2574
        %s2576 = sand.u32 %s575, 1
        %s2577 = smul.addr %s2576, 16
        %s2578 = scalar_lea.vmem [#allocation2], %s2577
        %s2579 = sand.u32 %s601, 1
        %s2580 = scalar_lea.sflag [#allocation5], %s2579
        %s2581 = sand.u32 %s601, 1
        %s2582 = smul.addr %s2581, 16
        %s2583 = scalar_lea.vmem [#allocation4], %s2582
        // Predicated region
        $region113: #{full_decoder.3} parent=111 // pred_check
          %p2584 = pneg %p559
        $region114: #{full_decoder.3} parent=111 // pred_check_branch
          %2586 = sbr.rel (%p2584) target = $region116
        $region115: #{full_decoder.3} parent=111 // pred_region
          _
        $region116: #{full_decoder.3} parent=111 // pred_fallthru
          _
        // Predicated region
        $region117: #{full_decoder.3} parent=111 // pred_check
          %p2587 = pneg %p585
        $region118: #{full_decoder.3} parent=111 // pred_check_branch
          %2589 = sbr.rel (%p2587) target = $region120
        $region119: #{full_decoder.3} parent=111 // pred_region
          %s2591 = ssub.s32 256, 256
          %2592 = vsyncadd %s2575, %s2591
          %s2593 = smul.addr %s43, 4
          %s2594 = smul.addr %s2593, 64
          %s2595 = scalar_lea.hbm %s24, %s2594
          %s2596 = sshll.u32 %s2578, 4
          %s2597 = int_to_ptr.vmem [resolvable:$true] %s2596
          %2602 = dma.vmem_to_hbm [thread:$0]  %s2597, 256, %s2595, %s2575, 64, 64, 4
        $region120: #{full_decoder.3} parent=111 // pred_fallthru
          _
        // Predicated region
        $region121: #{full_decoder.3} parent=111 // pred_check
          %p2603 = pneg %p611
        $region122: #{full_decoder.3} parent=111 // pred_check_branch
          %2605 = sbr.rel (%p2603) target = $region124
        $region123: #{full_decoder.3} parent=111 // pred_region
          %s2607 = ssub.s32 256, 256
          %2608 = vsyncadd %s2580, %s2607
          %s2609 = smul.addr %s43, 4
          %s2610 = smul.addr %s2609, 64
          %s2611 = scalar_lea.hbm %s25, %s2610
          %s2612 = sshll.u32 %s2583, 4
          %s2613 = int_to_ptr.vmem [resolvable:$true] %s2612
          %2618 = dma.vmem_to_hbm [thread:$0]  %s2613, 256, %s2611, %s2580, 64, 64, 4
        $region124: #{full_decoder.3} parent=111 // pred_fallthru
          _
      $region112: #{full_decoder.3} parent=5 // pred_fallthru
        _
      %p2619 = scmp.le.s32.totalorder 2, %s38
      // Predicated region
      $region125: #{full_decoder.3} parent=5 // pred_check
        %p2620 = pneg %p2619
      $region126: #{full_decoder.3} parent=5 // pred_check_branch
        %2622 = sbr.rel (%p2620) target = $region128
      $region127: #{full_decoder.3} parent=5 // pred_region
        %s2623 = ssub.s32 %s38, 2
        // Predicated region
        $region129: #{full_decoder.3} parent=127 // pred_check
          %p2624 = pneg %p565
        $region130: #{full_decoder.3} parent=127 // pred_check_branch
          %2626 = sbr.rel (%p2624) target = $region132
        $region131: #{full_decoder.3} parent=127 // pred_region
          %p2627 = scmp.lt.s32.totalorder %s44, 1
          %s2628 = scalar_select %p2627, %s44, 1
          %s2629 = smul.addr %s2628, 8
          %s2630 = scalar_lea.vmem %s23, %s2629
        $region132: #{full_decoder.3} parent=127 // pred_fallthru
          _
        // Predicated region
        $region133: #{full_decoder.3} parent=127 // pred_check
          %p2631 = pneg %p591
        $region134: #{full_decoder.3} parent=127 // pred_check_branch
          %2633 = sbr.rel (%p2631) target = $region136
        $region135: #{full_decoder.3} parent=127 // pred_region
          %s2634 = sand.u32 %s576, 1
          %s2635 = scalar_lea.sflag [#allocation3], %s2634
          %s2636 = sand.u32 %s576, 1
          %s2637 = smul.addr %s2636, 16
          %s2638 = scalar_lea.vmem [#allocation2], %s2637
          %2639 = dma.done %s2635, 256
        $region136: #{full_decoder.3} parent=127 // pred_fallthru
          _
        // Predicated region
        $region137: #{full_decoder.3} parent=127 // pred_check
          %p2640 = pneg %p617
        $region138: #{full_decoder.3} parent=127 // pred_check_branch
          %2642 = sbr.rel (%p2640) target = $region140
        $region139: #{full_decoder.3} parent=127 // pred_region
          %s2643 = sand.u32 %s602, 1
          %s2644 = scalar_lea.sflag [#allocation5], %s2643
          %s2645 = sand.u32 %s602, 1
          %s2646 = smul.addr %s2645, 16
          %s2647 = scalar_lea.vmem [#allocation4], %s2646
          %2648 = dma.done %s2644, 256
        $region140: #{full_decoder.3} parent=127 // pred_fallthru
          _
      $region128: #{full_decoder.3} parent=5 // pred_fallthru
        _
    $region6: #{full_decoder.3} parent=1 // loop_footer
      %s42 = sadd.s32 1, %s38
    $region7: #{full_decoder.3} parent=1 // loop_footer_branch
      %37 = sbr.rel target = $region3
    $region8: #{full_decoder.3} parent=1 // loop_exit
      _
    %2649 = vsyncpa [#allocation3], 1
    %s2650 = scalar_lea.sflag [#allocation3], 1
    %2651 = vsyncpa %s2650, 1
    %2652 = vsyncpa [#allocation5], 1
    %s2653 = scalar_lea.sflag [#allocation5], 1
    %2654 = vsyncpa %s2653, 1

</llo_original>
